<compile_context>
chip_gen: v6e
topology: v6e:2x2x1
jax: 0.10.0
libtpu: 0.0.40
codegen_flags: <defaults>
</compile_context>

<pallas_src>
import jax
import jax.numpy as jnp
from jax import lax
from jax.experimental import pallas as pl
from jax.experimental.pallas import tpu as pltpu

# ---- small synthetic config (mirrors SEQ2SEQ.__init__ argument roles) -------
I_STEPS = 8        # self.i   (n_input_step)
O_STEPS = 4        # self.o   (n_output_step)
B       = 2        # batch
F_SIZE  = 64       # f_size   (video feature size)
H_SIZE  = 32       # h_size
E_SIZE  = 32       # e_size   (= self.f_size_)
V_SIZE  = 32       # len(vocab.vocabs)
BOS_ID  = 29       # vocab.si['<BOS>']
T_TOTAL = I_STEPS + O_STEPS
NEG_SLOPE = 0.01   # F.leaky_relu default slope
LANE    = 128      # TPU lane width; every packed weight is padded to this

# The weight-slab packing below stacks all small matrices along a (32,128)
# tile: it relies on H == E == V == 32 for this synthetic config.
assert H_SIZE == E_SIZE == V_SIZE == 32

# weight-slab entry indices (each entry is (32, 128), zero-padded past its cols)
W_ENC_IH, W_ENC_HH, W_DEC_HH, W_SEG_C, W_SEG_E, W_EF, W_OUT = range(7)
# bias-slab row indices (bias slab is a single (8, 128) vreg tile)
B_FC, B_ENC_GI, B_ENC_HN, B_DEC_GI, B_DEC_HN, B_OUT = range(6)


# Reference-only helper (PyTorch GRUCell update with lane-sliced gates).
def gru_combine(gi, gh, h):
    r = jax.nn.sigmoid(gi[:, :H_SIZE] + gh[:, :H_SIZE])
    z = jax.nn.sigmoid(gi[:, H_SIZE:2 * H_SIZE] + gh[:, H_SIZE:2 * H_SIZE])
    n = jnp.tanh(gi[:, 2 * H_SIZE:] + r * gh[:, 2 * H_SIZE:])
    return (1.0 - z) * n + z * h


# ----------------------------- Pallas kernel ---------------------------------
def seq2seq_kernel(feats_ref, tgt_ref, fcw_ref, w_ref, b_ref, loss_ref):
    f32 = jnp.float32
    Hs, H2, H3 = H_SIZE, 2 * H_SIZE, 3 * H_SIZE

    # ---- bias slab: one (8,128) load = 1 vreg --------------------------------
    bias = b_ref[...]
    fc_b      = bias[B_FC:B_FC + 1, :E_SIZE]            # (1, E)
    enc_gib   = bias[B_ENC_GI:B_ENC_GI + 1, :]          # (1, 128) (pads = 0)
    enc_bhh_n = bias[B_ENC_HN:B_ENC_HN + 1, :Hs]        # (1, H)
    dec_gib   = bias[B_DEC_GI:B_DEC_GI + 1, :]          # (1, 128)
    dec_bhh_n = bias[B_DEC_HN:B_DEC_HN + 1, :Hs]        # (1, H)
    out_b     = bias[B_OUT:B_OUT + 1, :V_SIZE]          # (1, V)

    # ---- batched input-side precompute (fc + leaky_relu + encoder W_ih) -----
    # TODO(synk): nn.Dropout(p=0.5) has no deterministic equivalent; treated as
    # identity (inference semantics).
    x = jnp.dot(feats_ref[...], fcw_ref[...],
                preferred_element_type=f32) + fc_b                    # (I*B, E)
    x = jnp.where(x >= 0.0, x, NEG_SLOPE * x)
    gi_enc = jnp.dot(x, w_ref[W_ENC_IH],
                     preferred_element_type=f32) + enc_gib            # (I*B,128)

    # Fused GRU step: one (B,H)x(H,3H->128) hidden matmul, one 64-lane sigmoid.
    # b_hr/b_hz are already folded into the input-side pre-activation; b_hn
    # must stay inside r*(...).
    def gru_step(gi_rz, gi_n, h, whh, bhh_n):
        gh = jnp.dot(h, whh, preferred_element_type=f32)              # (B,128)
        rz = jax.nn.sigmoid(gi_rz + gh[:, :H2])                       # (B, 2H)
        r, z = rz[:, :Hs], rz[:, Hs:]
        n = jnp.tanh(gi_n + r * (gh[:, H2:H3] + bhh_n))
        return (1.0 - z) * n + z * h

    # ---- encoder GRU over all T_TOTAL steps (fully unrolled) ----------------
    e_list = []
    h = jnp.zeros((B, Hs), f32)
    for t in range(T_TOTAL):
        if t < I_STEPS:
            gi = gi_enc[t * B:(t + 1) * B]
            gi_rz, gi_n = gi[:, :H2], gi[:, H2:H3]
        else:  # pad steps: input = zeros -> bias-only pre-activation
            gi_rz, gi_n = enc_gib[:, :H2], enc_gib[:, H2:H3]
        h = gru_step(gi_rz, gi_n, h, w_ref[W_ENC_HH], enc_bhh_n)
        e_list.append(h)

    # ---- decoder pass 1: input = [zeros(H+E), e_t]; only final hidden used --
    # All 8 input-side matmuls batched into one (I*B,H)@(H,3H) matmul.
    e_enc_flat = jnp.concatenate(e_list[:I_STEPS], axis=0)            # (I*B, H)
    gi1 = jnp.dot(e_enc_flat, w_ref[W_SEG_C],
                  preferred_element_type=f32) + dec_gib               # (I*B,128)

    alpha = jnp.zeros((B, Hs), f32)
    for t in range(I_STEPS):
        gi = gi1[t * B:(t + 1) * B]
        alpha = gru_step(gi[:, :H2], gi[:, H2:H3], alpha,
                         w_ref[W_DEC_HH], dec_bhh_n)

    # ---- decode-loop invariant precomputes ----------------------------------
    # e_[I+j] segment pre-activation for all O steps in one matmul (bias here).
    e_dec_flat = jnp.concatenate(e_list[I_STEPS:], axis=0)            # (O*B, H)
    gie = jnp.dot(e_dec_flat, w_ref[W_SEG_E],
                  preferred_element_type=f32) + dec_gib               # (O*B,128)

    e_enc = jnp.stack(e_list[:I_STEPS], axis=0)                       # (I, B, H)
    tgt = tgt_ref[...]                                                # (O*B, V)
    iota_v = lax.broadcasted_iota(jnp.int32, (B, V_SIZE), 1)

    # ---- decode loop: attention + GRU step + logsoftmax + NLL ---------------
    loss = jnp.zeros((), f32)
    prev_logp = None
    for j in range(O_STEPS):
        if j == 0:
            # embed(BOS) @ w_seg_d, precomputed into the ef slab entry
            d = w_ref[W_EF][BOS_ID:BOS_ID + 1, :]                     # (1, 128)
        else:
            # greedy feedback token (tfr = -1 -> teacher forcing never fires);
            # min-index among maxima matches argmax first-index behaviour.
            maxv = jnp.max(prev_logp, axis=1, keepdims=True)
            idx = jnp.min(jnp.where(prev_logp >= maxv, iota_v, V_SIZE),
                          axis=1, keepdims=True)                      # (B, 1)
            onehot = (iota_v == idx).astype(f32)                      # (B, V)
            d = jnp.dot(onehot, w_ref[W_EF],
                        preferred_element_type=f32)                   # (B, 128)

        # attention weights over encoder steps (Att_.forward; Linear unused)
        s = jnp.tanh(jnp.sum(e_enc * alpha, axis=2, keepdims=True))   # (I,B,1)
        s = s - jnp.max(s, axis=0, keepdims=True)
        w_att = jnp.exp(s)
        inv = pl.reciprocal(jnp.sum(w_att, axis=0), approx=True)      # (B, 1)
        w_att = w_att * inv
        c = jnp.sum(w_att * e_enc, axis=0)                            # (B, H)

        # decoder GRU step on concat([d, e_[I+j], c]) with hidden alpha
        gic = jnp.dot(c, w_ref[W_SEG_C], preferred_element_type=f32)  # (B, 128)
        gi = gie[j * B:(j + 1) * B] + d + gic
        alpha = gru_step(gi[:, :H2], gi[:, H2:H3], alpha,
                         w_ref[W_DEC_HH], dec_bhh_n)

        # output projection + log_softmax + NLL against target token j
        logits = jnp.dot(alpha, w_ref[W_OUT],
                         preferred_element_type=f32)[:, :V_SIZE] + out_b
        m = jnp.max(logits, axis=1, keepdims=True)
        logp = (logits - m) - jnp.log(
            jnp.sum(jnp.exp(logits - m), axis=1, keepdims=True))
        nll = -jnp.sum(tgt[j * B:(j + 1) * B] * logp) / B
        loss = loss + nll / O_STEPS
        prev_logp = logp

    loss_ref[0, 0] = loss


# ------------------------------- wrapper --------------------------------------
@jax.jit
def seq2seq_loss_pallas(feats, tgt_onehot, params):
    (fc_w, fc_b, enc_wih, enc_whh, enc_bih, enc_bhh,
     dec_wih, dec_whh, dec_bih, dec_bhh, out_w, out_b, embed) = params
    Hs = H_SIZE

    # layout plumbing only: transposes, per-segment splits, bias folding,
    # weight-only folds (embed @ W_d), and slab packing.
    enc_whhT = enc_whh.T                       # (H, 3H)
    dec_whhT = dec_whh.T                       # (H, 3H)
    dec_wihT = dec_wih.T                       # (2H+E, 3H)
    w_seg_d = dec_wihT[:E_SIZE]                # rows multiplying d
    w_seg_e = dec_wihT[E_SIZE:E_SIZE + Hs]     # rows multiplying e_[I+j]
    w_seg_c = dec_wihT[E_SIZE + Hs:]           # rows multiplying c (and e_t in dec1)
    ef = embed @ w_seg_d                       # (V, 3H): embedding folded once

    # fold b_hr / b_hz into the input-side bias (b_hn must stay inside r*(...))
    enc_gib = jnp.concatenate(
        [enc_bih[:, :2 * Hs] + enc_bhh[:, :2 * Hs], enc_bih[:, 2 * Hs:]], axis=1)
    dec_gib = jnp.concatenate(
        [dec_bih[:, :2 * Hs] + dec_bhh[:, :2 * Hs], dec_bih[:, 2 * Hs:]], axis=1)

    def padw(a):  # lane-pad to 128 so every slab slice is tile-aligned
        return jnp.pad(a, ((0, 0), (0, LANE - a.shape[1])))

    # one weight slab: (7, 32, 128) f32
    w_slab = jnp.stack(
        [padw(enc_wih.T), padw(enc_whhT), padw(dec_whhT),
         padw(w_seg_c), padw(w_seg_e), padw(ef), padw(out_w.T)], axis=0)
    # one bias slab: (8, 128) f32 = exactly one vreg tile
    b_slab = jnp.concatenate(
        [padw(fc_b), padw(enc_gib), padw(enc_bhh[:, 2 * Hs:]),
         padw(dec_gib), padw(dec_bhh[:, 2 * Hs:]), padw(out_b),
         jnp.zeros((2, LANE), jnp.float32)], axis=0)

    kernel_args = (
        feats.reshape(I_STEPS * B, F_SIZE),
        tgt_onehot.reshape(O_STEPS * B, V_SIZE),
        fc_w.T,            # (F, E): separate arg (F != 32 rows)
        w_slab,
        b_slab,
    )
    loss = pl.pallas_call(
        seq2seq_kernel,
        out_shape=jax.ShapeDtypeStruct((1, 1), jnp.float32),
        in_specs=[pl.BlockSpec(memory_space=pltpu.MemorySpace.VMEM)]
                 * len(kernel_args),
        out_specs=pl.BlockSpec(memory_space=pltpu.MemorySpace.SMEM),
    )(*kernel_args)
    return loss[0, 0]


# ------------------------ pure-JAX reference (for checking) -------------------
def seq2seq_loss_ref(feats, tokens, params):
    (fc_w, fc_b, enc_wih, enc_whh, enc_bih, enc_bhh,
     dec_wih, dec_whh, dec_bih, dec_bhh, out_w, out_b, embed) = params
    x = jnp.einsum('tbf,ef->tbe', feats, fc_w) + fc_b
    x = jnp.where(x >= 0.0, x, NEG_SLOPE * x)
    x_full = jnp.concatenate(
        [x, jnp.zeros((O_STEPS, B, E_SIZE), jnp.float32)], axis=0)

    h = jnp.zeros((B, H_SIZE), jnp.float32)
    e_all = []
    for t in range(T_TOTAL):
        gi = x_full[t] @ enc_wih.T + enc_bih
        gh = h @ enc_whh.T + enc_bhh
        h = gru_combine(gi, gh, h)
        e_all.append(h)
    e_all = jnp.stack(e_all, axis=0)

    h = jnp.zeros((B, H_SIZE), jnp.float32)
    for t in range(I_STEPS):
        xin = jnp.concatenate(
            [jnp.zeros((B, H_SIZE + E_SIZE), jnp.float32), e_all[t]], axis=1)
        gi = xin @ dec_wih.T + dec_bih
        gh = h @ dec_whh.T + dec_bhh
        h = gru_combine(gi, gh, h)
    alpha = h

    e_enc = e_all[:I_STEPS]
    loss = jnp.zeros((), jnp.float32)
    prev_logp = jnp.zeros((B, V_SIZE), jnp.float32)
    for j in range(O_STEPS):
        idx = (jnp.full((B,), BOS_ID, jnp.int32) if j == 0
               else jnp.argmax(prev_logp, axis=1))
        d = embed[idx]
        s = jnp.tanh(jnp.einsum('tbh,bh->tb', e_enc, alpha))
        w = jax.nn.softmax(s, axis=0)
        c = jnp.einsum('tb,tbh->bh', w, e_enc)
        xin = jnp.concatenate([d, e_all[I_STEPS + j], c], axis=1)
        gi = xin @ dec_wih.T + dec_bih
        gh = alpha @ dec_whh.T + dec_bhh
        alpha = gru_combine(gi, gh, alpha)
        logits = alpha @ out_w.T + out_b
        logp = jax.nn.log_softmax(logits, axis=1)
        nll = -jnp.mean(logp[jnp.arange(B), tokens[:, j]])
        loss = loss + nll / O_STEPS
        prev_logp = logp
    return loss


# ---------------------- deterministic parameter init --------------------------
def make_params(key):
    ks = jax.random.split(key, 13)
    init = lambda k, shp: 0.1 * jax.random.normal(k, shp, jnp.float32)
    return (init(ks[0], (E_SIZE, F_SIZE)),              # fc.weight
            init(ks[1], (1, E_SIZE)),                   # fc.bias
            init(ks[2], (3 * H_SIZE, E_SIZE)),          # encoder.weight_ih_l0
            init(ks[3], (3 * H_SIZE, H_SIZE)),          # encoder.weight_hh_l0
            init(ks[4], (1, 3 * H_SIZE)),               # encoder.bias_ih_l0
            init(ks[5], (1, 3 * H_SIZE)),               # encoder.bias_hh_l0
            init(ks[6], (3 * H_SIZE, 2 * H_SIZE + E_SIZE)),  # decoder.weight_ih
            init(ks[7], (3 * H_SIZE, H_SIZE)),          # decoder.weight_hh_l0
            init(ks[8], (1, 3 * H_SIZE)),               # decoder.bias_ih_l0
            init(ks[9], (1, 3 * H_SIZE)),               # decoder.bias_hh_l0
            init(ks[10], (V_SIZE, H_SIZE)),             # output.weight
            init(ks[11], (1, V_SIZE)),                  # output.bias
            init(ks[12], (V_SIZE, E_SIZE)))             # embed.weight


if __name__ == "__main__":
    key = jax.random.PRNGKey(0)
    k_feat, k_tok, k_par = jax.random.split(key, 3)
    feats = jax.random.normal(k_feat, (I_STEPS, B, F_SIZE), jnp.float32)
    tokens = jax.random.randint(k_tok, (B, O_STEPS), 0, V_SIZE, dtype=jnp.int32)
    params = make_params(k_par)
    # glue: one-hot targets (time-major) so the in-kernel NLL gather is a matmul
    tgt_onehot = jax.nn.one_hot(tokens.T, V_SIZE, dtype=jnp.float32)  # (O,B,V)

    loss = seq2seq_loss_pallas(feats, tgt_onehot, params)
    jax.block_until_ready(loss)

    ref = seq2seq_loss_ref(feats, tokens, params)
    assert jnp.abs(loss - ref) < 5e-3, (float(loss), float(ref))
    print("KERNEL_OK")
</pallas_src>

<mosaic_0001>
module attributes {stable_mosaic.version = 11 : i64} {
  func.func @seq2seq_kernel(%arg0: memref<16x64xf32, #tpu.memory_space<vmem>>, %arg1: memref<8x32xf32, #tpu.memory_space<vmem>>, %arg2: memref<64x32xf32, #tpu.memory_space<vmem>>, %arg3: memref<7x32x128xf32, #tpu.memory_space<vmem>>, %arg4: memref<8x128xf32, #tpu.memory_space<vmem>>, %arg5: memref<1x1xf32, #tpu.memory_space<smem>>) attributes {dimension_semantics = [], scalar_prefetch = 0 : i64, scratch_operands = 0 : i64, tpu.core_type = #tpu.core_type<tc>} {
    %c0 = arith.constant 0 : index
    %c0_0 = arith.constant 0 : index
    %0 = vector.load %arg4[%c0, %c0_0] : memref<8x128xf32, #tpu.memory_space<vmem>>, vector<8x128xf32>
    %1 = vector.extract_strided_slice %0 {offsets = [0, 0], sizes = [1, 32], strides = [1, 1]} : vector<8x128xf32> to vector<1x32xf32>
    %2 = vector.extract_strided_slice %0 {offsets = [1, 0], sizes = [1, 128], strides = [1, 1]} : vector<8x128xf32> to vector<1x128xf32>
    %3 = vector.extract_strided_slice %0 {offsets = [2, 0], sizes = [1, 32], strides = [1, 1]} : vector<8x128xf32> to vector<1x32xf32>
    %4 = vector.extract_strided_slice %0 {offsets = [3, 0], sizes = [1, 128], strides = [1, 1]} : vector<8x128xf32> to vector<1x128xf32>
    %5 = vector.extract_strided_slice %0 {offsets = [4, 0], sizes = [1, 32], strides = [1, 1]} : vector<8x128xf32> to vector<1x32xf32>
    %6 = vector.extract_strided_slice %0 {offsets = [5, 0], sizes = [1, 32], strides = [1, 1]} : vector<8x128xf32> to vector<1x32xf32>
    %c0_1 = arith.constant 0 : index
    %c0_2 = arith.constant 0 : index
    %7 = vector.load %arg0[%c0_1, %c0_2] : memref<16x64xf32, #tpu.memory_space<vmem>>, vector<16x64xf32>
    %c0_3 = arith.constant 0 : index
    %c0_4 = arith.constant 0 : index
    %8 = vector.load %arg2[%c0_3, %c0_4] : memref<64x32xf32, #tpu.memory_space<vmem>>, vector<64x32xf32>
    %cst = arith.constant dense<0.000000e+00> : vector<16x32xf32>
    %9 = tpu.matmul %7, %8, %cst {dimension_numbers = #tpu.dot_dimension_numbers<[1], [0], [0], [1], [0, 0, 1, 1], [], []>} : vector<16x64xf32>, vector<64x32xf32>, vector<16x32xf32> -> vector<16x32xf32>
    %10 = vector.broadcast %1 : vector<1x32xf32> to vector<16x32xf32>
    %11 = arith.addf %9, %10 : vector<16x32xf32>
    %cst_5 = arith.constant 0.000000e+00 : f32
    %12 = vector.broadcast %cst_5 : f32 to vector<16x32xf32>
    %13 = arith.cmpf oge, %11, %12 : vector<16x32xf32>
    %cst_6 = arith.constant 0.00999999977 : f32
    %14 = vector.broadcast %cst_6 : f32 to vector<16x32xf32>
    %15 = arith.mulf %14, %11 : vector<16x32xf32>
    %16 = arith.select %13, %11, %15 : vector<16x32xi1>, vector<16x32xf32>
    %c0_7 = arith.constant 0 : index
    %c0_8 = arith.constant 0 : index
    %c0_9 = arith.constant 0 : index
    %17 = vector.load %arg3[%c0_7, %c0_8, %c0_9] : memref<7x32x128xf32, #tpu.memory_space<vmem>>, vector<1x32x128xf32>
    %18 = vector.shape_cast %17 : vector<1x32x128xf32> to vector<32x128xf32>
    %cst_10 = arith.constant dense<0.000000e+00> : vector<16x128xf32>
    %19 = tpu.matmul %16, %18, %cst_10 {dimension_numbers = #tpu.dot_dimension_numbers<[1], [0], [0], [1], [0, 0, 1, 1], [], []>} : vector<16x32xf32>, vector<32x128xf32>, vector<16x128xf32> -> vector<16x128xf32>
    %20 = vector.broadcast %2 : vector<1x128xf32> to vector<16x128xf32>
    %21 = arith.addf %19, %20 : vector<16x128xf32>
    %cst_11 = arith.constant 0.000000e+00 : f32
    %22 = vector.broadcast %cst_11 : f32 to vector<2x32xf32>
    %23 = vector.extract_strided_slice %21 {offsets = [0, 0], sizes = [2, 128], strides = [1, 1]} : vector<16x128xf32> to vector<2x128xf32>
    %24 = vector.extract_strided_slice %23 {offsets = [0, 0], sizes = [2, 64], strides = [1, 1]} : vector<2x128xf32> to vector<2x64xf32>
    %25 = vector.extract_strided_slice %23 {offsets = [0, 64], sizes = [2, 32], strides = [1, 1]} : vector<2x128xf32> to vector<2x32xf32>
    %c1 = arith.constant 1 : index
    %c0_12 = arith.constant 0 : index
    %c0_13 = arith.constant 0 : index
    %26 = vector.load %arg3[%c1, %c0_12, %c0_13] : memref<7x32x128xf32, #tpu.memory_space<vmem>>, vector<1x32x128xf32>
    %27 = vector.shape_cast %26 : vector<1x32x128xf32> to vector<32x128xf32>
    %cst_14 = arith.constant dense<0.000000e+00> : vector<2x128xf32>
    %28 = tpu.matmul %22, %27, %cst_14 {dimension_numbers = #tpu.dot_dimension_numbers<[1], [0], [0], [1], [0, 0, 1, 1], [], []>} : vector<2x32xf32>, vector<32x128xf32>, vector<2x128xf32> -> vector<2x128xf32>
    %29 = vector.extract_strided_slice %28 {offsets = [0, 0], sizes = [2, 64], strides = [1, 1]} : vector<2x128xf32> to vector<2x64xf32>
    %30 = arith.addf %24, %29 : vector<2x64xf32>
    %31 = arith.negf %30 : vector<2x64xf32>
    %32 = math.exp %31 : vector<2x64xf32>
    %cst_15 = arith.constant 1.000000e+00 : f32
    %33 = vector.broadcast %cst_15 : f32 to vector<2x64xf32>
    %34 = arith.addf %33, %32 : vector<2x64xf32>
    %35 = arith.divf %33, %34 : vector<2x64xf32>
    %36 = vector.extract_strided_slice %35 {offsets = [0, 0], sizes = [2, 32], strides = [1, 1]} : vector<2x64xf32> to vector<2x32xf32>
    %37 = vector.extract_strided_slice %35 {offsets = [0, 32], sizes = [2, 32], strides = [1, 1]} : vector<2x64xf32> to vector<2x32xf32>
    %38 = vector.extract_strided_slice %28 {offsets = [0, 64], sizes = [2, 32], strides = [1, 1]} : vector<2x128xf32> to vector<2x32xf32>
    %39 = vector.broadcast %3 : vector<1x32xf32> to vector<2x32xf32>
    %40 = arith.addf %38, %39 : vector<2x32xf32>
    %41 = arith.mulf %36, %40 : vector<2x32xf32>
    %42 = arith.addf %25, %41 : vector<2x32xf32>
    %43 = math.tanh %42 : vector<2x32xf32>
    %cst_16 = arith.constant 1.000000e+00 : f32
    %44 = vector.broadcast %cst_16 : f32 to vector<2x32xf32>
    %45 = arith.subf %44, %37 : vector<2x32xf32>
    %46 = arith.mulf %45, %43 : vector<2x32xf32>
    %47 = arith.mulf %37, %22 : vector<2x32xf32>
    %48 = arith.addf %46, %47 : vector<2x32xf32>
    %49 = vector.extract_strided_slice %21 {offsets = [2, 0], sizes = [2, 128], strides = [1, 1]} : vector<16x128xf32> to vector<2x128xf32>
    %50 = vector.extract_strided_slice %49 {offsets = [0, 0], sizes = [2, 64], strides = [1, 1]} : vector<2x128xf32> to vector<2x64xf32>
    %51 = vector.extract_strided_slice %49 {offsets = [0, 64], sizes = [2, 32], strides = [1, 1]} : vector<2x128xf32> to vector<2x32xf32>
    %c1_17 = arith.constant 1 : index
    %c0_18 = arith.constant 0 : index
    %c0_19 = arith.constant 0 : index
    %52 = vector.load %arg3[%c1_17, %c0_18, %c0_19] : memref<7x32x128xf32, #tpu.memory_space<vmem>>, vector<1x32x128xf32>
    %53 = vector.shape_cast %52 : vector<1x32x128xf32> to vector<32x128xf32>
    %cst_20 = arith.constant dense<0.000000e+00> : vector<2x128xf32>
    %54 = tpu.matmul %48, %53, %cst_20 {dimension_numbers = #tpu.dot_dimension_numbers<[1], [0], [0], [1], [0, 0, 1, 1], [], []>} : vector<2x32xf32>, vector<32x128xf32>, vector<2x128xf32> -> vector<2x128xf32>
    %55 = vector.extract_strided_slice %54 {offsets = [0, 0], sizes = [2, 64], strides = [1, 1]} : vector<2x128xf32> to vector<2x64xf32>
    %56 = arith.addf %50, %55 : vector<2x64xf32>
    %57 = arith.negf %56 : vector<2x64xf32>
    %58 = math.exp %57 : vector<2x64xf32>
    %cst_21 = arith.constant 1.000000e+00 : f32
    %59 = vector.broadcast %cst_21 : f32 to vector<2x64xf32>
    %60 = arith.addf %59, %58 : vector<2x64xf32>
    %61 = arith.divf %59, %60 : vector<2x64xf32>
    %62 = vector.extract_strided_slice %61 {offsets = [0, 0], sizes = [2, 32], strides = [1, 1]} : vector<2x64xf32> to vector<2x32xf32>
    %63 = vector.extract_strided_slice %61 {offsets = [0, 32], sizes = [2, 32], strides = [1, 1]} : vector<2x64xf32> to vector<2x32xf32>
    %64 = vector.extract_strided_slice %54 {offsets = [0, 64], sizes = [2, 32], strides = [1, 1]} : vector<2x128xf32> to vector<2x32xf32>
    %65 = vector.broadcast %3 : vector<1x32xf32> to vector<2x32xf32>
    %66 = arith.addf %64, %65 : vector<2x32xf32>
    %67 = arith.mulf %62, %66 : vector<2x32xf32>
    %68 = arith.addf %51, %67 : vector<2x32xf32>
    %69 = math.tanh %68 : vector<2x32xf32>
    %cst_22 = arith.constant 1.000000e+00 : f32
    %70 = vector.broadcast %cst_22 : f32 to vector<2x32xf32>
    %71 = arith.subf %70, %63 : vector<2x32xf32>
    %72 = arith.mulf %71, %69 : vector<2x32xf32>
    %73 = arith.mulf %63, %48 : vector<2x32xf32>
    %74 = arith.addf %72, %73 : vector<2x32xf32>
    %75 = vector.extract_strided_slice %21 {offsets = [4, 0], sizes = [2, 128], strides = [1, 1]} : vector<16x128xf32> to vector<2x128xf32>
    %76 = vector.extract_strided_slice %75 {offsets = [0, 0], sizes = [2, 64], strides = [1, 1]} : vector<2x128xf32> to vector<2x64xf32>
    %77 = vector.extract_strided_slice %75 {offsets = [0, 64], sizes = [2, 32], strides = [1, 1]} : vector<2x128xf32> to vector<2x32xf32>
    %c1_23 = arith.constant 1 : index
    %c0_24 = arith.constant 0 : index
    %c0_25 = arith.constant 0 : index
    %78 = vector.load %arg3[%c1_23, %c0_24, %c0_25] : memref<7x32x128xf32, #tpu.memory_space<vmem>>, vector<1x32x128xf32>
    %79 = vector.shape_cast %78 : vector<1x32x128xf32> to vector<32x128xf32>
    %cst_26 = arith.constant dense<0.000000e+00> : vector<2x128xf32>
    %80 = tpu.matmul %74, %79, %cst_26 {dimension_numbers = #tpu.dot_dimension_numbers<[1], [0], [0], [1], [0, 0, 1, 1], [], []>} : vector<2x32xf32>, vector<32x128xf32>, vector<2x128xf32> -> vector<2x128xf32>
    %81 = vector.extract_strided_slice %80 {offsets = [0, 0], sizes = [2, 64], strides = [1, 1]} : vector<2x128xf32> to vector<2x64xf32>
    %82 = arith.addf %76, %81 : vector<2x64xf32>
    %83 = arith.negf %82 : vector<2x64xf32>
    %84 = math.exp %83 : vector<2x64xf32>
    %cst_27 = arith.constant 1.000000e+00 : f32
    %85 = vector.broadcast %cst_27 : f32 to vector<2x64xf32>
    %86 = arith.addf %85, %84 : vector<2x64xf32>
    %87 = arith.divf %85, %86 : vector<2x64xf32>
    %88 = vector.extract_strided_slice %87 {offsets = [0, 0], sizes = [2, 32], strides = [1, 1]} : vector<2x64xf32> to vector<2x32xf32>
    %89 = vector.extract_strided_slice %87 {offsets = [0, 32], sizes = [2, 32], strides = [1, 1]} : vector<2x64xf32> to vector<2x32xf32>
    %90 = vector.extract_strided_slice %80 {offsets = [0, 64], sizes = [2, 32], strides = [1, 1]} : vector<2x128xf32> to vector<2x32xf32>
    %91 = vector.broadcast %3 : vector<1x32xf32> to vector<2x32xf32>
    %92 = arith.addf %90, %91 : vector<2x32xf32>
    %93 = arith.mulf %88, %92 : vector<2x32xf32>
    %94 = arith.addf %77, %93 : vector<2x32xf32>
    %95 = math.tanh %94 : vector<2x32xf32>
    %cst_28 = arith.constant 1.000000e+00 : f32
    %96 = vector.broadcast %cst_28 : f32 to vector<2x32xf32>
    %97 = arith.subf %96, %89 : vector<2x32xf32>
    %98 = arith.mulf %97, %95 : vector<2x32xf32>
    %99 = arith.mulf %89, %74 : vector<2x32xf32>
    %100 = arith.addf %98, %99 : vector<2x32xf32>
    %101 = vector.extract_strided_slice %21 {offsets = [6, 0], sizes = [2, 128], strides = [1, 1]} : vector<16x128xf32> to vector<2x128xf32>
    %102 = vector.extract_strided_slice %101 {offsets = [0, 0], sizes = [2, 64], strides = [1, 1]} : vector<2x128xf32> to vector<2x64xf32>
    %103 = vector.extract_strided_slice %101 {offsets = [0, 64], sizes = [2, 32], strides = [1, 1]} : vector<2x128xf32> to vector<2x32xf32>
    %c1_29 = arith.constant 1 : index
    %c0_30 = arith.constant 0 : index
    %c0_31 = arith.constant 0 : index
    %104 = vector.load %arg3[%c1_29, %c0_30, %c0_31] : memref<7x32x128xf32, #tpu.memory_space<vmem>>, vector<1x32x128xf32>
    %105 = vector.shape_cast %104 : vector<1x32x128xf32> to vector<32x128xf32>
    %cst_32 = arith.constant dense<0.000000e+00> : vector<2x128xf32>
    %106 = tpu.matmul %100, %105, %cst_32 {dimension_numbers = #tpu.dot_dimension_numbers<[1], [0], [0], [1], [0, 0, 1, 1], [], []>} : vector<2x32xf32>, vector<32x128xf32>, vector<2x128xf32> -> vector<2x128xf32>
    %107 = vector.extract_strided_slice %106 {offsets = [0, 0], sizes = [2, 64], strides = [1, 1]} : vector<2x128xf32> to vector<2x64xf32>
    %108 = arith.addf %102, %107 : vector<2x64xf32>
    %109 = arith.negf %108 : vector<2x64xf32>
    %110 = math.exp %109 : vector<2x64xf32>
    %cst_33 = arith.constant 1.000000e+00 : f32
    %111 = vector.broadcast %cst_33 : f32 to vector<2x64xf32>
    %112 = arith.addf %111, %110 : vector<2x64xf32>
    %113 = arith.divf %111, %112 : vector<2x64xf32>
    %114 = vector.extract_strided_slice %113 {offsets = [0, 0], sizes = [2, 32], strides = [1, 1]} : vector<2x64xf32> to vector<2x32xf32>
    %115 = vector.extract_strided_slice %113 {offsets = [0, 32], sizes = [2, 32], strides = [1, 1]} : vector<2x64xf32> to vector<2x32xf32>
    %116 = vector.extract_strided_slice %106 {offsets = [0, 64], sizes = [2, 32], strides = [1, 1]} : vector<2x128xf32> to vector<2x32xf32>
    %117 = vector.broadcast %3 : vector<1x32xf32> to vector<2x32xf32>
    %118 = arith.addf %116, %117 : vector<2x32xf32>
    %119 = arith.mulf %114, %118 : vector<2x32xf32>
    %120 = arith.addf %103, %119 : vector<2x32xf32>
    %121 = math.tanh %120 : vector<2x32xf32>
    %cst_34 = arith.constant 1.000000e+00 : f32
    %122 = vector.broadcast %cst_34 : f32 to vector<2x32xf32>
    %123 = arith.subf %122, %115 : vector<2x32xf32>
    %124 = arith.mulf %123, %121 : vector<2x32xf32>
    %125 = arith.mulf %115, %100 : vector<2x32xf32>
    %126 = arith.addf %124, %125 : vector<2x32xf32>
    %127 = vector.extract_strided_slice %21 {offsets = [8, 0], sizes = [2, 128], strides = [1, 1]} : vector<16x128xf32> to vector<2x128xf32>
    %128 = vector.extract_strided_slice %127 {offsets = [0, 0], sizes = [2, 64], strides = [1, 1]} : vector<2x128xf32> to vector<2x64xf32>
    %129 = vector.extract_strided_slice %127 {offsets = [0, 64], sizes = [2, 32], strides = [1, 1]} : vector<2x128xf32> to vector<2x32xf32>
    %c1_35 = arith.constant 1 : index
    %c0_36 = arith.constant 0 : index
    %c0_37 = arith.constant 0 : index
    %130 = vector.load %arg3[%c1_35, %c0_36, %c0_37] : memref<7x32x128xf32, #tpu.memory_space<vmem>>, vector<1x32x128xf32>
    %131 = vector.shape_cast %130 : vector<1x32x128xf32> to vector<32x128xf32>
    %cst_38 = arith.constant dense<0.000000e+00> : vector<2x128xf32>
    %132 = tpu.matmul %126, %131, %cst_38 {dimension_numbers = #tpu.dot_dimension_numbers<[1], [0], [0], [1], [0, 0, 1, 1], [], []>} : vector<2x32xf32>, vector<32x128xf32>, vector<2x128xf32> -> vector<2x128xf32>
    %133 = vector.extract_strided_slice %132 {offsets = [0, 0], sizes = [2, 64], strides = [1, 1]} : vector<2x128xf32> to vector<2x64xf32>
    %134 = arith.addf %128, %133 : vector<2x64xf32>
    %135 = arith.negf %134 : vector<2x64xf32>
    %136 = math.exp %135 : vector<2x64xf32>
    %cst_39 = arith.constant 1.000000e+00 : f32
    %137 = vector.broadcast %cst_39 : f32 to vector<2x64xf32>
    %138 = arith.addf %137, %136 : vector<2x64xf32>
    %139 = arith.divf %137, %138 : vector<2x64xf32>
    %140 = vector.extract_strided_slice %139 {offsets = [0, 0], sizes = [2, 32], strides = [1, 1]} : vector<2x64xf32> to vector<2x32xf32>
    %141 = vector.extract_strided_slice %139 {offsets = [0, 32], sizes = [2, 32], strides = [1, 1]} : vector<2x64xf32> to vector<2x32xf32>
    %142 = vector.extract_strided_slice %132 {offsets = [0, 64], sizes = [2, 32], strides = [1, 1]} : vector<2x128xf32> to vector<2x32xf32>
    %143 = vector.broadcast %3 : vector<1x32xf32> to vector<2x32xf32>
    %144 = arith.addf %142, %143 : vector<2x32xf32>
    %145 = arith.mulf %140, %144 : vector<2x32xf32>
    %146 = arith.addf %129, %145 : vector<2x32xf32>
    %147 = math.tanh %146 : vector<2x32xf32>
    %cst_40 = arith.constant 1.000000e+00 : f32
    %148 = vector.broadcast %cst_40 : f32 to vector<2x32xf32>
    %149 = arith.subf %148, %141 : vector<2x32xf32>
    %150 = arith.mulf %149, %147 : vector<2x32xf32>
    %151 = arith.mulf %141, %126 : vector<2x32xf32>
    %152 = arith.addf %150, %151 : vector<2x32xf32>
    %153 = vector.extract_strided_slice %21 {offsets = [10, 0], sizes = [2, 128], strides = [1, 1]} : vector<16x128xf32> to vector<2x128xf32>
    %154 = vector.extract_strided_slice %153 {offsets = [0, 0], sizes = [2, 64], strides = [1, 1]} : vector<2x128xf32> to vector<2x64xf32>
    %155 = vector.extract_strided_slice %153 {offsets = [0, 64], sizes = [2, 32], strides = [1, 1]} : vector<2x128xf32> to vector<2x32xf32>
    %c1_41 = arith.constant 1 : index
    %c0_42 = arith.constant 0 : index
    %c0_43 = arith.constant 0 : index
    %156 = vector.load %arg3[%c1_41, %c0_42, %c0_43] : memref<7x32x128xf32, #tpu.memory_space<vmem>>, vector<1x32x128xf32>
    %157 = vector.shape_cast %156 : vector<1x32x128xf32> to vector<32x128xf32>
    %cst_44 = arith.constant dense<0.000000e+00> : vector<2x128xf32>
    %158 = tpu.matmul %152, %157, %cst_44 {dimension_numbers = #tpu.dot_dimension_numbers<[1], [0], [0], [1], [0, 0, 1, 1], [], []>} : vector<2x32xf32>, vector<32x128xf32>, vector<2x128xf32> -> vector<2x128xf32>
    %159 = vector.extract_strided_slice %158 {offsets = [0, 0], sizes = [2, 64], strides = [1, 1]} : vector<2x128xf32> to vector<2x64xf32>
    %160 = arith.addf %154, %159 : vector<2x64xf32>
    %161 = arith.negf %160 : vector<2x64xf32>
    %162 = math.exp %161 : vector<2x64xf32>
    %cst_45 = arith.constant 1.000000e+00 : f32
    %163 = vector.broadcast %cst_45 : f32 to vector<2x64xf32>
    %164 = arith.addf %163, %162 : vector<2x64xf32>
    %165 = arith.divf %163, %164 : vector<2x64xf32>
    %166 = vector.extract_strided_slice %165 {offsets = [0, 0], sizes = [2, 32], strides = [1, 1]} : vector<2x64xf32> to vector<2x32xf32>
    %167 = vector.extract_strided_slice %165 {offsets = [0, 32], sizes = [2, 32], strides = [1, 1]} : vector<2x64xf32> to vector<2x32xf32>
    %168 = vector.extract_strided_slice %158 {offsets = [0, 64], sizes = [2, 32], strides = [1, 1]} : vector<2x128xf32> to vector<2x32xf32>
    %169 = vector.broadcast %3 : vector<1x32xf32> to vector<2x32xf32>
    %170 = arith.addf %168, %169 : vector<2x32xf32>
    %171 = arith.mulf %166, %170 : vector<2x32xf32>
    %172 = arith.addf %155, %171 : vector<2x32xf32>
    %173 = math.tanh %172 : vector<2x32xf32>
    %cst_46 = arith.constant 1.000000e+00 : f32
    %174 = vector.broadcast %cst_46 : f32 to vector<2x32xf32>
    %175 = arith.subf %174, %167 : vector<2x32xf32>
    %176 = arith.mulf %175, %173 : vector<2x32xf32>
    %177 = arith.mulf %167, %152 : vector<2x32xf32>
    %178 = arith.addf %176, %177 : vector<2x32xf32>
    %179 = vector.extract_strided_slice %21 {offsets = [12, 0], sizes = [2, 128], strides = [1, 1]} : vector<16x128xf32> to vector<2x128xf32>
    %180 = vector.extract_strided_slice %179 {offsets = [0, 0], sizes = [2, 64], strides = [1, 1]} : vector<2x128xf32> to vector<2x64xf32>
    %181 = vector.extract_strided_slice %179 {offsets = [0, 64], sizes = [2, 32], strides = [1, 1]} : vector<2x128xf32> to vector<2x32xf32>
    %c1_47 = arith.constant 1 : index
    %c0_48 = arith.constant 0 : index
    %c0_49 = arith.constant 0 : index
    %182 = vector.load %arg3[%c1_47, %c0_48, %c0_49] : memref<7x32x128xf32, #tpu.memory_space<vmem>>, vector<1x32x128xf32>
    %183 = vector.shape_cast %182 : vector<1x32x128xf32> to vector<32x128xf32>
    %cst_50 = arith.constant dense<0.000000e+00> : vector<2x128xf32>
    %184 = tpu.matmul %178, %183, %cst_50 {dimension_numbers = #tpu.dot_dimension_numbers<[1], [0], [0], [1], [0, 0, 1, 1], [], []>} : vector<2x32xf32>, vector<32x128xf32>, vector<2x128xf32> -> vector<2x128xf32>
    %185 = vector.extract_strided_slice %184 {offsets = [0, 0], sizes = [2, 64], strides = [1, 1]} : vector<2x128xf32> to vector<2x64xf32>
    %186 = arith.addf %180, %185 : vector<2x64xf32>
    %187 = arith.negf %186 : vector<2x64xf32>
    %188 = math.exp %187 : vector<2x64xf32>
    %cst_51 = arith.constant 1.000000e+00 : f32
    %189 = vector.broadcast %cst_51 : f32 to vector<2x64xf32>
    %190 = arith.addf %189, %188 : vector<2x64xf32>
    %191 = arith.divf %189, %190 : vector<2x64xf32>
    %192 = vector.extract_strided_slice %191 {offsets = [0, 0], sizes = [2, 32], strides = [1, 1]} : vector<2x64xf32> to vector<2x32xf32>
    %193 = vector.extract_strided_slice %191 {offsets = [0, 32], sizes = [2, 32], strides = [1, 1]} : vector<2x64xf32> to vector<2x32xf32>
    %194 = vector.extract_strided_slice %184 {offsets = [0, 64], sizes = [2, 32], strides = [1, 1]} : vector<2x128xf32> to vector<2x32xf32>
    %195 = vector.broadcast %3 : vector<1x32xf32> to vector<2x32xf32>
    %196 = arith.addf %194, %195 : vector<2x32xf32>
    %197 = arith.mulf %192, %196 : vector<2x32xf32>
    %198 = arith.addf %181, %197 : vector<2x32xf32>
    %199 = math.tanh %198 : vector<2x32xf32>
    %cst_52 = arith.constant 1.000000e+00 : f32
    %200 = vector.broadcast %cst_52 : f32 to vector<2x32xf32>
    %201 = arith.subf %200, %193 : vector<2x32xf32>
    %202 = arith.mulf %201, %199 : vector<2x32xf32>
    %203 = arith.mulf %193, %178 : vector<2x32xf32>
    %204 = arith.addf %202, %203 : vector<2x32xf32>
    %205 = vector.extract_strided_slice %21 {offsets = [14, 0], sizes = [2, 128], strides = [1, 1]} : vector<16x128xf32> to vector<2x128xf32>
    %206 = vector.extract_strided_slice %205 {offsets = [0, 0], sizes = [2, 64], strides = [1, 1]} : vector<2x128xf32> to vector<2x64xf32>
    %207 = vector.extract_strided_slice %205 {offsets = [0, 64], sizes = [2, 32], strides = [1, 1]} : vector<2x128xf32> to vector<2x32xf32>
    %c1_53 = arith.constant 1 : index
    %c0_54 = arith.constant 0 : index
    %c0_55 = arith.constant 0 : index
    %208 = vector.load %arg3[%c1_53, %c0_54, %c0_55] : memref<7x32x128xf32, #tpu.memory_space<vmem>>, vector<1x32x128xf32>
    %209 = vector.shape_cast %208 : vector<1x32x128xf32> to vector<32x128xf32>
    %cst_56 = arith.constant dense<0.000000e+00> : vector<2x128xf32>
    %210 = tpu.matmul %204, %209, %cst_56 {dimension_numbers = #tpu.dot_dimension_numbers<[1], [0], [0], [1], [0, 0, 1, 1], [], []>} : vector<2x32xf32>, vector<32x128xf32>, vector<2x128xf32> -> vector<2x128xf32>
    %211 = vector.extract_strided_slice %210 {offsets = [0, 0], sizes = [2, 64], strides = [1, 1]} : vector<2x128xf32> to vector<2x64xf32>
    %212 = arith.addf %206, %211 : vector<2x64xf32>
    %213 = arith.negf %212 : vector<2x64xf32>
    %214 = math.exp %213 : vector<2x64xf32>
    %cst_57 = arith.constant 1.000000e+00 : f32
    %215 = vector.broadcast %cst_57 : f32 to vector<2x64xf32>
    %216 = arith.addf %215, %214 : vector<2x64xf32>
    %217 = arith.divf %215, %216 : vector<2x64xf32>
    %218 = vector.extract_strided_slice %217 {offsets = [0, 0], sizes = [2, 32], strides = [1, 1]} : vector<2x64xf32> to vector<2x32xf32>
    %219 = vector.extract_strided_slice %217 {offsets = [0, 32], sizes = [2, 32], strides = [1, 1]} : vector<2x64xf32> to vector<2x32xf32>
    %220 = vector.extract_strided_slice %210 {offsets = [0, 64], sizes = [2, 32], strides = [1, 1]} : vector<2x128xf32> to vector<2x32xf32>
    %221 = vector.broadcast %3 : vector<1x32xf32> to vector<2x32xf32>
    %222 = arith.addf %220, %221 : vector<2x32xf32>
    %223 = arith.mulf %218, %222 : vector<2x32xf32>
    %224 = arith.addf %207, %223 : vector<2x32xf32>
    %225 = math.tanh %224 : vector<2x32xf32>
    %cst_58 = arith.constant 1.000000e+00 : f32
    %226 = vector.broadcast %cst_58 : f32 to vector<2x32xf32>
    %227 = arith.subf %226, %219 : vector<2x32xf32>
    %228 = arith.mulf %227, %225 : vector<2x32xf32>
    %229 = arith.mulf %219, %204 : vector<2x32xf32>
    %230 = arith.addf %228, %229 : vector<2x32xf32>
    %231 = vector.extract_strided_slice %2 {offsets = [0, 0], sizes = [1, 64], strides = [1, 1]} : vector<1x128xf32> to vector<1x64xf32>
    %232 = vector.extract_strided_slice %2 {offsets = [0, 64], sizes = [1, 32], strides = [1, 1]} : vector<1x128xf32> to vector<1x32xf32>
    %c1_59 = arith.constant 1 : index
    %c0_60 = arith.constant 0 : index
    %c0_61 = arith.constant 0 : index
    %233 = vector.load %arg3[%c1_59, %c0_60, %c0_61] : memref<7x32x128xf32, #tpu.memory_space<vmem>>, vector<1x32x128xf32>
    %234 = vector.shape_cast %233 : vector<1x32x128xf32> to vector<32x128xf32>
    %cst_62 = arith.constant dense<0.000000e+00> : vector<2x128xf32>
    %235 = tpu.matmul %230, %234, %cst_62 {dimension_numbers = #tpu.dot_dimension_numbers<[1], [0], [0], [1], [0, 0, 1, 1], [], []>} : vector<2x32xf32>, vector<32x128xf32>, vector<2x128xf32> -> vector<2x128xf32>
    %236 = vector.extract_strided_slice %235 {offsets = [0, 0], sizes = [2, 64], strides = [1, 1]} : vector<2x128xf32> to vector<2x64xf32>
    %237 = vector.broadcast %231 : vector<1x64xf32> to vector<2x64xf32>
    %238 = arith.addf %237, %236 : vector<2x64xf32>
    %239 = arith.negf %238 : vector<2x64xf32>
    %240 = math.exp %239 : vector<2x64xf32>
    %cst_63 = arith.constant 1.000000e+00 : f32
    %241 = vector.broadcast %cst_63 : f32 to vector<2x64xf32>
    %242 = arith.addf %241, %240 : vector<2x64xf32>
    %243 = arith.divf %241, %242 : vector<2x64xf32>
    %244 = vector.extract_strided_slice %243 {offsets = [0, 0], sizes = [2, 32], strides = [1, 1]} : vector<2x64xf32> to vector<2x32xf32>
    %245 = vector.extract_strided_slice %243 {offsets = [0, 32], sizes = [2, 32], strides = [1, 1]} : vector<2x64xf32> to vector<2x32xf32>
    %246 = vector.extract_strided_slice %235 {offsets = [0, 64], sizes = [2, 32], strides = [1, 1]} : vector<2x128xf32> to vector<2x32xf32>
    %247 = vector.broadcast %3 : vector<1x32xf32> to vector<2x32xf32>
    %248 = arith.addf %246, %247 : vector<2x32xf32>
    %249 = arith.mulf %244, %248 : vector<2x32xf32>
    %250 = vector.broadcast %232 : vector<1x32xf32> to vector<2x32xf32>
    %251 = arith.addf %250, %249 : vector<2x32xf32>
    %252 = math.tanh %251 : vector<2x32xf32>
    %cst_64 = arith.constant 1.000000e+00 : f32
    %253 = vector.broadcast %cst_64 : f32 to vector<2x32xf32>
    %254 = arith.subf %253, %245 : vector<2x32xf32>
    %255 = arith.mulf %254, %252 : vector<2x32xf32>
    %256 = arith.mulf %245, %230 : vector<2x32xf32>
    %257 = arith.addf %255, %256 : vector<2x32xf32>
    %258 = vector.extract_strided_slice %2 {offsets = [0, 0], sizes = [1, 64], strides = [1, 1]} : vector<1x128xf32> to vector<1x64xf32>
    %259 = vector.extract_strided_slice %2 {offsets = [0, 64], sizes = [1, 32], strides = [1, 1]} : vector<1x128xf32> to vector<1x32xf32>
    %c1_65 = arith.constant 1 : index
    %c0_66 = arith.constant 0 : index
    %c0_67 = arith.constant 0 : index
    %260 = vector.load %arg3[%c1_65, %c0_66, %c0_67] : memref<7x32x128xf32, #tpu.memory_space<vmem>>, vector<1x32x128xf32>
    %261 = vector.shape_cast %260 : vector<1x32x128xf32> to vector<32x128xf32>
    %cst_68 = arith.constant dense<0.000000e+00> : vector<2x128xf32>
    %262 = tpu.matmul %257, %261, %cst_68 {dimension_numbers = #tpu.dot_dimension_numbers<[1], [0], [0], [1], [0, 0, 1, 1], [], []>} : vector<2x32xf32>, vector<32x128xf32>, vector<2x128xf32> -> vector<2x128xf32>
    %263 = vector.extract_strided_slice %262 {offsets = [0, 0], sizes = [2, 64], strides = [1, 1]} : vector<2x128xf32> to vector<2x64xf32>
    %264 = vector.broadcast %258 : vector<1x64xf32> to vector<2x64xf32>
    %265 = arith.addf %264, %263 : vector<2x64xf32>
    %266 = arith.negf %265 : vector<2x64xf32>
    %267 = math.exp %266 : vector<2x64xf32>
    %cst_69 = arith.constant 1.000000e+00 : f32
    %268 = vector.broadcast %cst_69 : f32 to vector<2x64xf32>
    %269 = arith.addf %268, %267 : vector<2x64xf32>
    %270 = arith.divf %268, %269 : vector<2x64xf32>
    %271 = vector.extract_strided_slice %270 {offsets = [0, 0], sizes = [2, 32], strides = [1, 1]} : vector<2x64xf32> to vector<2x32xf32>
    %272 = vector.extract_strided_slice %270 {offsets = [0, 32], sizes = [2, 32], strides = [1, 1]} : vector<2x64xf32> to vector<2x32xf32>
    %273 = vector.extract_strided_slice %262 {offsets = [0, 64], sizes = [2, 32], strides = [1, 1]} : vector<2x128xf32> to vector<2x32xf32>
    %274 = vector.broadcast %3 : vector<1x32xf32> to vector<2x32xf32>
    %275 = arith.addf %273, %274 : vector<2x32xf32>
    %276 = arith.mulf %271, %275 : vector<2x32xf32>
    %277 = vector.broadcast %259 : vector<1x32xf32> to vector<2x32xf32>
    %278 = arith.addf %277, %276 : vector<2x32xf32>
    %279 = math.tanh %278 : vector<2x32xf32>
    %cst_70 = arith.constant 1.000000e+00 : f32
    %280 = vector.broadcast %cst_70 : f32 to vector<2x32xf32>
    %281 = arith.subf %280, %272 : vector<2x32xf32>
    %282 = arith.mulf %281, %279 : vector<2x32xf32>
    %283 = arith.mulf %272, %257 : vector<2x32xf32>
    %284 = arith.addf %282, %283 : vector<2x32xf32>
    %285 = vector.extract_strided_slice %2 {offsets = [0, 0], sizes = [1, 64], strides = [1, 1]} : vector<1x128xf32> to vector<1x64xf32>
    %286 = vector.extract_strided_slice %2 {offsets = [0, 64], sizes = [1, 32], strides = [1, 1]} : vector<1x128xf32> to vector<1x32xf32>
    %c1_71 = arith.constant 1 : index
    %c0_72 = arith.constant 0 : index
    %c0_73 = arith.constant 0 : index
    %287 = vector.load %arg3[%c1_71, %c0_72, %c0_73] : memref<7x32x128xf32, #tpu.memory_space<vmem>>, vector<1x32x128xf32>
    %288 = vector.shape_cast %287 : vector<1x32x128xf32> to vector<32x128xf32>
    %cst_74 = arith.constant dense<0.000000e+00> : vector<2x128xf32>
    %289 = tpu.matmul %284, %288, %cst_74 {dimension_numbers = #tpu.dot_dimension_numbers<[1], [0], [0], [1], [0, 0, 1, 1], [], []>} : vector<2x32xf32>, vector<32x128xf32>, vector<2x128xf32> -> vector<2x128xf32>
    %290 = vector.extract_strided_slice %289 {offsets = [0, 0], sizes = [2, 64], strides = [1, 1]} : vector<2x128xf32> to vector<2x64xf32>
    %291 = vector.broadcast %285 : vector<1x64xf32> to vector<2x64xf32>
    %292 = arith.addf %291, %290 : vector<2x64xf32>
    %293 = arith.negf %292 : vector<2x64xf32>
    %294 = math.exp %293 : vector<2x64xf32>
    %cst_75 = arith.constant 1.000000e+00 : f32
    %295 = vector.broadcast %cst_75 : f32 to vector<2x64xf32>
    %296 = arith.addf %295, %294 : vector<2x64xf32>
    %297 = arith.divf %295, %296 : vector<2x64xf32>
    %298 = vector.extract_strided_slice %297 {offsets = [0, 0], sizes = [2, 32], strides = [1, 1]} : vector<2x64xf32> to vector<2x32xf32>
    %299 = vector.extract_strided_slice %297 {offsets = [0, 32], sizes = [2, 32], strides = [1, 1]} : vector<2x64xf32> to vector<2x32xf32>
    %300 = vector.extract_strided_slice %289 {offsets = [0, 64], sizes = [2, 32], strides = [1, 1]} : vector<2x128xf32> to vector<2x32xf32>
    %301 = vector.broadcast %3 : vector<1x32xf32> to vector<2x32xf32>
    %302 = arith.addf %300, %301 : vector<2x32xf32>
    %303 = arith.mulf %298, %302 : vector<2x32xf32>
    %304 = vector.broadcast %286 : vector<1x32xf32> to vector<2x32xf32>
    %305 = arith.addf %304, %303 : vector<2x32xf32>
    %306 = math.tanh %305 : vector<2x32xf32>
    %cst_76 = arith.constant 1.000000e+00 : f32
    %307 = vector.broadcast %cst_76 : f32 to vector<2x32xf32>
    %308 = arith.subf %307, %299 : vector<2x32xf32>
    %309 = arith.mulf %308, %306 : vector<2x32xf32>
    %310 = arith.mulf %299, %284 : vector<2x32xf32>
    %311 = arith.addf %309, %310 : vector<2x32xf32>
    %312 = vector.extract_strided_slice %2 {offsets = [0, 0], sizes = [1, 64], strides = [1, 1]} : vector<1x128xf32> to vector<1x64xf32>
    %313 = vector.extract_strided_slice %2 {offsets = [0, 64], sizes = [1, 32], strides = [1, 1]} : vector<1x128xf32> to vector<1x32xf32>
    %c1_77 = arith.constant 1 : index
    %c0_78 = arith.constant 0 : index
    %c0_79 = arith.constant 0 : index
    %314 = vector.load %arg3[%c1_77, %c0_78, %c0_79] : memref<7x32x128xf32, #tpu.memory_space<vmem>>, vector<1x32x128xf32>
    %315 = vector.shape_cast %314 : vector<1x32x128xf32> to vector<32x128xf32>
    %cst_80 = arith.constant dense<0.000000e+00> : vector<2x128xf32>
    %316 = tpu.matmul %311, %315, %cst_80 {dimension_numbers = #tpu.dot_dimension_numbers<[1], [0], [0], [1], [0, 0, 1, 1], [], []>} : vector<2x32xf32>, vector<32x128xf32>, vector<2x128xf32> -> vector<2x128xf32>
    %317 = vector.extract_strided_slice %316 {offsets = [0, 0], sizes = [2, 64], strides = [1, 1]} : vector<2x128xf32> to vector<2x64xf32>
    %318 = vector.broadcast %312 : vector<1x64xf32> to vector<2x64xf32>
    %319 = arith.addf %318, %317 : vector<2x64xf32>
    %320 = arith.negf %319 : vector<2x64xf32>
    %321 = math.exp %320 : vector<2x64xf32>
    %cst_81 = arith.constant 1.000000e+00 : f32
    %322 = vector.broadcast %cst_81 : f32 to vector<2x64xf32>
    %323 = arith.addf %322, %321 : vector<2x64xf32>
    %324 = arith.divf %322, %323 : vector<2x64xf32>
    %325 = vector.extract_strided_slice %324 {offsets = [0, 0], sizes = [2, 32], strides = [1, 1]} : vector<2x64xf32> to vector<2x32xf32>
    %326 = vector.extract_strided_slice %324 {offsets = [0, 32], sizes = [2, 32], strides = [1, 1]} : vector<2x64xf32> to vector<2x32xf32>
    %327 = vector.extract_strided_slice %316 {offsets = [0, 64], sizes = [2, 32], strides = [1, 1]} : vector<2x128xf32> to vector<2x32xf32>
    %328 = vector.broadcast %3 : vector<1x32xf32> to vector<2x32xf32>
    %329 = arith.addf %327, %328 : vector<2x32xf32>
    %330 = arith.mulf %325, %329 : vector<2x32xf32>
    %331 = vector.broadcast %313 : vector<1x32xf32> to vector<2x32xf32>
    %332 = arith.addf %331, %330 : vector<2x32xf32>
    %333 = math.tanh %332 : vector<2x32xf32>
    %cst_82 = arith.constant 1.000000e+00 : f32
    %334 = vector.broadcast %cst_82 : f32 to vector<2x32xf32>
    %335 = arith.subf %334, %326 : vector<2x32xf32>
    %336 = arith.mulf %335, %333 : vector<2x32xf32>
    %337 = arith.mulf %326, %311 : vector<2x32xf32>
    %338 = arith.addf %336, %337 : vector<2x32xf32>
    %339 = tpu.concatenate %48, %74, %100, %126, %152, %178, %204, %230 in 0 : vector<2x32xf32>, vector<2x32xf32>, vector<2x32xf32>, vector<2x32xf32>, vector<2x32xf32>, vector<2x32xf32>, vector<2x32xf32>, vector<2x32xf32> -> vector<16x32xf32>
    %c3 = arith.constant 3 : index
    %c0_83 = arith.constant 0 : index
    %c0_84 = arith.constant 0 : index
    %340 = vector.load %arg3[%c3, %c0_83, %c0_84] : memref<7x32x128xf32, #tpu.memory_space<vmem>>, vector<1x32x128xf32>
    %341 = vector.shape_cast %340 : vector<1x32x128xf32> to vector<32x128xf32>
    %cst_85 = arith.constant dense<0.000000e+00> : vector<16x128xf32>
    %342 = tpu.matmul %339, %341, %cst_85 {dimension_numbers = #tpu.dot_dimension_numbers<[1], [0], [0], [1], [0, 0, 1, 1], [], []>} : vector<16x32xf32>, vector<32x128xf32>, vector<16x128xf32> -> vector<16x128xf32>
    %343 = vector.broadcast %4 : vector<1x128xf32> to vector<16x128xf32>
    %344 = arith.addf %342, %343 : vector<16x128xf32>
    %cst_86 = arith.constant 0.000000e+00 : f32
    %345 = vector.broadcast %cst_86 : f32 to vector<2x32xf32>
    %346 = vector.extract_strided_slice %344 {offsets = [0, 0], sizes = [2, 128], strides = [1, 1]} : vector<16x128xf32> to vector<2x128xf32>
    %347 = vector.extract_strided_slice %346 {offsets = [0, 0], sizes = [2, 64], strides = [1, 1]} : vector<2x128xf32> to vector<2x64xf32>
    %348 = vector.extract_strided_slice %346 {offsets = [0, 64], sizes = [2, 32], strides = [1, 1]} : vector<2x128xf32> to vector<2x32xf32>
    %c2 = arith.constant 2 : index
    %c0_87 = arith.constant 0 : index
    %c0_88 = arith.constant 0 : index
    %349 = vector.load %arg3[%c2, %c0_87, %c0_88] : memref<7x32x128xf32, #tpu.memory_space<vmem>>, vector<1x32x128xf32>
    %350 = vector.shape_cast %349 : vector<1x32x128xf32> to vector<32x128xf32>
    %cst_89 = arith.constant dense<0.000000e+00> : vector<2x128xf32>
    %351 = tpu.matmul %345, %350, %cst_89 {dimension_numbers = #tpu.dot_dimension_numbers<[1], [0], [0], [1], [0, 0, 1, 1], [], []>} : vector<2x32xf32>, vector<32x128xf32>, vector<2x128xf32> -> vector<2x128xf32>
    %352 = vector.extract_strided_slice %351 {offsets = [0, 0], sizes = [2, 64], strides = [1, 1]} : vector<2x128xf32> to vector<2x64xf32>
    %353 = arith.addf %347, %352 : vector<2x64xf32>
    %354 = arith.negf %353 : vector<2x64xf32>
    %355 = math.exp %354 : vector<2x64xf32>
    %cst_90 = arith.constant 1.000000e+00 : f32
    %356 = vector.broadcast %cst_90 : f32 to vector<2x64xf32>
    %357 = arith.addf %356, %355 : vector<2x64xf32>
    %358 = arith.divf %356, %357 : vector<2x64xf32>
    %359 = vector.extract_strided_slice %358 {offsets = [0, 0], sizes = [2, 32], strides = [1, 1]} : vector<2x64xf32> to vector<2x32xf32>
    %360 = vector.extract_strided_slice %358 {offsets = [0, 32], sizes = [2, 32], strides = [1, 1]} : vector<2x64xf32> to vector<2x32xf32>
    %361 = vector.extract_strided_slice %351 {offsets = [0, 64], sizes = [2, 32], strides = [1, 1]} : vector<2x128xf32> to vector<2x32xf32>
    %362 = vector.broadcast %5 : vector<1x32xf32> to vector<2x32xf32>
    %363 = arith.addf %361, %362 : vector<2x32xf32>
    %364 = arith.mulf %359, %363 : vector<2x32xf32>
    %365 = arith.addf %348, %364 : vector<2x32xf32>
    %366 = math.tanh %365 : vector<2x32xf32>
    %cst_91 = arith.constant 1.000000e+00 : f32
    %367 = vector.broadcast %cst_91 : f32 to vector<2x32xf32>
    %368 = arith.subf %367, %360 : vector<2x32xf32>
    %369 = arith.mulf %368, %366 : vector<2x32xf32>
    %370 = arith.mulf %360, %345 : vector<2x32xf32>
    %371 = arith.addf %369, %370 : vector<2x32xf32>
    %372 = vector.extract_strided_slice %344 {offsets = [2, 0], sizes = [2, 128], strides = [1, 1]} : vector<16x128xf32> to vector<2x128xf32>
    %373 = vector.extract_strided_slice %372 {offsets = [0, 0], sizes = [2, 64], strides = [1, 1]} : vector<2x128xf32> to vector<2x64xf32>
    %374 = vector.extract_strided_slice %372 {offsets = [0, 64], sizes = [2, 32], strides = [1, 1]} : vector<2x128xf32> to vector<2x32xf32>
    %c2_92 = arith.constant 2 : index
    %c0_93 = arith.constant 0 : index
    %c0_94 = arith.constant 0 : index
    %375 = vector.load %arg3[%c2_92, %c0_93, %c0_94] : memref<7x32x128xf32, #tpu.memory_space<vmem>>, vector<1x32x128xf32>
    %376 = vector.shape_cast %375 : vector<1x32x128xf32> to vector<32x128xf32>
    %cst_95 = arith.constant dense<0.000000e+00> : vector<2x128xf32>
    %377 = tpu.matmul %371, %376, %cst_95 {dimension_numbers = #tpu.dot_dimension_numbers<[1], [0], [0], [1], [0, 0, 1, 1], [], []>} : vector<2x32xf32>, vector<32x128xf32>, vector<2x128xf32> -> vector<2x128xf32>
    %378 = vector.extract_strided_slice %377 {offsets = [0, 0], sizes = [2, 64], strides = [1, 1]} : vector<2x128xf32> to vector<2x64xf32>
    %379 = arith.addf %373, %378 : vector<2x64xf32>
    %380 = arith.negf %379 : vector<2x64xf32>
    %381 = math.exp %380 : vector<2x64xf32>
    %cst_96 = arith.constant 1.000000e+00 : f32
    %382 = vector.broadcast %cst_96 : f32 to vector<2x64xf32>
    %383 = arith.addf %382, %381 : vector<2x64xf32>
    %384 = arith.divf %382, %383 : vector<2x64xf32>
    %385 = vector.extract_strided_slice %384 {offsets = [0, 0], sizes = [2, 32], strides = [1, 1]} : vector<2x64xf32> to vector<2x32xf32>
    %386 = vector.extract_strided_slice %384 {offsets = [0, 32], sizes = [2, 32], strides = [1, 1]} : vector<2x64xf32> to vector<2x32xf32>
    %387 = vector.extract_strided_slice %377 {offsets = [0, 64], sizes = [2, 32], strides = [1, 1]} : vector<2x128xf32> to vector<2x32xf32>
    %388 = vector.broadcast %5 : vector<1x32xf32> to vector<2x32xf32>
    %389 = arith.addf %387, %388 : vector<2x32xf32>
    %390 = arith.mulf %385, %389 : vector<2x32xf32>
    %391 = arith.addf %374, %390 : vector<2x32xf32>
    %392 = math.tanh %391 : vector<2x32xf32>
    %cst_97 = arith.constant 1.000000e+00 : f32
    %393 = vector.broadcast %cst_97 : f32 to vector<2x32xf32>
    %394 = arith.subf %393, %386 : vector<2x32xf32>
    %395 = arith.mulf %394, %392 : vector<2x32xf32>
    %396 = arith.mulf %386, %371 : vector<2x32xf32>
    %397 = arith.addf %395, %396 : vector<2x32xf32>
    %398 = vector.extract_strided_slice %344 {offsets = [4, 0], sizes = [2, 128], strides = [1, 1]} : vector<16x128xf32> to vector<2x128xf32>
    %399 = vector.extract_strided_slice %398 {offsets = [0, 0], sizes = [2, 64], strides = [1, 1]} : vector<2x128xf32> to vector<2x64xf32>
    %400 = vector.extract_strided_slice %398 {offsets = [0, 64], sizes = [2, 32], strides = [1, 1]} : vector<2x128xf32> to vector<2x32xf32>
    %c2_98 = arith.constant 2 : index
    %c0_99 = arith.constant 0 : index
    %c0_100 = arith.constant 0 : index
    %401 = vector.load %arg3[%c2_98, %c0_99, %c0_100] : memref<7x32x128xf32, #tpu.memory_space<vmem>>, vector<1x32x128xf32>
    %402 = vector.shape_cast %401 : vector<1x32x128xf32> to vector<32x128xf32>
    %cst_101 = arith.constant dense<0.000000e+00> : vector<2x128xf32>
    %403 = tpu.matmul %397, %402, %cst_101 {dimension_numbers = #tpu.dot_dimension_numbers<[1], [0], [0], [1], [0, 0, 1, 1], [], []>} : vector<2x32xf32>, vector<32x128xf32>, vector<2x128xf32> -> vector<2x128xf32>
    %404 = vector.extract_strided_slice %403 {offsets = [0, 0], sizes = [2, 64], strides = [1, 1]} : vector<2x128xf32> to vector<2x64xf32>
    %405 = arith.addf %399, %404 : vector<2x64xf32>
    %406 = arith.negf %405 : vector<2x64xf32>
    %407 = math.exp %406 : vector<2x64xf32>
    %cst_102 = arith.constant 1.000000e+00 : f32
    %408 = vector.broadcast %cst_102 : f32 to vector<2x64xf32>
    %409 = arith.addf %408, %407 : vector<2x64xf32>
    %410 = arith.divf %408, %409 : vector<2x64xf32>
    %411 = vector.extract_strided_slice %410 {offsets = [0, 0], sizes = [2, 32], strides = [1, 1]} : vector<2x64xf32> to vector<2x32xf32>
    %412 = vector.extract_strided_slice %410 {offsets = [0, 32], sizes = [2, 32], strides = [1, 1]} : vector<2x64xf32> to vector<2x32xf32>
    %413 = vector.extract_strided_slice %403 {offsets = [0, 64], sizes = [2, 32], strides = [1, 1]} : vector<2x128xf32> to vector<2x32xf32>
    %414 = vector.broadcast %5 : vector<1x32xf32> to vector<2x32xf32>
    %415 = arith.addf %413, %414 : vector<2x32xf32>
    %416 = arith.mulf %411, %415 : vector<2x32xf32>
    %417 = arith.addf %400, %416 : vector<2x32xf32>
    %418 = math.tanh %417 : vector<2x32xf32>
    %cst_103 = arith.constant 1.000000e+00 : f32
    %419 = vector.broadcast %cst_103 : f32 to vector<2x32xf32>
    %420 = arith.subf %419, %412 : vector<2x32xf32>
    %421 = arith.mulf %420, %418 : vector<2x32xf32>
    %422 = arith.mulf %412, %397 : vector<2x32xf32>
    %423 = arith.addf %421, %422 : vector<2x32xf32>
    %424 = vector.extract_strided_slice %344 {offsets = [6, 0], sizes = [2, 128], strides = [1, 1]} : vector<16x128xf32> to vector<2x128xf32>
    %425 = vector.extract_strided_slice %424 {offsets = [0, 0], sizes = [2, 64], strides = [1, 1]} : vector<2x128xf32> to vector<2x64xf32>
    %426 = vector.extract_strided_slice %424 {offsets = [0, 64], sizes = [2, 32], strides = [1, 1]} : vector<2x128xf32> to vector<2x32xf32>
    %c2_104 = arith.constant 2 : index
    %c0_105 = arith.constant 0 : index
    %c0_106 = arith.constant 0 : index
    %427 = vector.load %arg3[%c2_104, %c0_105, %c0_106] : memref<7x32x128xf32, #tpu.memory_space<vmem>>, vector<1x32x128xf32>
    %428 = vector.shape_cast %427 : vector<1x32x128xf32> to vector<32x128xf32>
    %cst_107 = arith.constant dense<0.000000e+00> : vector<2x128xf32>
    %429 = tpu.matmul %423, %428, %cst_107 {dimension_numbers = #tpu.dot_dimension_numbers<[1], [0], [0], [1], [0, 0, 1, 1], [], []>} : vector<2x32xf32>, vector<32x128xf32>, vector<2x128xf32> -> vector<2x128xf32>
    %430 = vector.extract_strided_slice %429 {offsets = [0, 0], sizes = [2, 64], strides = [1, 1]} : vector<2x128xf32> to vector<2x64xf32>
    %431 = arith.addf %425, %430 : vector<2x64xf32>
    %432 = arith.negf %431 : vector<2x64xf32>
    %433 = math.exp %432 : vector<2x64xf32>
    %cst_108 = arith.constant 1.000000e+00 : f32
    %434 = vector.broadcast %cst_108 : f32 to vector<2x64xf32>
    %435 = arith.addf %434, %433 : vector<2x64xf32>
    %436 = arith.divf %434, %435 : vector<2x64xf32>
    %437 = vector.extract_strided_slice %436 {offsets = [0, 0], sizes = [2, 32], strides = [1, 1]} : vector<2x64xf32> to vector<2x32xf32>
    %438 = vector.extract_strided_slice %436 {offsets = [0, 32], sizes = [2, 32], strides = [1, 1]} : vector<2x64xf32> to vector<2x32xf32>
    %439 = vector.extract_strided_slice %429 {offsets = [0, 64], sizes = [2, 32], strides = [1, 1]} : vector<2x128xf32> to vector<2x32xf32>
    %440 = vector.broadcast %5 : vector<1x32xf32> to vector<2x32xf32>
    %441 = arith.addf %439, %440 : vector<2x32xf32>
    %442 = arith.mulf %437, %441 : vector<2x32xf32>
    %443 = arith.addf %426, %442 : vector<2x32xf32>
    %444 = math.tanh %443 : vector<2x32xf32>
    %cst_109 = arith.constant 1.000000e+00 : f32
    %445 = vector.broadcast %cst_109 : f32 to vector<2x32xf32>
    %446 = arith.subf %445, %438 : vector<2x32xf32>
    %447 = arith.mulf %446, %444 : vector<2x32xf32>
    %448 = arith.mulf %438, %423 : vector<2x32xf32>
    %449 = arith.addf %447, %448 : vector<2x32xf32>
    %450 = vector.extract_strided_slice %344 {offsets = [8, 0], sizes = [2, 128], strides = [1, 1]} : vector<16x128xf32> to vector<2x128xf32>
    %451 = vector.extract_strided_slice %450 {offsets = [0, 0], sizes = [2, 64], strides = [1, 1]} : vector<2x128xf32> to vector<2x64xf32>
    %452 = vector.extract_strided_slice %450 {offsets = [0, 64], sizes = [2, 32], strides = [1, 1]} : vector<2x128xf32> to vector<2x32xf32>
    %c2_110 = arith.constant 2 : index
    %c0_111 = arith.constant 0 : index
    %c0_112 = arith.constant 0 : index
    %453 = vector.load %arg3[%c2_110, %c0_111, %c0_112] : memref<7x32x128xf32, #tpu.memory_space<vmem>>, vector<1x32x128xf32>
    %454 = vector.shape_cast %453 : vector<1x32x128xf32> to vector<32x128xf32>
    %cst_113 = arith.constant dense<0.000000e+00> : vector<2x128xf32>
    %455 = tpu.matmul %449, %454, %cst_113 {dimension_numbers = #tpu.dot_dimension_numbers<[1], [0], [0], [1], [0, 0, 1, 1], [], []>} : vector<2x32xf32>, vector<32x128xf32>, vector<2x128xf32> -> vector<2x128xf32>
    %456 = vector.extract_strided_slice %455 {offsets = [0, 0], sizes = [2, 64], strides = [1, 1]} : vector<2x128xf32> to vector<2x64xf32>
    %457 = arith.addf %451, %456 : vector<2x64xf32>
    %458 = arith.negf %457 : vector<2x64xf32>
    %459 = math.exp %458 : vector<2x64xf32>
    %cst_114 = arith.constant 1.000000e+00 : f32
    %460 = vector.broadcast %cst_114 : f32 to vector<2x64xf32>
    %461 = arith.addf %460, %459 : vector<2x64xf32>
    %462 = arith.divf %460, %461 : vector<2x64xf32>
    %463 = vector.extract_strided_slice %462 {offsets = [0, 0], sizes = [2, 32], strides = [1, 1]} : vector<2x64xf32> to vector<2x32xf32>
    %464 = vector.extract_strided_slice %462 {offsets = [0, 32], sizes = [2, 32], strides = [1, 1]} : vector<2x64xf32> to vector<2x32xf32>
    %465 = vector.extract_strided_slice %455 {offsets = [0, 64], sizes = [2, 32], strides = [1, 1]} : vector<2x128xf32> to vector<2x32xf32>
    %466 = vector.broadcast %5 : vector<1x32xf32> to vector<2x32xf32>
    %467 = arith.addf %465, %466 : vector<2x32xf32>
    %468 = arith.mulf %463, %467 : vector<2x32xf32>
    %469 = arith.addf %452, %468 : vector<2x32xf32>
    %470 = math.tanh %469 : vector<2x32xf32>
    %cst_115 = arith.constant 1.000000e+00 : f32
    %471 = vector.broadcast %cst_115 : f32 to vector<2x32xf32>
    %472 = arith.subf %471, %464 : vector<2x32xf32>
    %473 = arith.mulf %472, %470 : vector<2x32xf32>
    %474 = arith.mulf %464, %449 : vector<2x32xf32>
    %475 = arith.addf %473, %474 : vector<2x32xf32>
    %476 = vector.extract_strided_slice %344 {offsets = [10, 0], sizes = [2, 128], strides = [1, 1]} : vector<16x128xf32> to vector<2x128xf32>
    %477 = vector.extract_strided_slice %476 {offsets = [0, 0], sizes = [2, 64], strides = [1, 1]} : vector<2x128xf32> to vector<2x64xf32>
    %478 = vector.extract_strided_slice %476 {offsets = [0, 64], sizes = [2, 32], strides = [1, 1]} : vector<2x128xf32> to vector<2x32xf32>
    %c2_116 = arith.constant 2 : index
    %c0_117 = arith.constant 0 : index
    %c0_118 = arith.constant 0 : index
    %479 = vector.load %arg3[%c2_116, %c0_117, %c0_118] : memref<7x32x128xf32, #tpu.memory_space<vmem>>, vector<1x32x128xf32>
    %480 = vector.shape_cast %479 : vector<1x32x128xf32> to vector<32x128xf32>
    %cst_119 = arith.constant dense<0.000000e+00> : vector<2x128xf32>
    %481 = tpu.matmul %475, %480, %cst_119 {dimension_numbers = #tpu.dot_dimension_numbers<[1], [0], [0], [1], [0, 0, 1, 1], [], []>} : vector<2x32xf32>, vector<32x128xf32>, vector<2x128xf32> -> vector<2x128xf32>
    %482 = vector.extract_strided_slice %481 {offsets = [0, 0], sizes = [2, 64], strides = [1, 1]} : vector<2x128xf32> to vector<2x64xf32>
    %483 = arith.addf %477, %482 : vector<2x64xf32>
    %484 = arith.negf %483 : vector<2x64xf32>
    %485 = math.exp %484 : vector<2x64xf32>
    %cst_120 = arith.constant 1.000000e+00 : f32
    %486 = vector.broadcast %cst_120 : f32 to vector<2x64xf32>
    %487 = arith.addf %486, %485 : vector<2x64xf32>
    %488 = arith.divf %486, %487 : vector<2x64xf32>
    %489 = vector.extract_strided_slice %488 {offsets = [0, 0], sizes = [2, 32], strides = [1, 1]} : vector<2x64xf32> to vector<2x32xf32>
    %490 = vector.extract_strided_slice %488 {offsets = [0, 32], sizes = [2, 32], strides = [1, 1]} : vector<2x64xf32> to vector<2x32xf32>
    %491 = vector.extract_strided_slice %481 {offsets = [0, 64], sizes = [2, 32], strides = [1, 1]} : vector<2x128xf32> to vector<2x32xf32>
    %492 = vector.broadcast %5 : vector<1x32xf32> to vector<2x32xf32>
    %493 = arith.addf %491, %492 : vector<2x32xf32>
    %494 = arith.mulf %489, %493 : vector<2x32xf32>
    %495 = arith.addf %478, %494 : vector<2x32xf32>
    %496 = math.tanh %495 : vector<2x32xf32>
    %cst_121 = arith.constant 1.000000e+00 : f32
    %497 = vector.broadcast %cst_121 : f32 to vector<2x32xf32>
    %498 = arith.subf %497, %490 : vector<2x32xf32>
    %499 = arith.mulf %498, %496 : vector<2x32xf32>
    %500 = arith.mulf %490, %475 : vector<2x32xf32>
    %501 = arith.addf %499, %500 : vector<2x32xf32>
    %502 = vector.extract_strided_slice %344 {offsets = [12, 0], sizes = [2, 128], strides = [1, 1]} : vector<16x128xf32> to vector<2x128xf32>
    %503 = vector.extract_strided_slice %502 {offsets = [0, 0], sizes = [2, 64], strides = [1, 1]} : vector<2x128xf32> to vector<2x64xf32>
    %504 = vector.extract_strided_slice %502 {offsets = [0, 64], sizes = [2, 32], strides = [1, 1]} : vector<2x128xf32> to vector<2x32xf32>
    %c2_122 = arith.constant 2 : index
    %c0_123 = arith.constant 0 : index
    %c0_124 = arith.constant 0 : index
    %505 = vector.load %arg3[%c2_122, %c0_123, %c0_124] : memref<7x32x128xf32, #tpu.memory_space<vmem>>, vector<1x32x128xf32>
    %506 = vector.shape_cast %505 : vector<1x32x128xf32> to vector<32x128xf32>
    %cst_125 = arith.constant dense<0.000000e+00> : vector<2x128xf32>
    %507 = tpu.matmul %501, %506, %cst_125 {dimension_numbers = #tpu.dot_dimension_numbers<[1], [0], [0], [1], [0, 0, 1, 1], [], []>} : vector<2x32xf32>, vector<32x128xf32>, vector<2x128xf32> -> vector<2x128xf32>
    %508 = vector.extract_strided_slice %507 {offsets = [0, 0], sizes = [2, 64], strides = [1, 1]} : vector<2x128xf32> to vector<2x64xf32>
    %509 = arith.addf %503, %508 : vector<2x64xf32>
    %510 = arith.negf %509 : vector<2x64xf32>
    %511 = math.exp %510 : vector<2x64xf32>
    %cst_126 = arith.constant 1.000000e+00 : f32
    %512 = vector.broadcast %cst_126 : f32 to vector<2x64xf32>
    %513 = arith.addf %512, %511 : vector<2x64xf32>
    %514 = arith.divf %512, %513 : vector<2x64xf32>
    %515 = vector.extract_strided_slice %514 {offsets = [0, 0], sizes = [2, 32], strides = [1, 1]} : vector<2x64xf32> to vector<2x32xf32>
    %516 = vector.extract_strided_slice %514 {offsets = [0, 32], sizes = [2, 32], strides = [1, 1]} : vector<2x64xf32> to vector<2x32xf32>
    %517 = vector.extract_strided_slice %507 {offsets = [0, 64], sizes = [2, 32], strides = [1, 1]} : vector<2x128xf32> to vector<2x32xf32>
    %518 = vector.broadcast %5 : vector<1x32xf32> to vector<2x32xf32>
    %519 = arith.addf %517, %518 : vector<2x32xf32>
    %520 = arith.mulf %515, %519 : vector<2x32xf32>
    %521 = arith.addf %504, %520 : vector<2x32xf32>
    %522 = math.tanh %521 : vector<2x32xf32>
    %cst_127 = arith.constant 1.000000e+00 : f32
    %523 = vector.broadcast %cst_127 : f32 to vector<2x32xf32>
    %524 = arith.subf %523, %516 : vector<2x32xf32>
    %525 = arith.mulf %524, %522 : vector<2x32xf32>
    %526 = arith.mulf %516, %501 : vector<2x32xf32>
    %527 = arith.addf %525, %526 : vector<2x32xf32>
    %528 = vector.extract_strided_slice %344 {offsets = [14, 0], sizes = [2, 128], strides = [1, 1]} : vector<16x128xf32> to vector<2x128xf32>
    %529 = vector.extract_strided_slice %528 {offsets = [0, 0], sizes = [2, 64], strides = [1, 1]} : vector<2x128xf32> to vector<2x64xf32>
    %530 = vector.extract_strided_slice %528 {offsets = [0, 64], sizes = [2, 32], strides = [1, 1]} : vector<2x128xf32> to vector<2x32xf32>
    %c2_128 = arith.constant 2 : index
    %c0_129 = arith.constant 0 : index
    %c0_130 = arith.constant 0 : index
    %531 = vector.load %arg3[%c2_128, %c0_129, %c0_130] : memref<7x32x128xf32, #tpu.memory_space<vmem>>, vector<1x32x128xf32>
    %532 = vector.shape_cast %531 : vector<1x32x128xf32> to vector<32x128xf32>
    %cst_131 = arith.constant dense<0.000000e+00> : vector<2x128xf32>
    %533 = tpu.matmul %527, %532, %cst_131 {dimension_numbers = #tpu.dot_dimension_numbers<[1], [0], [0], [1], [0, 0, 1, 1], [], []>} : vector<2x32xf32>, vector<32x128xf32>, vector<2x128xf32> -> vector<2x128xf32>
    %534 = vector.extract_strided_slice %533 {offsets = [0, 0], sizes = [2, 64], strides = [1, 1]} : vector<2x128xf32> to vector<2x64xf32>
    %535 = arith.addf %529, %534 : vector<2x64xf32>
    %536 = arith.negf %535 : vector<2x64xf32>
    %537 = math.exp %536 : vector<2x64xf32>
    %cst_132 = arith.constant 1.000000e+00 : f32
    %538 = vector.broadcast %cst_132 : f32 to vector<2x64xf32>
    %539 = arith.addf %538, %537 : vector<2x64xf32>
    %540 = arith.divf %538, %539 : vector<2x64xf32>
    %541 = vector.extract_strided_slice %540 {offsets = [0, 0], sizes = [2, 32], strides = [1, 1]} : vector<2x64xf32> to vector<2x32xf32>
    %542 = vector.extract_strided_slice %540 {offsets = [0, 32], sizes = [2, 32], strides = [1, 1]} : vector<2x64xf32> to vector<2x32xf32>
    %543 = vector.extract_strided_slice %533 {offsets = [0, 64], sizes = [2, 32], strides = [1, 1]} : vector<2x128xf32> to vector<2x32xf32>
    %544 = vector.broadcast %5 : vector<1x32xf32> to vector<2x32xf32>
    %545 = arith.addf %543, %544 : vector<2x32xf32>
    %546 = arith.mulf %541, %545 : vector<2x32xf32>
    %547 = arith.addf %530, %546 : vector<2x32xf32>
    %548 = math.tanh %547 : vector<2x32xf32>
    %cst_133 = arith.constant 1.000000e+00 : f32
    %549 = vector.broadcast %cst_133 : f32 to vector<2x32xf32>
    %550 = arith.subf %549, %542 : vector<2x32xf32>
    %551 = arith.mulf %550, %548 : vector<2x32xf32>
    %552 = arith.mulf %542, %527 : vector<2x32xf32>
    %553 = arith.addf %551, %552 : vector<2x32xf32>
    %554 = tpu.concatenate %257, %284, %311, %338 in 0 : vector<2x32xf32>, vector<2x32xf32>, vector<2x32xf32>, vector<2x32xf32> -> vector<8x32xf32>
    %c4 = arith.constant 4 : index
    %c0_134 = arith.constant 0 : index
    %c0_135 = arith.constant 0 : index
    %555 = vector.load %arg3[%c4, %c0_134, %c0_135] : memref<7x32x128xf32, #tpu.memory_space<vmem>>, vector<1x32x128xf32>
    %556 = vector.shape_cast %555 : vector<1x32x128xf32> to vector<32x128xf32>
    %cst_136 = arith.constant dense<0.000000e+00> : vector<8x128xf32>
    %557 = tpu.matmul %554, %556, %cst_136 {dimension_numbers = #tpu.dot_dimension_numbers<[1], [0], [0], [1], [0, 0, 1, 1], [], []>} : vector<8x32xf32>, vector<32x128xf32>, vector<8x128xf32> -> vector<8x128xf32>
    %558 = vector.broadcast %4 : vector<1x128xf32> to vector<8x128xf32>
    %559 = arith.addf %557, %558 : vector<8x128xf32>
    %560 = vector.shape_cast %48 : vector<2x32xf32> to vector<1x2x32xf32>
    %561 = vector.shape_cast %74 : vector<2x32xf32> to vector<1x2x32xf32>
    %562 = vector.shape_cast %100 : vector<2x32xf32> to vector<1x2x32xf32>
    %563 = vector.shape_cast %126 : vector<2x32xf32> to vector<1x2x32xf32>
    %564 = vector.shape_cast %152 : vector<2x32xf32> to vector<1x2x32xf32>
    %565 = vector.shape_cast %178 : vector<2x32xf32> to vector<1x2x32xf32>
    %566 = vector.shape_cast %204 : vector<2x32xf32> to vector<1x2x32xf32>
    %567 = vector.shape_cast %230 : vector<2x32xf32> to vector<1x2x32xf32>
    %568 = tpu.concatenate %560, %561, %562, %563, %564, %565, %566, %567 in 0 : vector<1x2x32xf32>, vector<1x2x32xf32>, vector<1x2x32xf32>, vector<1x2x32xf32>, vector<1x2x32xf32>, vector<1x2x32xf32>, vector<1x2x32xf32>, vector<1x2x32xf32> -> vector<8x2x32xf32>
    %c0_137 = arith.constant 0 : index
    %c0_138 = arith.constant 0 : index
    %569 = vector.load %arg1[%c0_137, %c0_138] : memref<8x32xf32, #tpu.memory_space<vmem>>, vector<8x32xf32>
    %570 = tpu.iota {dimensions = array<i32: 1>} : vector<2x32xi32>
    %c5 = arith.constant 5 : index
    %c0_139 = arith.constant 0 : index
    %c0_140 = arith.constant 0 : index
    %571 = vector.load %arg3[%c5, %c0_139, %c0_140] : memref<7x32x128xf32, #tpu.memory_space<vmem>>, vector<1x32x128xf32>
    %572 = vector.shape_cast %571 : vector<1x32x128xf32> to vector<32x128xf32>
    %573 = vector.extract_strided_slice %572 {offsets = [29, 0], sizes = [1, 128], strides = [1, 1]} : vector<32x128xf32> to vector<1x128xf32>
    %574 = vector.shape_cast %553 : vector<2x32xf32> to vector<1x2x32xf32>
    %575 = vector.broadcast %574 : vector<1x2x32xf32> to vector<8x2x32xf32>
    %576 = arith.mulf %568, %575 : vector<8x2x32xf32>
    %cst_141 = arith.constant dense<0.000000e+00> : vector<8x2xf32>
    %577 = vector.multi_reduction <add>, %576, %cst_141 [2] : vector<8x2x32xf32> to vector<8x2xf32>
    %578 = vector.shape_cast %577 : vector<8x2xf32> to vector<8x2x1xf32>
    %579 = math.tanh %578 : vector<8x2x1xf32>
    %cst_142 = arith.constant dense<0xFF800000> : vector<2x1xf32>
    %580 = vector.multi_reduction <maximumf>, %579, %cst_142 [0] : vector<8x2x1xf32> to vector<2x1xf32>
    %581 = vector.shape_cast %580 : vector<2x1xf32> to vector<1x2x1xf32>
    %582 = vector.broadcast %581 : vector<1x2x1xf32> to vector<8x2x1xf32>
    %583 = arith.subf %579, %582 : vector<8x2x1xf32>
    %584 = math.exp %583 : vector<8x2x1xf32>
    %cst_143 = arith.constant dense<0.000000e+00> : vector<2x1xf32>
    %585 = vector.multi_reduction <add>, %584, %cst_143 [0] : vector<8x2x1xf32> to vector<2x1xf32>
    %586 = tpu.reciprocal %585 {approx = true} : vector<2x1xf32> -> vector<2x1xf32>
    %587 = vector.shape_cast %586 : vector<2x1xf32> to vector<1x2x1xf32>
    %588 = vector.broadcast %587 : vector<1x2x1xf32> to vector<8x2x1xf32>
    %589 = arith.mulf %584, %588 : vector<8x2x1xf32>
    %590 = vector.broadcast %589 : vector<8x2x1xf32> to vector<8x2x32xf32>
    %591 = arith.mulf %590, %568 : vector<8x2x32xf32>
    %cst_144 = arith.constant dense<0.000000e+00> : vector<2x32xf32>
    %592 = vector.multi_reduction <add>, %591, %cst_144 [0] : vector<8x2x32xf32> to vector<2x32xf32>
    %c3_145 = arith.constant 3 : index
    %c0_146 = arith.constant 0 : index
    %c0_147 = arith.constant 0 : index
    %593 = vector.load %arg3[%c3_145, %c0_146, %c0_147] : memref<7x32x128xf32, #tpu.memory_space<vmem>>, vector<1x32x128xf32>
    %594 = vector.shape_cast %593 : vector<1x32x128xf32> to vector<32x128xf32>
    %cst_148 = arith.constant dense<0.000000e+00> : vector<2x128xf32>
    %595 = tpu.matmul %592, %594, %cst_148 {dimension_numbers = #tpu.dot_dimension_numbers<[1], [0], [0], [1], [0, 0, 1, 1], [], []>} : vector<2x32xf32>, vector<32x128xf32>, vector<2x128xf32> -> vector<2x128xf32>
    %596 = vector.extract_strided_slice %559 {offsets = [0, 0], sizes = [2, 128], strides = [1, 1]} : vector<8x128xf32> to vector<2x128xf32>
    %597 = vector.broadcast %573 : vector<1x128xf32> to vector<2x128xf32>
    %598 = arith.addf %596, %597 : vector<2x128xf32>
    %599 = arith.addf %598, %595 : vector<2x128xf32>
    %600 = vector.extract_strided_slice %599 {offsets = [0, 0], sizes = [2, 64], strides = [1, 1]} : vector<2x128xf32> to vector<2x64xf32>
    %601 = vector.extract_strided_slice %599 {offsets = [0, 64], sizes = [2, 32], strides = [1, 1]} : vector<2x128xf32> to vector<2x32xf32>
    %c2_149 = arith.constant 2 : index
    %c0_150 = arith.constant 0 : index
    %c0_151 = arith.constant 0 : index
    %602 = vector.load %arg3[%c2_149, %c0_150, %c0_151] : memref<7x32x128xf32, #tpu.memory_space<vmem>>, vector<1x32x128xf32>
    %603 = vector.shape_cast %602 : vector<1x32x128xf32> to vector<32x128xf32>
    %cst_152 = arith.constant dense<0.000000e+00> : vector<2x128xf32>
    %604 = tpu.matmul %553, %603, %cst_152 {dimension_numbers = #tpu.dot_dimension_numbers<[1], [0], [0], [1], [0, 0, 1, 1], [], []>} : vector<2x32xf32>, vector<32x128xf32>, vector<2x128xf32> -> vector<2x128xf32>
    %605 = vector.extract_strided_slice %604 {offsets = [0, 0], sizes = [2, 64], strides = [1, 1]} : vector<2x128xf32> to vector<2x64xf32>
    %606 = arith.addf %600, %605 : vector<2x64xf32>
    %607 = arith.negf %606 : vector<2x64xf32>
    %608 = math.exp %607 : vector<2x64xf32>
    %cst_153 = arith.constant 1.000000e+00 : f32
    %609 = vector.broadcast %cst_153 : f32 to vector<2x64xf32>
    %610 = arith.addf %609, %608 : vector<2x64xf32>
    %611 = arith.divf %609, %610 : vector<2x64xf32>
    %612 = vector.extract_strided_slice %611 {offsets = [0, 0], sizes = [2, 32], strides = [1, 1]} : vector<2x64xf32> to vector<2x32xf32>
    %613 = vector.extract_strided_slice %611 {offsets = [0, 32], sizes = [2, 32], strides = [1, 1]} : vector<2x64xf32> to vector<2x32xf32>
    %614 = vector.extract_strided_slice %604 {offsets = [0, 64], sizes = [2, 32], strides = [1, 1]} : vector<2x128xf32> to vector<2x32xf32>
    %615 = vector.broadcast %5 : vector<1x32xf32> to vector<2x32xf32>
    %616 = arith.addf %614, %615 : vector<2x32xf32>
    %617 = arith.mulf %612, %616 : vector<2x32xf32>
    %618 = arith.addf %601, %617 : vector<2x32xf32>
    %619 = math.tanh %618 : vector<2x32xf32>
    %cst_154 = arith.constant 1.000000e+00 : f32
    %620 = vector.broadcast %cst_154 : f32 to vector<2x32xf32>
    %621 = arith.subf %620, %613 : vector<2x32xf32>
    %622 = arith.mulf %621, %619 : vector<2x32xf32>
    %623 = arith.mulf %613, %553 : vector<2x32xf32>
    %624 = arith.addf %622, %623 : vector<2x32xf32>
    %c6 = arith.constant 6 : index
    %c0_155 = arith.constant 0 : index
    %c0_156 = arith.constant 0 : index
    %625 = vector.load %arg3[%c6, %c0_155, %c0_156] : memref<7x32x128xf32, #tpu.memory_space<vmem>>, vector<1x32x128xf32>
    %626 = vector.shape_cast %625 : vector<1x32x128xf32> to vector<32x128xf32>
    %cst_157 = arith.constant dense<0.000000e+00> : vector<2x128xf32>
    %627 = tpu.matmul %624, %626, %cst_157 {dimension_numbers = #tpu.dot_dimension_numbers<[1], [0], [0], [1], [0, 0, 1, 1], [], []>} : vector<2x32xf32>, vector<32x128xf32>, vector<2x128xf32> -> vector<2x128xf32>
    %628 = vector.extract_strided_slice %627 {offsets = [0, 0], sizes = [2, 32], strides = [1, 1]} : vector<2x128xf32> to vector<2x32xf32>
    %629 = vector.broadcast %6 : vector<1x32xf32> to vector<2x32xf32>
    %630 = arith.addf %628, %629 : vector<2x32xf32>
    %cst_158 = arith.constant dense<0xFF800000> : vector<2xf32>
    %631 = vector.multi_reduction <maximumf>, %630, %cst_158 [1] : vector<2x32xf32> to vector<2xf32>
    %632 = vector.shape_cast %631 : vector<2xf32> to vector<2x1xf32>
    %633 = vector.broadcast %632 : vector<2x1xf32> to vector<2x32xf32>
    %634 = arith.subf %630, %633 : vector<2x32xf32>
    %635 = vector.broadcast %632 : vector<2x1xf32> to vector<2x32xf32>
    %636 = arith.subf %630, %635 : vector<2x32xf32>
    %637 = math.exp %636 : vector<2x32xf32>
    %cst_159 = arith.constant dense<0.000000e+00> : vector<2xf32>
    %638 = vector.multi_reduction <add>, %637, %cst_159 [1] : vector<2x32xf32> to vector<2xf32>
    %639 = vector.shape_cast %638 : vector<2xf32> to vector<2x1xf32>
    %640 = math.log %639 : vector<2x1xf32>
    %641 = vector.broadcast %640 : vector<2x1xf32> to vector<2x32xf32>
    %642 = arith.subf %634, %641 : vector<2x32xf32>
    %643 = vector.extract_strided_slice %569 {offsets = [0, 0], sizes = [2, 32], strides = [1, 1]} : vector<8x32xf32> to vector<2x32xf32>
    %644 = arith.mulf %643, %642 : vector<2x32xf32>
    %645 = vector.shape_cast %644 : vector<2x32xf32> to vector<1x2x32xf32>
    %cst_160 = arith.constant dense<0.000000e+00> : vector<1xf32>
    %646 = vector.multi_reduction <add>, %645, %cst_160 [1, 2] : vector<1x2x32xf32> to vector<1xf32>
    %647 = vector.shape_cast %646 : vector<1xf32> to vector<1x1x1xf32>
    %648 = vector.extract %647[0, 0, 0] : f32 from vector<1x1x1xf32>
    %cst_161 = arith.constant 0.000000e+00 : f32
    %649 = arith.subf %cst_161, %648 : f32
    %cst_162 = arith.constant 2.000000e+00 : f32
    %650 = arith.divf %649, %cst_162 : f32
    %cst_163 = arith.constant 4.000000e+00 : f32
    %651 = arith.divf %650, %cst_163 : f32
    %cst_164 = arith.constant 0.000000e+00 : f32
    %652 = arith.addf %cst_164, %651 : f32
    %cst_165 = arith.constant dense<0xFF800000> : vector<2xf32>
    %653 = vector.multi_reduction <maximumf>, %642, %cst_165 [1] : vector<2x32xf32> to vector<2xf32>
    %654 = vector.shape_cast %653 : vector<2xf32> to vector<2x1xf32>
    %655 = vector.broadcast %654 : vector<2x1xf32> to vector<2x32xf32>
    %656 = arith.cmpf oge, %642, %655 : vector<2x32xf32>
    %c32_i32 = arith.constant 32 : i32
    %657 = vector.broadcast %c32_i32 : i32 to vector<2x32xi32>
    %658 = arith.select %656, %570, %657 : vector<2x32xi1>, vector<2x32xi32>
    %cst_166 = arith.constant dense<2147483647> : vector<2xi32>
    %659 = vector.multi_reduction <minsi>, %658, %cst_166 [1] : vector<2x32xi32> to vector<2xi32>
    %660 = vector.shape_cast %659 : vector<2xi32> to vector<2x1xi32>
    %661 = vector.broadcast %660 : vector<2x1xi32> to vector<2x32xi32>
    %662 = arith.cmpi eq, %570, %661 : vector<2x32xi32>
    %663 = arith.extui %662 : vector<2x32xi1> to vector<2x32xi32>
    %664 = arith.sitofp %663 : vector<2x32xi32> to vector<2x32xf32>
    %c5_167 = arith.constant 5 : index
    %c0_168 = arith.constant 0 : index
    %c0_169 = arith.constant 0 : index
    %665 = vector.load %arg3[%c5_167, %c0_168, %c0_169] : memref<7x32x128xf32, #tpu.memory_space<vmem>>, vector<1x32x128xf32>
    %666 = vector.shape_cast %665 : vector<1x32x128xf32> to vector<32x128xf32>
    %cst_170 = arith.constant dense<0.000000e+00> : vector<2x128xf32>
    %667 = tpu.matmul %664, %666, %cst_170 {dimension_numbers = #tpu.dot_dimension_numbers<[1], [0], [0], [1], [0, 0, 1, 1], [], []>} : vector<2x32xf32>, vector<32x128xf32>, vector<2x128xf32> -> vector<2x128xf32>
    %668 = vector.shape_cast %624 : vector<2x32xf32> to vector<1x2x32xf32>
    %669 = vector.broadcast %668 : vector<1x2x32xf32> to vector<8x2x32xf32>
    %670 = arith.mulf %568, %669 : vector<8x2x32xf32>
    %cst_171 = arith.constant dense<0.000000e+00> : vector<8x2xf32>
    %671 = vector.multi_reduction <add>, %670, %cst_171 [2] : vector<8x2x32xf32> to vector<8x2xf32>
    %672 = vector.shape_cast %671 : vector<8x2xf32> to vector<8x2x1xf32>
    %673 = math.tanh %672 : vector<8x2x1xf32>
    %cst_172 = arith.constant dense<0xFF800000> : vector<2x1xf32>
    %674 = vector.multi_reduction <maximumf>, %673, %cst_172 [0] : vector<8x2x1xf32> to vector<2x1xf32>
    %675 = vector.shape_cast %674 : vector<2x1xf32> to vector<1x2x1xf32>
    %676 = vector.broadcast %675 : vector<1x2x1xf32> to vector<8x2x1xf32>
    %677 = arith.subf %673, %676 : vector<8x2x1xf32>
    %678 = math.exp %677 : vector<8x2x1xf32>
    %cst_173 = arith.constant dense<0.000000e+00> : vector<2x1xf32>
    %679 = vector.multi_reduction <add>, %678, %cst_173 [0] : vector<8x2x1xf32> to vector<2x1xf32>
    %680 = tpu.reciprocal %679 {approx = true} : vector<2x1xf32> -> vector<2x1xf32>
    %681 = vector.shape_cast %680 : vector<2x1xf32> to vector<1x2x1xf32>
    %682 = vector.broadcast %681 : vector<1x2x1xf32> to vector<8x2x1xf32>
    %683 = arith.mulf %678, %682 : vector<8x2x1xf32>
    %684 = vector.broadcast %683 : vector<8x2x1xf32> to vector<8x2x32xf32>
    %685 = arith.mulf %684, %568 : vector<8x2x32xf32>
    %cst_174 = arith.constant dense<0.000000e+00> : vector<2x32xf32>
    %686 = vector.multi_reduction <add>, %685, %cst_174 [0] : vector<8x2x32xf32> to vector<2x32xf32>
    %c3_175 = arith.constant 3 : index
    %c0_176 = arith.constant 0 : index
    %c0_177 = arith.constant 0 : index
    %687 = vector.load %arg3[%c3_175, %c0_176, %c0_177] : memref<7x32x128xf32, #tpu.memory_space<vmem>>, vector<1x32x128xf32>
    %688 = vector.shape_cast %687 : vector<1x32x128xf32> to vector<32x128xf32>
    %cst_178 = arith.constant dense<0.000000e+00> : vector<2x128xf32>
    %689 = tpu.matmul %686, %688, %cst_178 {dimension_numbers = #tpu.dot_dimension_numbers<[1], [0], [0], [1], [0, 0, 1, 1], [], []>} : vector<2x32xf32>, vector<32x128xf32>, vector<2x128xf32> -> vector<2x128xf32>
    %690 = vector.extract_strided_slice %559 {offsets = [2, 0], sizes = [2, 128], strides = [1, 1]} : vector<8x128xf32> to vector<2x128xf32>
    %691 = arith.addf %690, %667 : vector<2x128xf32>
    %692 = arith.addf %691, %689 : vector<2x128xf32>
    %693 = vector.extract_strided_slice %692 {offsets = [0, 0], sizes = [2, 64], strides = [1, 1]} : vector<2x128xf32> to vector<2x64xf32>
    %694 = vector.extract_strided_slice %692 {offsets = [0, 64], sizes = [2, 32], strides = [1, 1]} : vector<2x128xf32> to vector<2x32xf32>
    %c2_179 = arith.constant 2 : index
    %c0_180 = arith.constant 0 : index
    %c0_181 = arith.constant 0 : index
    %695 = vector.load %arg3[%c2_179, %c0_180, %c0_181] : memref<7x32x128xf32, #tpu.memory_space<vmem>>, vector<1x32x128xf32>
    %696 = vector.shape_cast %695 : vector<1x32x128xf32> to vector<32x128xf32>
    %cst_182 = arith.constant dense<0.000000e+00> : vector<2x128xf32>
    %697 = tpu.matmul %624, %696, %cst_182 {dimension_numbers = #tpu.dot_dimension_numbers<[1], [0], [0], [1], [0, 0, 1, 1], [], []>} : vector<2x32xf32>, vector<32x128xf32>, vector<2x128xf32> -> vector<2x128xf32>
    %698 = vector.extract_strided_slice %697 {offsets = [0, 0], sizes = [2, 64], strides = [1, 1]} : vector<2x128xf32> to vector<2x64xf32>
    %699 = arith.addf %693, %698 : vector<2x64xf32>
    %700 = arith.negf %699 : vector<2x64xf32>
    %701 = math.exp %700 : vector<2x64xf32>
    %cst_183 = arith.constant 1.000000e+00 : f32
    %702 = vector.broadcast %cst_183 : f32 to vector<2x64xf32>
    %703 = arith.addf %702, %701 : vector<2x64xf32>
    %704 = arith.divf %702, %703 : vector<2x64xf32>
    %705 = vector.extract_strided_slice %704 {offsets = [0, 0], sizes = [2, 32], strides = [1, 1]} : vector<2x64xf32> to vector<2x32xf32>
    %706 = vector.extract_strided_slice %704 {offsets = [0, 32], sizes = [2, 32], strides = [1, 1]} : vector<2x64xf32> to vector<2x32xf32>
    %707 = vector.extract_strided_slice %697 {offsets = [0, 64], sizes = [2, 32], strides = [1, 1]} : vector<2x128xf32> to vector<2x32xf32>
    %708 = vector.broadcast %5 : vector<1x32xf32> to vector<2x32xf32>
    %709 = arith.addf %707, %708 : vector<2x32xf32>
    %710 = arith.mulf %705, %709 : vector<2x32xf32>
    %711 = arith.addf %694, %710 : vector<2x32xf32>
    %712 = math.tanh %711 : vector<2x32xf32>
    %cst_184 = arith.constant 1.000000e+00 : f32
    %713 = vector.broadcast %cst_184 : f32 to vector<2x32xf32>
    %714 = arith.subf %713, %706 : vector<2x32xf32>
    %715 = arith.mulf %714, %712 : vector<2x32xf32>
    %716 = arith.mulf %706, %624 : vector<2x32xf32>
    %717 = arith.addf %715, %716 : vector<2x32xf32>
    %c6_185 = arith.constant 6 : index
    %c0_186 = arith.constant 0 : index
    %c0_187 = arith.constant 0 : index
    %718 = vector.load %arg3[%c6_185, %c0_186, %c0_187] : memref<7x32x128xf32, #tpu.memory_space<vmem>>, vector<1x32x128xf32>
    %719 = vector.shape_cast %718 : vector<1x32x128xf32> to vector<32x128xf32>
    %cst_188 = arith.constant dense<0.000000e+00> : vector<2x128xf32>
    %720 = tpu.matmul %717, %719, %cst_188 {dimension_numbers = #tpu.dot_dimension_numbers<[1], [0], [0], [1], [0, 0, 1, 1], [], []>} : vector<2x32xf32>, vector<32x128xf32>, vector<2x128xf32> -> vector<2x128xf32>
    %721 = vector.extract_strided_slice %720 {offsets = [0, 0], sizes = [2, 32], strides = [1, 1]} : vector<2x128xf32> to vector<2x32xf32>
    %722 = vector.broadcast %6 : vector<1x32xf32> to vector<2x32xf32>
    %723 = arith.addf %721, %722 : vector<2x32xf32>
    %cst_189 = arith.constant dense<0xFF800000> : vector<2xf32>
    %724 = vector.multi_reduction <maximumf>, %723, %cst_189 [1] : vector<2x32xf32> to vector<2xf32>
    %725 = vector.shape_cast %724 : vector<2xf32> to vector<2x1xf32>
    %726 = vector.broadcast %725 : vector<2x1xf32> to vector<2x32xf32>
    %727 = arith.subf %723, %726 : vector<2x32xf32>
    %728 = vector.broadcast %725 : vector<2x1xf32> to vector<2x32xf32>
    %729 = arith.subf %723, %728 : vector<2x32xf32>
    %730 = math.exp %729 : vector<2x32xf32>
    %cst_190 = arith.constant dense<0.000000e+00> : vector<2xf32>
    %731 = vector.multi_reduction <add>, %730, %cst_190 [1] : vector<2x32xf32> to vector<2xf32>
    %732 = vector.shape_cast %731 : vector<2xf32> to vector<2x1xf32>
    %733 = math.log %732 : vector<2x1xf32>
    %734 = vector.broadcast %733 : vector<2x1xf32> to vector<2x32xf32>
    %735 = arith.subf %727, %734 : vector<2x32xf32>
    %736 = vector.extract_strided_slice %569 {offsets = [2, 0], sizes = [2, 32], strides = [1, 1]} : vector<8x32xf32> to vector<2x32xf32>
    %737 = arith.mulf %736, %735 : vector<2x32xf32>
    %738 = vector.shape_cast %737 : vector<2x32xf32> to vector<1x2x32xf32>
    %cst_191 = arith.constant dense<0.000000e+00> : vector<1xf32>
    %739 = vector.multi_reduction <add>, %738, %cst_191 [1, 2] : vector<1x2x32xf32> to vector<1xf32>
    %740 = vector.shape_cast %739 : vector<1xf32> to vector<1x1x1xf32>
    %741 = vector.extract %740[0, 0, 0] : f32 from vector<1x1x1xf32>
    %cst_192 = arith.constant 0.000000e+00 : f32
    %742 = arith.subf %cst_192, %741 : f32
    %cst_193 = arith.constant 2.000000e+00 : f32
    %743 = arith.divf %742, %cst_193 : f32
    %cst_194 = arith.constant 4.000000e+00 : f32
    %744 = arith.divf %743, %cst_194 : f32
    %745 = arith.addf %652, %744 : f32
    %cst_195 = arith.constant dense<0xFF800000> : vector<2xf32>
    %746 = vector.multi_reduction <maximumf>, %735, %cst_195 [1] : vector<2x32xf32> to vector<2xf32>
    %747 = vector.shape_cast %746 : vector<2xf32> to vector<2x1xf32>
    %748 = vector.broadcast %747 : vector<2x1xf32> to vector<2x32xf32>
    %749 = arith.cmpf oge, %735, %748 : vector<2x32xf32>
    %c32_i32_196 = arith.constant 32 : i32
    %750 = vector.broadcast %c32_i32_196 : i32 to vector<2x32xi32>
    %751 = arith.select %749, %570, %750 : vector<2x32xi1>, vector<2x32xi32>
    %cst_197 = arith.constant dense<2147483647> : vector<2xi32>
    %752 = vector.multi_reduction <minsi>, %751, %cst_197 [1] : vector<2x32xi32> to vector<2xi32>
    %753 = vector.shape_cast %752 : vector<2xi32> to vector<2x1xi32>
    %754 = vector.broadcast %753 : vector<2x1xi32> to vector<2x32xi32>
    %755 = arith.cmpi eq, %570, %754 : vector<2x32xi32>
    %756 = arith.extui %755 : vector<2x32xi1> to vector<2x32xi32>
    %757 = arith.sitofp %756 : vector<2x32xi32> to vector<2x32xf32>
    %c5_198 = arith.constant 5 : index
    %c0_199 = arith.constant 0 : index
    %c0_200 = arith.constant 0 : index
    %758 = vector.load %arg3[%c5_198, %c0_199, %c0_200] : memref<7x32x128xf32, #tpu.memory_space<vmem>>, vector<1x32x128xf32>
    %759 = vector.shape_cast %758 : vector<1x32x128xf32> to vector<32x128xf32>
    %cst_201 = arith.constant dense<0.000000e+00> : vector<2x128xf32>
    %760 = tpu.matmul %757, %759, %cst_201 {dimension_numbers = #tpu.dot_dimension_numbers<[1], [0], [0], [1], [0, 0, 1, 1], [], []>} : vector<2x32xf32>, vector<32x128xf32>, vector<2x128xf32> -> vector<2x128xf32>
    %761 = vector.shape_cast %717 : vector<2x32xf32> to vector<1x2x32xf32>
    %762 = vector.broadcast %761 : vector<1x2x32xf32> to vector<8x2x32xf32>
    %763 = arith.mulf %568, %762 : vector<8x2x32xf32>
    %cst_202 = arith.constant dense<0.000000e+00> : vector<8x2xf32>
    %764 = vector.multi_reduction <add>, %763, %cst_202 [2] : vector<8x2x32xf32> to vector<8x2xf32>
    %765 = vector.shape_cast %764 : vector<8x2xf32> to vector<8x2x1xf32>
    %766 = math.tanh %765 : vector<8x2x1xf32>
    %cst_203 = arith.constant dense<0xFF800000> : vector<2x1xf32>
    %767 = vector.multi_reduction <maximumf>, %766, %cst_203 [0] : vector<8x2x1xf32> to vector<2x1xf32>
    %768 = vector.shape_cast %767 : vector<2x1xf32> to vector<1x2x1xf32>
    %769 = vector.broadcast %768 : vector<1x2x1xf32> to vector<8x2x1xf32>
    %770 = arith.subf %766, %769 : vector<8x2x1xf32>
    %771 = math.exp %770 : vector<8x2x1xf32>
    %cst_204 = arith.constant dense<0.000000e+00> : vector<2x1xf32>
    %772 = vector.multi_reduction <add>, %771, %cst_204 [0] : vector<8x2x1xf32> to vector<2x1xf32>
    %773 = tpu.reciprocal %772 {approx = true} : vector<2x1xf32> -> vector<2x1xf32>
    %774 = vector.shape_cast %773 : vector<2x1xf32> to vector<1x2x1xf32>
    %775 = vector.broadcast %774 : vector<1x2x1xf32> to vector<8x2x1xf32>
    %776 = arith.mulf %771, %775 : vector<8x2x1xf32>
    %777 = vector.broadcast %776 : vector<8x2x1xf32> to vector<8x2x32xf32>
    %778 = arith.mulf %777, %568 : vector<8x2x32xf32>
    %cst_205 = arith.constant dense<0.000000e+00> : vector<2x32xf32>
    %779 = vector.multi_reduction <add>, %778, %cst_205 [0] : vector<8x2x32xf32> to vector<2x32xf32>
    %c3_206 = arith.constant 3 : index
    %c0_207 = arith.constant 0 : index
    %c0_208 = arith.constant 0 : index
    %780 = vector.load %arg3[%c3_206, %c0_207, %c0_208] : memref<7x32x128xf32, #tpu.memory_space<vmem>>, vector<1x32x128xf32>
    %781 = vector.shape_cast %780 : vector<1x32x128xf32> to vector<32x128xf32>
    %cst_209 = arith.constant dense<0.000000e+00> : vector<2x128xf32>
    %782 = tpu.matmul %779, %781, %cst_209 {dimension_numbers = #tpu.dot_dimension_numbers<[1], [0], [0], [1], [0, 0, 1, 1], [], []>} : vector<2x32xf32>, vector<32x128xf32>, vector<2x128xf32> -> vector<2x128xf32>
    %783 = vector.extract_strided_slice %559 {offsets = [4, 0], sizes = [2, 128], strides = [1, 1]} : vector<8x128xf32> to vector<2x128xf32>
    %784 = arith.addf %783, %760 : vector<2x128xf32>
    %785 = arith.addf %784, %782 : vector<2x128xf32>
    %786 = vector.extract_strided_slice %785 {offsets = [0, 0], sizes = [2, 64], strides = [1, 1]} : vector<2x128xf32> to vector<2x64xf32>
    %787 = vector.extract_strided_slice %785 {offsets = [0, 64], sizes = [2, 32], strides = [1, 1]} : vector<2x128xf32> to vector<2x32xf32>
    %c2_210 = arith.constant 2 : index
    %c0_211 = arith.constant 0 : index
    %c0_212 = arith.constant 0 : index
    %788 = vector.load %arg3[%c2_210, %c0_211, %c0_212] : memref<7x32x128xf32, #tpu.memory_space<vmem>>, vector<1x32x128xf32>
    %789 = vector.shape_cast %788 : vector<1x32x128xf32> to vector<32x128xf32>
    %cst_213 = arith.constant dense<0.000000e+00> : vector<2x128xf32>
    %790 = tpu.matmul %717, %789, %cst_213 {dimension_numbers = #tpu.dot_dimension_numbers<[1], [0], [0], [1], [0, 0, 1, 1], [], []>} : vector<2x32xf32>, vector<32x128xf32>, vector<2x128xf32> -> vector<2x128xf32>
    %791 = vector.extract_strided_slice %790 {offsets = [0, 0], sizes = [2, 64], strides = [1, 1]} : vector<2x128xf32> to vector<2x64xf32>
    %792 = arith.addf %786, %791 : vector<2x64xf32>
    %793 = arith.negf %792 : vector<2x64xf32>
    %794 = math.exp %793 : vector<2x64xf32>
    %cst_214 = arith.constant 1.000000e+00 : f32
    %795 = vector.broadcast %cst_214 : f32 to vector<2x64xf32>
    %796 = arith.addf %795, %794 : vector<2x64xf32>
    %797 = arith.divf %795, %796 : vector<2x64xf32>
    %798 = vector.extract_strided_slice %797 {offsets = [0, 0], sizes = [2, 32], strides = [1, 1]} : vector<2x64xf32> to vector<2x32xf32>
    %799 = vector.extract_strided_slice %797 {offsets = [0, 32], sizes = [2, 32], strides = [1, 1]} : vector<2x64xf32> to vector<2x32xf32>
    %800 = vector.extract_strided_slice %790 {offsets = [0, 64], sizes = [2, 32], strides = [1, 1]} : vector<2x128xf32> to vector<2x32xf32>
    %801 = vector.broadcast %5 : vector<1x32xf32> to vector<2x32xf32>
    %802 = arith.addf %800, %801 : vector<2x32xf32>
    %803 = arith.mulf %798, %802 : vector<2x32xf32>
    %804 = arith.addf %787, %803 : vector<2x32xf32>
    %805 = math.tanh %804 : vector<2x32xf32>
    %cst_215 = arith.constant 1.000000e+00 : f32
    %806 = vector.broadcast %cst_215 : f32 to vector<2x32xf32>
    %807 = arith.subf %806, %799 : vector<2x32xf32>
    %808 = arith.mulf %807, %805 : vector<2x32xf32>
    %809 = arith.mulf %799, %717 : vector<2x32xf32>
    %810 = arith.addf %808, %809 : vector<2x32xf32>
    %c6_216 = arith.constant 6 : index
    %c0_217 = arith.constant 0 : index
    %c0_218 = arith.constant 0 : index
    %811 = vector.load %arg3[%c6_216, %c0_217, %c0_218] : memref<7x32x128xf32, #tpu.memory_space<vmem>>, vector<1x32x128xf32>
    %812 = vector.shape_cast %811 : vector<1x32x128xf32> to vector<32x128xf32>
    %cst_219 = arith.constant dense<0.000000e+00> : vector<2x128xf32>
    %813 = tpu.matmul %810, %812, %cst_219 {dimension_numbers = #tpu.dot_dimension_numbers<[1], [0], [0], [1], [0, 0, 1, 1], [], []>} : vector<2x32xf32>, vector<32x128xf32>, vector<2x128xf32> -> vector<2x128xf32>
    %814 = vector.extract_strided_slice %813 {offsets = [0, 0], sizes = [2, 32], strides = [1, 1]} : vector<2x128xf32> to vector<2x32xf32>
    %815 = vector.broadcast %6 : vector<1x32xf32> to vector<2x32xf32>
    %816 = arith.addf %814, %815 : vector<2x32xf32>
    %cst_220 = arith.constant dense<0xFF800000> : vector<2xf32>
    %817 = vector.multi_reduction <maximumf>, %816, %cst_220 [1] : vector<2x32xf32> to vector<2xf32>
    %818 = vector.shape_cast %817 : vector<2xf32> to vector<2x1xf32>
    %819 = vector.broadcast %818 : vector<2x1xf32> to vector<2x32xf32>
    %820 = arith.subf %816, %819 : vector<2x32xf32>
    %821 = vector.broadcast %818 : vector<2x1xf32> to vector<2x32xf32>
    %822 = arith.subf %816, %821 : vector<2x32xf32>
    %823 = math.exp %822 : vector<2x32xf32>
    %cst_221 = arith.constant dense<0.000000e+00> : vector<2xf32>
    %824 = vector.multi_reduction <add>, %823, %cst_221 [1] : vector<2x32xf32> to vector<2xf32>
    %825 = vector.shape_cast %824 : vector<2xf32> to vector<2x1xf32>
    %826 = math.log %825 : vector<2x1xf32>
    %827 = vector.broadcast %826 : vector<2x1xf32> to vector<2x32xf32>
    %828 = arith.subf %820, %827 : vector<2x32xf32>
    %829 = vector.extract_strided_slice %569 {offsets = [4, 0], sizes = [2, 32], strides = [1, 1]} : vector<8x32xf32> to vector<2x32xf32>
    %830 = arith.mulf %829, %828 : vector<2x32xf32>
    %831 = vector.shape_cast %830 : vector<2x32xf32> to vector<1x2x32xf32>
    %cst_222 = arith.constant dense<0.000000e+00> : vector<1xf32>
    %832 = vector.multi_reduction <add>, %831, %cst_222 [1, 2] : vector<1x2x32xf32> to vector<1xf32>
    %833 = vector.shape_cast %832 : vector<1xf32> to vector<1x1x1xf32>
    %834 = vector.extract %833[0, 0, 0] : f32 from vector<1x1x1xf32>
    %cst_223 = arith.constant 0.000000e+00 : f32
    %835 = arith.subf %cst_223, %834 : f32
    %cst_224 = arith.constant 2.000000e+00 : f32
    %836 = arith.divf %835, %cst_224 : f32
    %cst_225 = arith.constant 4.000000e+00 : f32
    %837 = arith.divf %836, %cst_225 : f32
    %838 = arith.addf %745, %837 : f32
    %cst_226 = arith.constant dense<0xFF800000> : vector<2xf32>
    %839 = vector.multi_reduction <maximumf>, %828, %cst_226 [1] : vector<2x32xf32> to vector<2xf32>
    %840 = vector.shape_cast %839 : vector<2xf32> to vector<2x1xf32>
    %841 = vector.broadcast %840 : vector<2x1xf32> to vector<2x32xf32>
    %842 = arith.cmpf oge, %828, %841 : vector<2x32xf32>
    %c32_i32_227 = arith.constant 32 : i32
    %843 = vector.broadcast %c32_i32_227 : i32 to vector<2x32xi32>
    %844 = arith.select %842, %570, %843 : vector<2x32xi1>, vector<2x32xi32>
    %cst_228 = arith.constant dense<2147483647> : vector<2xi32>
    %845 = vector.multi_reduction <minsi>, %844, %cst_228 [1] : vector<2x32xi32> to vector<2xi32>
    %846 = vector.shape_cast %845 : vector<2xi32> to vector<2x1xi32>
    %847 = vector.broadcast %846 : vector<2x1xi32> to vector<2x32xi32>
    %848 = arith.cmpi eq, %570, %847 : vector<2x32xi32>
    %849 = arith.extui %848 : vector<2x32xi1> to vector<2x32xi32>
    %850 = arith.sitofp %849 : vector<2x32xi32> to vector<2x32xf32>
    %c5_229 = arith.constant 5 : index
    %c0_230 = arith.constant 0 : index
    %c0_231 = arith.constant 0 : index
    %851 = vector.load %arg3[%c5_229, %c0_230, %c0_231] : memref<7x32x128xf32, #tpu.memory_space<vmem>>, vector<1x32x128xf32>
    %852 = vector.shape_cast %851 : vector<1x32x128xf32> to vector<32x128xf32>
    %cst_232 = arith.constant dense<0.000000e+00> : vector<2x128xf32>
    %853 = tpu.matmul %850, %852, %cst_232 {dimension_numbers = #tpu.dot_dimension_numbers<[1], [0], [0], [1], [0, 0, 1, 1], [], []>} : vector<2x32xf32>, vector<32x128xf32>, vector<2x128xf32> -> vector<2x128xf32>
    %854 = vector.shape_cast %810 : vector<2x32xf32> to vector<1x2x32xf32>
    %855 = vector.broadcast %854 : vector<1x2x32xf32> to vector<8x2x32xf32>
    %856 = arith.mulf %568, %855 : vector<8x2x32xf32>
    %cst_233 = arith.constant dense<0.000000e+00> : vector<8x2xf32>
    %857 = vector.multi_reduction <add>, %856, %cst_233 [2] : vector<8x2x32xf32> to vector<8x2xf32>
    %858 = vector.shape_cast %857 : vector<8x2xf32> to vector<8x2x1xf32>
    %859 = math.tanh %858 : vector<8x2x1xf32>
    %cst_234 = arith.constant dense<0xFF800000> : vector<2x1xf32>
    %860 = vector.multi_reduction <maximumf>, %859, %cst_234 [0] : vector<8x2x1xf32> to vector<2x1xf32>
    %861 = vector.shape_cast %860 : vector<2x1xf32> to vector<1x2x1xf32>
    %862 = vector.broadcast %861 : vector<1x2x1xf32> to vector<8x2x1xf32>
    %863 = arith.subf %859, %862 : vector<8x2x1xf32>
    %864 = math.exp %863 : vector<8x2x1xf32>
    %cst_235 = arith.constant dense<0.000000e+00> : vector<2x1xf32>
    %865 = vector.multi_reduction <add>, %864, %cst_235 [0] : vector<8x2x1xf32> to vector<2x1xf32>
    %866 = tpu.reciprocal %865 {approx = true} : vector<2x1xf32> -> vector<2x1xf32>
    %867 = vector.shape_cast %866 : vector<2x1xf32> to vector<1x2x1xf32>
    %868 = vector.broadcast %867 : vector<1x2x1xf32> to vector<8x2x1xf32>
    %869 = arith.mulf %864, %868 : vector<8x2x1xf32>
    %870 = vector.broadcast %869 : vector<8x2x1xf32> to vector<8x2x32xf32>
    %871 = arith.mulf %870, %568 : vector<8x2x32xf32>
    %cst_236 = arith.constant dense<0.000000e+00> : vector<2x32xf32>
    %872 = vector.multi_reduction <add>, %871, %cst_236 [0] : vector<8x2x32xf32> to vector<2x32xf32>
    %c3_237 = arith.constant 3 : index
    %c0_238 = arith.constant 0 : index
    %c0_239 = arith.constant 0 : index
    %873 = vector.load %arg3[%c3_237, %c0_238, %c0_239] : memref<7x32x128xf32, #tpu.memory_space<vmem>>, vector<1x32x128xf32>
    %874 = vector.shape_cast %873 : vector<1x32x128xf32> to vector<32x128xf32>
    %cst_240 = arith.constant dense<0.000000e+00> : vector<2x128xf32>
    %875 = tpu.matmul %872, %874, %cst_240 {dimension_numbers = #tpu.dot_dimension_numbers<[1], [0], [0], [1], [0, 0, 1, 1], [], []>} : vector<2x32xf32>, vector<32x128xf32>, vector<2x128xf32> -> vector<2x128xf32>
    %876 = vector.extract_strided_slice %559 {offsets = [6, 0], sizes = [2, 128], strides = [1, 1]} : vector<8x128xf32> to vector<2x128xf32>
    %877 = arith.addf %876, %853 : vector<2x128xf32>
    %878 = arith.addf %877, %875 : vector<2x128xf32>
    %879 = vector.extract_strided_slice %878 {offsets = [0, 0], sizes = [2, 64], strides = [1, 1]} : vector<2x128xf32> to vector<2x64xf32>
    %880 = vector.extract_strided_slice %878 {offsets = [0, 64], sizes = [2, 32], strides = [1, 1]} : vector<2x128xf32> to vector<2x32xf32>
    %c2_241 = arith.constant 2 : index
    %c0_242 = arith.constant 0 : index
    %c0_243 = arith.constant 0 : index
    %881 = vector.load %arg3[%c2_241, %c0_242, %c0_243] : memref<7x32x128xf32, #tpu.memory_space<vmem>>, vector<1x32x128xf32>
    %882 = vector.shape_cast %881 : vector<1x32x128xf32> to vector<32x128xf32>
    %cst_244 = arith.constant dense<0.000000e+00> : vector<2x128xf32>
    %883 = tpu.matmul %810, %882, %cst_244 {dimension_numbers = #tpu.dot_dimension_numbers<[1], [0], [0], [1], [0, 0, 1, 1], [], []>} : vector<2x32xf32>, vector<32x128xf32>, vector<2x128xf32> -> vector<2x128xf32>
    %884 = vector.extract_strided_slice %883 {offsets = [0, 0], sizes = [2, 64], strides = [1, 1]} : vector<2x128xf32> to vector<2x64xf32>
    %885 = arith.addf %879, %884 : vector<2x64xf32>
    %886 = arith.negf %885 : vector<2x64xf32>
    %887 = math.exp %886 : vector<2x64xf32>
    %cst_245 = arith.constant 1.000000e+00 : f32
    %888 = vector.broadcast %cst_245 : f32 to vector<2x64xf32>
    %889 = arith.addf %888, %887 : vector<2x64xf32>
    %890 = arith.divf %888, %889 : vector<2x64xf32>
    %891 = vector.extract_strided_slice %890 {offsets = [0, 0], sizes = [2, 32], strides = [1, 1]} : vector<2x64xf32> to vector<2x32xf32>
    %892 = vector.extract_strided_slice %890 {offsets = [0, 32], sizes = [2, 32], strides = [1, 1]} : vector<2x64xf32> to vector<2x32xf32>
    %893 = vector.extract_strided_slice %883 {offsets = [0, 64], sizes = [2, 32], strides = [1, 1]} : vector<2x128xf32> to vector<2x32xf32>
    %894 = vector.broadcast %5 : vector<1x32xf32> to vector<2x32xf32>
    %895 = arith.addf %893, %894 : vector<2x32xf32>
    %896 = arith.mulf %891, %895 : vector<2x32xf32>
    %897 = arith.addf %880, %896 : vector<2x32xf32>
    %898 = math.tanh %897 : vector<2x32xf32>
    %cst_246 = arith.constant 1.000000e+00 : f32
    %899 = vector.broadcast %cst_246 : f32 to vector<2x32xf32>
    %900 = arith.subf %899, %892 : vector<2x32xf32>
    %901 = arith.mulf %900, %898 : vector<2x32xf32>
    %902 = arith.mulf %892, %810 : vector<2x32xf32>
    %903 = arith.addf %901, %902 : vector<2x32xf32>
    %c6_247 = arith.constant 6 : index
    %c0_248 = arith.constant 0 : index
    %c0_249 = arith.constant 0 : index
    %904 = vector.load %arg3[%c6_247, %c0_248, %c0_249] : memref<7x32x128xf32, #tpu.memory_space<vmem>>, vector<1x32x128xf32>
    %905 = vector.shape_cast %904 : vector<1x32x128xf32> to vector<32x128xf32>
    %cst_250 = arith.constant dense<0.000000e+00> : vector<2x128xf32>
    %906 = tpu.matmul %903, %905, %cst_250 {dimension_numbers = #tpu.dot_dimension_numbers<[1], [0], [0], [1], [0, 0, 1, 1], [], []>} : vector<2x32xf32>, vector<32x128xf32>, vector<2x128xf32> -> vector<2x128xf32>
    %907 = vector.extract_strided_slice %906 {offsets = [0, 0], sizes = [2, 32], strides = [1, 1]} : vector<2x128xf32> to vector<2x32xf32>
    %908 = vector.broadcast %6 : vector<1x32xf32> to vector<2x32xf32>
    %909 = arith.addf %907, %908 : vector<2x32xf32>
    %cst_251 = arith.constant dense<0xFF800000> : vector<2xf32>
    %910 = vector.multi_reduction <maximumf>, %909, %cst_251 [1] : vector<2x32xf32> to vector<2xf32>
    %911 = vector.shape_cast %910 : vector<2xf32> to vector<2x1xf32>
    %912 = vector.broadcast %911 : vector<2x1xf32> to vector<2x32xf32>
    %913 = arith.subf %909, %912 : vector<2x32xf32>
    %914 = vector.broadcast %911 : vector<2x1xf32> to vector<2x32xf32>
    %915 = arith.subf %909, %914 : vector<2x32xf32>
    %916 = math.exp %915 : vector<2x32xf32>
    %cst_252 = arith.constant dense<0.000000e+00> : vector<2xf32>
    %917 = vector.multi_reduction <add>, %916, %cst_252 [1] : vector<2x32xf32> to vector<2xf32>
    %918 = vector.shape_cast %917 : vector<2xf32> to vector<2x1xf32>
    %919 = math.log %918 : vector<2x1xf32>
    %920 = vector.broadcast %919 : vector<2x1xf32> to vector<2x32xf32>
    %921 = arith.subf %913, %920 : vector<2x32xf32>
    %922 = vector.extract_strided_slice %569 {offsets = [6, 0], sizes = [2, 32], strides = [1, 1]} : vector<8x32xf32> to vector<2x32xf32>
    %923 = arith.mulf %922, %921 : vector<2x32xf32>
    %924 = vector.shape_cast %923 : vector<2x32xf32> to vector<1x2x32xf32>
    %cst_253 = arith.constant dense<0.000000e+00> : vector<1xf32>
    %925 = vector.multi_reduction <add>, %924, %cst_253 [1, 2] : vector<1x2x32xf32> to vector<1xf32>
    %926 = vector.shape_cast %925 : vector<1xf32> to vector<1x1x1xf32>
    %927 = vector.extract %926[0, 0, 0] : f32 from vector<1x1x1xf32>
    %cst_254 = arith.constant 0.000000e+00 : f32
    %928 = arith.subf %cst_254, %927 : f32
    %cst_255 = arith.constant 2.000000e+00 : f32
    %929 = arith.divf %928, %cst_255 : f32
    %cst_256 = arith.constant 4.000000e+00 : f32
    %930 = arith.divf %929, %cst_256 : f32
    %931 = arith.addf %838, %930 : f32
    %c0_257 = arith.constant 0 : index
    %c0_258 = arith.constant 0 : index
    %932 = memref.load %arg5[%c0_257, %c0_258] : memref<1x1xf32, #tpu.memory_space<smem>>
    memref.store %931, %arg5[%c0_257, %c0_258] : memref<1x1xf32, #tpu.memory_space<smem>>
    return
  }
}

</mosaic_0001>

<llo_original>
// kernel: seq2seq_loss_pallas.1
$region0: #{seq2seq_loss_pallas.1}
  #allocation0 [shape = 'u32[]', space=smem, size = 0x4, offset = 0x4, fixed_abs, tag = 'smem constant byte address 0x4 - core index']
  #allocation1 [shape = 'u32[144,128]{1,0:T(1,128)}', space=vmem, size = 0x12000, scoped, tag = 'internal scratch']
  %s0 = inlined_call_operand.vmem [shape: f32[16,64], index: 0, kind: input, shape index: {}]
  %s1 = inlined_call_operand.vmem [shape: f32[8,32], index: 1, kind: input, shape index: {}]
  %s2 = inlined_call_operand.vmem [shape: f32[64,32], index: 2, kind: input, shape index: {}]
  %s3 = inlined_call_operand.vmem [shape: f32[7,32,128], index: 3, kind: input, shape index: {}]
  %s4 = inlined_call_operand.vmem [shape: f32[8,128], index: 4, kind: input, shape index: {}]
  %s5 = inlined_call_operand.hbm [shape: f32[1,1], index: 5, kind: output, shape index: {}]
  %s6 = sld [smem:[#allocation0]]
  $region30: #{seq2seq_loss_pallas.1} parent=0
    _
  %s8 = ssub.s32 1, %s6
  %s9 = scalar_select 0, %s8, %s6
  $region1: #{seq2seq_loss_pallas.1} parent=0
    #allocation2 [shape = 'u8[512]{0}', space=smem, size = 0x200, scoped, tag = 'output window, operand 0, single buffered']
    #allocation3 [shape = 's32[1]{0}', space=sflag, size = 0x4, scoped, tag = 'scoped memory for seq2seq_loss_pallas.1']
    %10 = vsyncpa [#allocation3], 0
    // Predicated region
    $region2: #{seq2seq_loss_pallas.1} parent=1 // pred_check
      _
    $region3: #{seq2seq_loss_pallas.1} parent=1 // pred_check_branch
      %12 = sbr.rel (0) target = $region5
    $region4: #{seq2seq_loss_pallas.1} parent=1 // pred_region
      _
    $region5: #{seq2seq_loss_pallas.1} parent=1 // pred_fallthru
      _
    // Predicated region
    $region6: #{seq2seq_loss_pallas.1} parent=1 // pred_check
      _
    $region7: #{seq2seq_loss_pallas.1} parent=1 // pred_check_branch
      %14 = sbr.rel (0) target = $region9
    $region8: #{seq2seq_loss_pallas.1} parent=1 // pred_region
      _
    $region9: #{seq2seq_loss_pallas.1} parent=1 // pred_fallthru
      _
    // Predicated region
    $region10: #{seq2seq_loss_pallas.1} parent=1 // pred_check
      _
    $region11: #{seq2seq_loss_pallas.1} parent=1 // pred_check_branch
      %16 = sbr.rel (0) target = $region13
    $region12: #{seq2seq_loss_pallas.1} parent=1 // pred_region
      _
    $region13: #{seq2seq_loss_pallas.1} parent=1 // pred_fallthru
      _
    // Predicated region
    $region14: #{seq2seq_loss_pallas.1} parent=1 // pred_check
      _
    $region15: #{seq2seq_loss_pallas.1} parent=1 // pred_check_branch
      %18 = sbr.rel (0) target = $region17
    $region16: #{seq2seq_loss_pallas.1} parent=1 // pred_region
      _
    $region17: #{seq2seq_loss_pallas.1} parent=1 // pred_fallthru
      _
    // Predicated region
    $region18: #{seq2seq_loss_pallas.1} parent=1 // pred_check
      _
    $region19: #{seq2seq_loss_pallas.1} parent=1 // pred_check_branch
      %20 = sbr.rel (0) target = $region21
    $region20: #{seq2seq_loss_pallas.1} parent=1 // pred_region
      _
    $region21: #{seq2seq_loss_pallas.1} parent=1 // pred_fallthru
      _
    %v21 = vld [vmem:[%s4] sm:$0xff]
    %v22 = vld [vmem:[%s0] sm:$0xff]
    %v23 = vld [vmem:[%s0 + $0x8] sm:$0xff]
    %v24 = vld [vmem:[%s2] sm:$0xff]
    %v25 = vld [vmem:[%s2 + $0x8] sm:$0xff]
    %v26 = vld [vmem:[%s2 + $0x10] sm:$0xff]
    %v27 = vld [vmem:[%s2 + $0x18] sm:$0xff]
    %v28 = vld [vmem:[%s2 + $0x20] sm:$0xff]
    %v29 = vld [vmem:[%s2 + $0x28] sm:$0xff]
    %v30 = vld [vmem:[%s2 + $0x30] sm:$0xff]
    %v31 = vld [vmem:[%s2 + $0x38] sm:$0xff]
    %v32 = vlaneseq
    %v33 = vshrl.u32 %v32, 7
    %v34 = vsub.s32 0, %v33
    %v35 = vrot.slane %v21, %v34
    %vm36 = vcmask 523264
    %v38 = vsel %vm36, %v22, 0
    %v41 = vsel %vm36, %v23, 0
    %43 = vmatprep.subr.mxu0 0.0
    %44 = vmatpush1.msra.mxu0 0.0
    %45 = vmatprep.subr.mxu0 0.0
    %46 = vmatpush1.msra.mxu0 0.0
    %47 = vmatprep.subr.mxu0 0.0
    %48 = vmatpush1.msra.mxu0 0.0
    %49 = vmatprep.subr.mxu0 0.0
    %50 = vmatpush1.msra.mxu0 0.0
    %51 = vmatprep.subr.mxu0 0.0
    %52 = vmatpush1.msra.mxu0 0.0
    %53 = vmatprep.subr.mxu0 0.0
    %54 = vmatpush1.msra.mxu0 0.0
    %55 = vmatprep.subr.mxu0 0.0
    %56 = vmatpush1.msra.mxu0 0.0
    %57 = vmatprep.subr.mxu0 0.0
    %58 = vmatpush1.msra.mxu0 0.0
    %59 = vmatprep.subr.mxu0 0.0
    %60 = vmatpush1.msra.mxu0 %v31
    %61 = vmatprep.subr.mxu0 0.0
    %62 = vmatpush1.msra.mxu0 %v30
    %63 = vmatprep.subr.mxu0 0.0
    %64 = vmatpush1.msra.mxu0 %v29
    %65 = vmatprep.subr.mxu0 0.0
    %66 = vmatpush1.msra.mxu0 %v28
    %67 = vmatprep.subr.mxu0 0.0
    %68 = vmatpush1.msra.mxu0 %v27
    %69 = vmatprep.subr.mxu0 0.0
    %70 = vmatpush1.msra.mxu0 %v26
    %71 = vmatprep.subr.mxu0 0.0
    %72 = vmatpush1.msra.mxu0 %v25
    %73 = vmatprep.subr.mxu0 0.0
    %74 = vmatpush1.msra.mxu0 %v24
    %75 = vmatprep.subr.mxu0 0.0
    %76 = vmatpush2.msra.mxu0 0.0
    %77 = vmatprep.subr.mxu0 0.0
    %78 = vmatpush2.msra.mxu0 0.0
    %79 = vmatprep.subr.mxu0 0.0
    %80 = vmatpush2.msra.mxu0 0.0
    %81 = vmatprep.subr.mxu0 0.0
    %82 = vmatpush2.msra.mxu0 0.0
    %83 = vmatprep.subr.mxu0 0.0
    %84 = vmatpush2.msra.mxu0 0.0
    %85 = vmatprep.subr.mxu0 0.0
    %86 = vmatpush2.msra.mxu0 0.0
    %87 = vmatprep.subr.mxu0 0.0
    %88 = vmatpush2.msra.mxu0 0.0
    %89 = vmatprep.subr.mxu0 0.0
    %90 = vmatpush2.msra.mxu0 0.0
    %91 = vmatprep.subr.mxu0 0.0
    %92 = vmatpush2.msra.mxu0 0.0
    %93 = vmatprep.subr.mxu0 0.0
    %94 = vmatpush2.msra.mxu0 0.0
    %95 = vmatprep.subr.mxu0 0.0
    %96 = vmatpush2.msra.mxu0 0.0
    %97 = vmatprep.subr.mxu0 0.0
    %98 = vmatpush2.msra.mxu0 0.0
    %99 = vmatprep.subr.mxu0 0.0
    %100 = vmatpush2.msra.mxu0 0.0
    %101 = vmatprep.subr.mxu0 0.0
    %102 = vmatpush2.msra.mxu0 0.0
    %103 = vmatprep.subr.mxu0 0.0
    %104 = vmatpush2.msra.mxu0 0.0
    %105 = vmatprep.subr.mxu0 0.0
    %106 = vmatpush2.msra.mxu0 0.0
    %107 = vmatprep.mubr.f32.mxu0 0.0
    %108 = vmatmul.mubr.f32.gmra.mxu0 %v38
    %v109 = vpop.f32.mrf.mxu0
    %v110 = vadd.f32 %v35, %v109
    %v111 = vpop.f32.mrf.mxu0
    %112 = vmatprep.mubr.f32.mxu0 0.0
    %113 = vmatmul.mubr.f32.gmra.mxu0 %v41
    %v114 = vpop.f32.mrf.mxu0
    %v115 = vadd.f32 %v35, %v114
    %v116 = vpop.f32.mrf.mxu0
    %117 = vdwg.mxu0
    %vm118 = vcmp.ge.f32.partialorder %v110, 0.0
    %vm119 = vcmp.ge.f32.partialorder %v115, 0.0
    %v120 = vmul.f32 %v110, 0.01
    %v121 = vmul.f32 %v115, 0.01
    %v122 = vsel %vm118, %v110, %v120
    %v123 = vsel %vm119, %v115, %v121
    %v124 = vld [vmem:[%s3] sm:$0xff]
    %v125 = vld [vmem:[%s3 + $0x8] sm:$0xff]
    %v126 = vld [vmem:[%s3 + $0x10] sm:$0xff]
    %v127 = vld [vmem:[%s3 + $0x18] sm:$0xff]
    %v128 = vlaneseq
    %v129 = vshrl.u32 %v128, 7
    %v130 = vsub.s32 1, %v129
    %v131 = vrot.slane %v21, %v130
    %vm132 = vcmask 261120
    %v134 = vsel %vm132, %v122, 0
    %v137 = vsel %vm132, %v123, 0
    %139 = vmatprep.subr.mxu0 0.0
    %140 = vmatpush1.msra.mxu0 0.0
    %141 = vmatprep.subr.mxu0 0.0
    %142 = vmatpush1.msra.mxu0 0.0
    %143 = vmatprep.subr.mxu0 0.0
    %144 = vmatpush1.msra.mxu0 0.0
    %145 = vmatprep.subr.mxu0 0.0
    %146 = vmatpush1.msra.mxu0 0.0
    %147 = vmatprep.subr.mxu0 0.0
    %148 = vmatpush1.msra.mxu0 0.0
    %149 = vmatprep.subr.mxu0 0.0
    %150 = vmatpush1.msra.mxu0 0.0
    %151 = vmatprep.subr.mxu0 0.0
    %152 = vmatpush1.msra.mxu0 0.0
    %153 = vmatprep.subr.mxu0 0.0
    %154 = vmatpush1.msra.mxu0 0.0
    %155 = vmatprep.subr.mxu0 0.0
    %156 = vmatpush1.msra.mxu0 0.0
    %157 = vmatprep.subr.mxu0 0.0
    %158 = vmatpush1.msra.mxu0 0.0
    %159 = vmatprep.subr.mxu0 0.0
    %160 = vmatpush1.msra.mxu0 0.0
    %161 = vmatprep.subr.mxu0 0.0
    %162 = vmatpush1.msra.mxu0 0.0
    %163 = vmatprep.subr.mxu0 0.0
    %164 = vmatpush1.msra.mxu0 %v127
    %165 = vmatprep.subr.mxu0 0.0
    %166 = vmatpush1.msra.mxu0 %v126
    %167 = vmatprep.subr.mxu0 0.0
    %168 = vmatpush1.msra.mxu0 %v125
    %169 = vmatprep.subr.mxu0 0.0
    %170 = vmatpush1.msra.mxu0 %v124
    %171 = vmatprep.subr.mxu0 0.0
    %172 = vmatpush2.msra.mxu0 0.0
    %173 = vmatprep.subr.mxu0 0.0
    %174 = vmatpush2.msra.mxu0 0.0
    %175 = vmatprep.subr.mxu0 0.0
    %176 = vmatpush2.msra.mxu0 0.0
    %177 = vmatprep.subr.mxu0 0.0
    %178 = vmatpush2.msra.mxu0 0.0
    %179 = vmatprep.subr.mxu0 0.0
    %180 = vmatpush2.msra.mxu0 0.0
    %181 = vmatprep.subr.mxu0 0.0
    %182 = vmatpush2.msra.mxu0 0.0
    %183 = vmatprep.subr.mxu0 0.0
    %184 = vmatpush2.msra.mxu0 0.0
    %185 = vmatprep.subr.mxu0 0.0
    %186 = vmatpush2.msra.mxu0 0.0
    %187 = vmatprep.subr.mxu0 0.0
    %188 = vmatpush2.msra.mxu0 0.0
    %189 = vmatprep.subr.mxu0 0.0
    %190 = vmatpush2.msra.mxu0 0.0
    %191 = vmatprep.subr.mxu0 0.0
    %192 = vmatpush2.msra.mxu0 0.0
    %193 = vmatprep.subr.mxu0 0.0
    %194 = vmatpush2.msra.mxu0 0.0
    %195 = vmatprep.subr.mxu0 0.0
    %196 = vmatpush2.msra.mxu0 0.0
    %197 = vmatprep.subr.mxu0 0.0
    %198 = vmatpush2.msra.mxu0 0.0
    %199 = vmatprep.subr.mxu0 0.0
    %200 = vmatpush2.msra.mxu0 0.0
    %201 = vmatprep.subr.mxu0 0.0
    %202 = vmatpush2.msra.mxu0 0.0
    %203 = vmatprep.mubr.f32.mxu0 0.0
    %204 = vmatmul.mubr.f32.gmra.mxu0 %v134
    %v205 = vpop.f32.mrf.mxu0
    %v206 = vadd.f32 %v131, %v205
    %v207 = vpop.f32.mrf.mxu0
    %208 = vmatprep.mubr.f32.mxu0 0.0
    %209 = vmatmul.mubr.f32.gmra.mxu0 %v137
    %v210 = vpop.f32.mrf.mxu0
    %v211 = vadd.f32 %v131, %v210
    %v212 = vpop.f32.mrf.mxu0
    %213 = vdwg.mxu0
    %s214 = scalar_lea.vmem %s3, 32
    %v215 = vld [vmem:[%s214] sm:$0xff]
    %v216 = vld [vmem:[%s214 + $0x8] sm:$0xff]
    %v217 = vld [vmem:[%s214 + $0x10] sm:$0xff]
    %v218 = vld [vmem:[%s214 + $0x18] sm:$0xff]
    %v220 = vsel %vm132, 0.0, 0
    %222 = vmatprep.subr.mxu0 0.0
    %223 = vmatpush1.msra.mxu0 0.0
    %224 = vmatprep.subr.mxu0 0.0
    %225 = vmatpush1.msra.mxu0 0.0
    %226 = vmatprep.subr.mxu0 0.0
    %227 = vmatpush1.msra.mxu0 0.0
    %228 = vmatprep.subr.mxu0 0.0
    %229 = vmatpush1.msra.mxu0 0.0
    %230 = vmatprep.subr.mxu0 0.0
    %231 = vmatpush1.msra.mxu0 0.0
    %232 = vmatprep.subr.mxu0 0.0
    %233 = vmatpush1.msra.mxu0 0.0
    %234 = vmatprep.subr.mxu0 0.0
    %235 = vmatpush1.msra.mxu0 0.0
    %236 = vmatprep.subr.mxu0 0.0
    %237 = vmatpush1.msra.mxu0 0.0
    %238 = vmatprep.subr.mxu0 0.0
    %239 = vmatpush1.msra.mxu0 0.0
    %240 = vmatprep.subr.mxu0 0.0
    %241 = vmatpush1.msra.mxu0 0.0
    %242 = vmatprep.subr.mxu0 0.0
    %243 = vmatpush1.msra.mxu0 0.0
    %244 = vmatprep.subr.mxu0 0.0
    %245 = vmatpush1.msra.mxu0 0.0
    %246 = vmatprep.subr.mxu0 0.0
    %247 = vmatpush1.msra.mxu0 %v218
    %248 = vmatprep.subr.mxu0 0.0
    %249 = vmatpush1.msra.mxu0 %v217
    %250 = vmatprep.subr.mxu0 0.0
    %251 = vmatpush1.msra.mxu0 %v216
    %252 = vmatprep.subr.mxu0 0.0
    %253 = vmatpush1.msra.mxu0 %v215
    %254 = vmatprep.subr.mxu0 0.0
    %255 = vmatpush2.msra.mxu0 0.0
    %256 = vmatprep.subr.mxu0 0.0
    %257 = vmatpush2.msra.mxu0 0.0
    %258 = vmatprep.subr.mxu0 0.0
    %259 = vmatpush2.msra.mxu0 0.0
    %260 = vmatprep.subr.mxu0 0.0
    %261 = vmatpush2.msra.mxu0 0.0
    %262 = vmatprep.subr.mxu0 0.0
    %263 = vmatpush2.msra.mxu0 0.0
    %264 = vmatprep.subr.mxu0 0.0
    %265 = vmatpush2.msra.mxu0 0.0
    %266 = vmatprep.subr.mxu0 0.0
    %267 = vmatpush2.msra.mxu0 0.0
    %268 = vmatprep.subr.mxu0 0.0
    %269 = vmatpush2.msra.mxu0 0.0
    %270 = vmatprep.subr.mxu0 0.0
    %271 = vmatpush2.msra.mxu0 0.0
    %272 = vmatprep.subr.mxu0 0.0
    %273 = vmatpush2.msra.mxu0 0.0
    %274 = vmatprep.subr.mxu0 0.0
    %275 = vmatpush2.msra.mxu0 0.0
    %276 = vmatprep.subr.mxu0 0.0
    %277 = vmatpush2.msra.mxu0 0.0
    %278 = vmatprep.subr.mxu0 0.0
    %279 = vmatpush2.msra.mxu0 0.0
    %280 = vmatprep.subr.mxu0 0.0
    %281 = vmatpush2.msra.mxu0 0.0
    %282 = vmatprep.subr.mxu0 0.0
    %283 = vmatpush2.msra.mxu0 0.0
    %284 = vmatprep.subr.mxu0 0.0
    %285 = vmatpush2.msra.mxu0 0.0
    %286 = vmatprep.mubr.f32.mxu0 0.0
    %287 = vmatmul.mubr.f32.gmra.mxu0 %v220
    %v288 = vpop.f32.mrf.mxu0
    %v289 = vadd.f32 0.0, %v288
    %v290 = vpop.f32.mrf.mxu0
    %291 = vdwg.mxu0
    %v292 = vadd.f32 %v206, %v289
    %v293 = vxor.u32 %v292, 2147483648
    %v294 = vmul.f32 %v293, 1.442695
    %v295 = vpow.pop %v294
    %v296 = vadd.f32 %v295, 1.0
    %v297 = vrcp.pop %v296
    %v298 = vmul.f32 1.0, %v297
    %v299 = vlaneseq
    %v300 = vshrl.u32 %v299, 7
    %v301 = vsub.s32 2, %v300
    %v302 = vrot.slane %v21, %v301
    %304 = vrot.lane.b32.xlu0 %v302, 64
    %v305 = vpop.permute.xlu0 %304
    %v307 = vadd.f32 %v289, %v305
    %309 = vrot.lane.b32.xlu0 %v307, 64
    %v310 = vpop.permute.xlu0 %309
    %v312 = vmul.f32 %v298, %v310
    %314 = vrot.lane.b32.xlu0 %v312, 64
    %v315 = vpop.permute.xlu0 %314
    %v317 = vadd.f32 %v206, %v315
    %v318 = vtanh.pop %v317
    %v319 = vsub.f32 1.0, %v298
    %321 = vrot.lane.b32.xlu0 %v318, 96
    %v322 = vpop.permute.xlu0 %321
    %v324 = vmul.f32 %v319, %v322
    %v325 = vmul.f32 %v298, 0.0
    %v326 = vadd.f32 %v324, %v325
    %328 = vrot.lane.b32.xlu0 %v326, 96
    %v329 = vpop.permute.xlu0 %328
    %v330 = vsel %vm132, %v329, 0
    %332 = vmatprep.subr.mxu0 0.0
    %333 = vmatpush1.msra.mxu0 0.0
    %334 = vmatprep.subr.mxu0 0.0
    %335 = vmatpush1.msra.mxu0 0.0
    %336 = vmatprep.subr.mxu0 0.0
    %337 = vmatpush1.msra.mxu0 0.0
    %338 = vmatprep.subr.mxu0 0.0
    %339 = vmatpush1.msra.mxu0 0.0
    %340 = vmatprep.subr.mxu0 0.0
    %341 = vmatpush1.msra.mxu0 0.0
    %342 = vmatprep.subr.mxu0 0.0
    %343 = vmatpush1.msra.mxu0 0.0
    %344 = vmatprep.subr.mxu0 0.0
    %345 = vmatpush1.msra.mxu0 0.0
    %346 = vmatprep.subr.mxu0 0.0
    %347 = vmatpush1.msra.mxu0 0.0
    %348 = vmatprep.subr.mxu0 0.0
    %349 = vmatpush1.msra.mxu0 0.0
    %350 = vmatprep.subr.mxu0 0.0
    %351 = vmatpush1.msra.mxu0 0.0
    %352 = vmatprep.subr.mxu0 0.0
    %353 = vmatpush1.msra.mxu0 0.0
    %354 = vmatprep.subr.mxu0 0.0
    %355 = vmatpush1.msra.mxu0 0.0
    %356 = vmatprep.subr.mxu0 0.0
    %357 = vmatpush1.msra.mxu0 %v218
    %358 = vmatprep.subr.mxu0 0.0
    %359 = vmatpush1.msra.mxu0 %v217
    %360 = vmatprep.subr.mxu0 0.0
    %361 = vmatpush1.msra.mxu0 %v216
    %362 = vmatprep.subr.mxu0 0.0
    %363 = vmatpush1.msra.mxu0 %v215
    %364 = vmatprep.subr.mxu0 0.0
    %365 = vmatpush2.msra.mxu0 0.0
    %366 = vmatprep.subr.mxu0 0.0
    %367 = vmatpush2.msra.mxu0 0.0
    %368 = vmatprep.subr.mxu0 0.0
    %369 = vmatpush2.msra.mxu0 0.0
    %370 = vmatprep.subr.mxu0 0.0
    %371 = vmatpush2.msra.mxu0 0.0
    %372 = vmatprep.subr.mxu0 0.0
    %373 = vmatpush2.msra.mxu0 0.0
    %374 = vmatprep.subr.mxu0 0.0
    %375 = vmatpush2.msra.mxu0 0.0
    %376 = vmatprep.subr.mxu0 0.0
    %377 = vmatpush2.msra.mxu0 0.0
    %378 = vmatprep.subr.mxu0 0.0
    %379 = vmatpush2.msra.mxu0 0.0
    %380 = vmatprep.subr.mxu0 0.0
    %381 = vmatpush2.msra.mxu0 0.0
    %382 = vmatprep.subr.mxu0 0.0
    %383 = vmatpush2.msra.mxu0 0.0
    %384 = vmatprep.subr.mxu0 0.0
    %385 = vmatpush2.msra.mxu0 0.0
    %386 = vmatprep.subr.mxu0 0.0
    %387 = vmatpush2.msra.mxu0 0.0
    %388 = vmatprep.subr.mxu0 0.0
    %389 = vmatpush2.msra.mxu0 0.0
    %390 = vmatprep.subr.mxu0 0.0
    %391 = vmatpush2.msra.mxu0 0.0
    %392 = vmatprep.subr.mxu0 0.0
    %393 = vmatpush2.msra.mxu0 0.0
    %394 = vmatprep.subr.mxu0 0.0
    %395 = vmatpush2.msra.mxu0 0.0
    %396 = vmatprep.mubr.f32.mxu0 0.0
    %397 = vmatmul.mubr.f32.gmra.mxu0 %v330
    %v398 = vpop.f32.mrf.mxu0
    %v399 = vadd.f32 0.0, %v398
    %v400 = vpop.f32.mrf.mxu0
    %401 = vdwg.mxu0
    %v403 = vrot.slane %v399, 6
    %v405 = vadd.f32 %v206, %v403
    %v406 = vxor.u32 %v405, 2147483648
    %v407 = vmul.f32 %v406, 1.442695
    %v408 = vpow.pop %v407
    %v409 = vadd.f32 %v408, 1.0
    %v410 = vrcp.pop %v409
    %v411 = vmul.f32 1.0, %v410
    %v412 = vadd.f32 %v399, %v305
    %v414 = vrot.slane %v412, 6
    %415 = vrot.lane.b32.xlu0 %v414, 64
    %v416 = vpop.permute.xlu0 %415
    %v418 = vmul.f32 %v411, %v416
    %420 = vrot.lane.b32.xlu0 %v418, 64
    %v421 = vpop.permute.xlu0 %420
    %v423 = vadd.f32 %v206, %v421
    %v424 = vtanh.pop %v423
    %v425 = vsub.f32 1.0, %v411
    %427 = vrot.lane.b32.xlu0 %v424, 96
    %v428 = vpop.permute.xlu0 %427
    %v430 = vmul.f32 %v425, %v428
    %v431 = vrot.slane %v326, 6
    %v433 = vmul.f32 %v411, %v431
    %v434 = vadd.f32 %v430, %v433
    %v436 = vrot.slane %v434, 2
    %437 = vrot.lane.b32.xlu0 %v436, 96
    %v438 = vpop.permute.xlu0 %437
    %v439 = vsel %vm132, %v438, 0
    %441 = vmatprep.subr.mxu0 0.0
    %442 = vmatpush1.msra.mxu0 0.0
    %443 = vmatprep.subr.mxu0 0.0
    %444 = vmatpush1.msra.mxu0 0.0
    %445 = vmatprep.subr.mxu0 0.0
    %446 = vmatpush1.msra.mxu0 0.0
    %447 = vmatprep.subr.mxu0 0.0
    %448 = vmatpush1.msra.mxu0 0.0
    %449 = vmatprep.subr.mxu0 0.0
    %450 = vmatpush1.msra.mxu0 0.0
    %451 = vmatprep.subr.mxu0 0.0
    %452 = vmatpush1.msra.mxu0 0.0
    %453 = vmatprep.subr.mxu0 0.0
    %454 = vmatpush1.msra.mxu0 0.0
    %455 = vmatprep.subr.mxu0 0.0
    %456 = vmatpush1.msra.mxu0 0.0
    %457 = vmatprep.subr.mxu0 0.0
    %458 = vmatpush1.msra.mxu0 0.0
    %459 = vmatprep.subr.mxu0 0.0
    %460 = vmatpush1.msra.mxu0 0.0
    %461 = vmatprep.subr.mxu0 0.0
    %462 = vmatpush1.msra.mxu0 0.0
    %463 = vmatprep.subr.mxu0 0.0
    %464 = vmatpush1.msra.mxu0 0.0
    %465 = vmatprep.subr.mxu0 0.0
    %466 = vmatpush1.msra.mxu0 %v218
    %467 = vmatprep.subr.mxu0 0.0
    %468 = vmatpush1.msra.mxu0 %v217
    %469 = vmatprep.subr.mxu0 0.0
    %470 = vmatpush1.msra.mxu0 %v216
    %471 = vmatprep.subr.mxu0 0.0
    %472 = vmatpush1.msra.mxu0 %v215
    %473 = vmatprep.subr.mxu0 0.0
    %474 = vmatpush2.msra.mxu0 0.0
    %475 = vmatprep.subr.mxu0 0.0
    %476 = vmatpush2.msra.mxu0 0.0
    %477 = vmatprep.subr.mxu0 0.0
    %478 = vmatpush2.msra.mxu0 0.0
    %479 = vmatprep.subr.mxu0 0.0
    %480 = vmatpush2.msra.mxu0 0.0
    %481 = vmatprep.subr.mxu0 0.0
    %482 = vmatpush2.msra.mxu0 0.0
    %483 = vmatprep.subr.mxu0 0.0
    %484 = vmatpush2.msra.mxu0 0.0
    %485 = vmatprep.subr.mxu0 0.0
    %486 = vmatpush2.msra.mxu0 0.0
    %487 = vmatprep.subr.mxu0 0.0
    %488 = vmatpush2.msra.mxu0 0.0
    %489 = vmatprep.subr.mxu0 0.0
    %490 = vmatpush2.msra.mxu0 0.0
    %491 = vmatprep.subr.mxu0 0.0
    %492 = vmatpush2.msra.mxu0 0.0
    %493 = vmatprep.subr.mxu0 0.0
    %494 = vmatpush2.msra.mxu0 0.0
    %495 = vmatprep.subr.mxu0 0.0
    %496 = vmatpush2.msra.mxu0 0.0
    %497 = vmatprep.subr.mxu0 0.0
    %498 = vmatpush2.msra.mxu0 0.0
    %499 = vmatprep.subr.mxu0 0.0
    %500 = vmatpush2.msra.mxu0 0.0
    %501 = vmatprep.subr.mxu0 0.0
    %502 = vmatpush2.msra.mxu0 0.0
    %503 = vmatprep.subr.mxu0 0.0
    %504 = vmatpush2.msra.mxu0 0.0
    %505 = vmatprep.mubr.f32.mxu0 0.0
    %506 = vmatmul.mubr.f32.gmra.mxu0 %v439
    %v507 = vpop.f32.mrf.mxu0
    %v508 = vadd.f32 0.0, %v507
    %v509 = vpop.f32.mrf.mxu0
    %510 = vdwg.mxu0
    %v512 = vrot.slane %v508, 4
    %v514 = vadd.f32 %v206, %v512
    %v515 = vxor.u32 %v514, 2147483648
    %v516 = vmul.f32 %v515, 1.442695
    %v517 = vpow.pop %v516
    %v518 = vadd.f32 %v517, 1.0
    %v519 = vrcp.pop %v518
    %v520 = vmul.f32 1.0, %v519
    %v521 = vadd.f32 %v508, %v305
    %v523 = vrot.slane %v521, 4
    %524 = vrot.lane.b32.xlu0 %v523, 64
    %v525 = vpop.permute.xlu0 %524
    %v527 = vmul.f32 %v520, %v525
    %529 = vrot.lane.b32.xlu0 %v527, 64
    %v530 = vpop.permute.xlu0 %529
    %v532 = vadd.f32 %v206, %v530
    %v533 = vtanh.pop %v532
    %v534 = vsub.f32 1.0, %v520
    %536 = vrot.lane.b32.xlu0 %v533, 96
    %v537 = vpop.permute.xlu0 %536
    %v539 = vmul.f32 %v534, %v537
    %v540 = vrot.slane %v434, 6
    %v542 = vmul.f32 %v520, %v540
    %v543 = vadd.f32 %v539, %v542
    %v545 = vrot.slane %v543, 4
    %546 = vrot.lane.b32.xlu0 %v545, 96
    %v547 = vpop.permute.xlu0 %546
    %v548 = vsel %vm132, %v547, 0
    %550 = vmatprep.subr.mxu0 0.0
    %551 = vmatpush1.msra.mxu0 0.0
    %552 = vmatprep.subr.mxu0 0.0
    %553 = vmatpush1.msra.mxu0 0.0
    %554 = vmatprep.subr.mxu0 0.0
    %555 = vmatpush1.msra.mxu0 0.0
    %556 = vmatprep.subr.mxu0 0.0
    %557 = vmatpush1.msra.mxu0 0.0
    %558 = vmatprep.subr.mxu0 0.0
    %559 = vmatpush1.msra.mxu0 0.0
    %560 = vmatprep.subr.mxu0 0.0
    %561 = vmatpush1.msra.mxu0 0.0
    %562 = vmatprep.subr.mxu0 0.0
    %563 = vmatpush1.msra.mxu0 0.0
    %564 = vmatprep.subr.mxu0 0.0
    %565 = vmatpush1.msra.mxu0 0.0
    %566 = vmatprep.subr.mxu0 0.0
    %567 = vmatpush1.msra.mxu0 0.0
    %568 = vmatprep.subr.mxu0 0.0
    %569 = vmatpush1.msra.mxu0 0.0
    %570 = vmatprep.subr.mxu0 0.0
    %571 = vmatpush1.msra.mxu0 0.0
    %572 = vmatprep.subr.mxu0 0.0
    %573 = vmatpush1.msra.mxu0 0.0
    %574 = vmatprep.subr.mxu0 0.0
    %575 = vmatpush1.msra.mxu0 %v218
    %576 = vmatprep.subr.mxu0 0.0
    %577 = vmatpush1.msra.mxu0 %v217
    %578 = vmatprep.subr.mxu0 0.0
    %579 = vmatpush1.msra.mxu0 %v216
    %580 = vmatprep.subr.mxu0 0.0
    %581 = vmatpush1.msra.mxu0 %v215
    %582 = vmatprep.subr.mxu0 0.0
    %583 = vmatpush2.msra.mxu0 0.0
    %584 = vmatprep.subr.mxu0 0.0
    %585 = vmatpush2.msra.mxu0 0.0
    %586 = vmatprep.subr.mxu0 0.0
    %587 = vmatpush2.msra.mxu0 0.0
    %588 = vmatprep.subr.mxu0 0.0
    %589 = vmatpush2.msra.mxu0 0.0
    %590 = vmatprep.subr.mxu0 0.0
    %591 = vmatpush2.msra.mxu0 0.0
    %592 = vmatprep.subr.mxu0 0.0
    %593 = vmatpush2.msra.mxu0 0.0
    %594 = vmatprep.subr.mxu0 0.0
    %595 = vmatpush2.msra.mxu0 0.0
    %596 = vmatprep.subr.mxu0 0.0
    %597 = vmatpush2.msra.mxu0 0.0
    %598 = vmatprep.subr.mxu0 0.0
    %599 = vmatpush2.msra.mxu0 0.0
    %600 = vmatprep.subr.mxu0 0.0
    %601 = vmatpush2.msra.mxu0 0.0
    %602 = vmatprep.subr.mxu0 0.0
    %603 = vmatpush2.msra.mxu0 0.0
    %604 = vmatprep.subr.mxu0 0.0
    %605 = vmatpush2.msra.mxu0 0.0
    %606 = vmatprep.subr.mxu0 0.0
    %607 = vmatpush2.msra.mxu0 0.0
    %608 = vmatprep.subr.mxu0 0.0
    %609 = vmatpush2.msra.mxu0 0.0
    %610 = vmatprep.subr.mxu0 0.0
    %611 = vmatpush2.msra.mxu0 0.0
    %612 = vmatprep.subr.mxu0 0.0
    %613 = vmatpush2.msra.mxu0 0.0
    %614 = vmatprep.mubr.f32.mxu0 0.0
    %615 = vmatmul.mubr.f32.gmra.mxu0 %v548
    %v616 = vpop.f32.mrf.mxu0
    %v617 = vadd.f32 0.0, %v616
    %v618 = vpop.f32.mrf.mxu0
    %619 = vdwg.mxu0
    %v621 = vrot.slane %v617, 2
    %v623 = vadd.f32 %v206, %v621
    %v624 = vxor.u32 %v623, 2147483648
    %v625 = vmul.f32 %v624, 1.442695
    %v626 = vpow.pop %v625
    %v627 = vadd.f32 %v626, 1.0
    %v628 = vrcp.pop %v627
    %v629 = vmul.f32 1.0, %v628
    %v630 = vadd.f32 %v617, %v305
    %v632 = vrot.slane %v630, 2
    %633 = vrot.lane.b32.xlu0 %v632, 64
    %v634 = vpop.permute.xlu0 %633
    %v636 = vmul.f32 %v629, %v634
    %638 = vrot.lane.b32.xlu0 %v636, 64
    %v639 = vpop.permute.xlu0 %638
    %v641 = vadd.f32 %v206, %v639
    %v642 = vtanh.pop %v641
    %v643 = vsub.f32 1.0, %v629
    %645 = vrot.lane.b32.xlu0 %v642, 96
    %v646 = vpop.permute.xlu0 %645
    %v648 = vmul.f32 %v643, %v646
    %v649 = vrot.slane %v543, 6
    %v651 = vmul.f32 %v629, %v649
    %v652 = vadd.f32 %v648, %v651
    %v654 = vrot.slane %v652, 6
    %655 = vrot.lane.b32.xlu0 %v654, 96
    %v656 = vpop.permute.xlu0 %655
    %v657 = vsel %vm132, %v656, 0
    %659 = vmatprep.subr.mxu0 0.0
    %660 = vmatpush1.msra.mxu0 0.0
    %661 = vmatprep.subr.mxu0 0.0
    %662 = vmatpush1.msra.mxu0 0.0
    %663 = vmatprep.subr.mxu0 0.0
    %664 = vmatpush1.msra.mxu0 0.0
    %665 = vmatprep.subr.mxu0 0.0
    %666 = vmatpush1.msra.mxu0 0.0
    %667 = vmatprep.subr.mxu0 0.0
    %668 = vmatpush1.msra.mxu0 0.0
    %669 = vmatprep.subr.mxu0 0.0
    %670 = vmatpush1.msra.mxu0 0.0
    %671 = vmatprep.subr.mxu0 0.0
    %672 = vmatpush1.msra.mxu0 0.0
    %673 = vmatprep.subr.mxu0 0.0
    %674 = vmatpush1.msra.mxu0 0.0
    %675 = vmatprep.subr.mxu0 0.0
    %676 = vmatpush1.msra.mxu0 0.0
    %677 = vmatprep.subr.mxu0 0.0
    %678 = vmatpush1.msra.mxu0 0.0
    %679 = vmatprep.subr.mxu0 0.0
    %680 = vmatpush1.msra.mxu0 0.0
    %681 = vmatprep.subr.mxu0 0.0
    %682 = vmatpush1.msra.mxu0 0.0
    %683 = vmatprep.subr.mxu0 0.0
    %684 = vmatpush1.msra.mxu0 %v218
    %685 = vmatprep.subr.mxu0 0.0
    %686 = vmatpush1.msra.mxu0 %v217
    %687 = vmatprep.subr.mxu0 0.0
    %688 = vmatpush1.msra.mxu0 %v216
    %689 = vmatprep.subr.mxu0 0.0
    %690 = vmatpush1.msra.mxu0 %v215
    %691 = vmatprep.subr.mxu0 0.0
    %692 = vmatpush2.msra.mxu0 0.0
    %693 = vmatprep.subr.mxu0 0.0
    %694 = vmatpush2.msra.mxu0 0.0
    %695 = vmatprep.subr.mxu0 0.0
    %696 = vmatpush2.msra.mxu0 0.0
    %697 = vmatprep.subr.mxu0 0.0
    %698 = vmatpush2.msra.mxu0 0.0
    %699 = vmatprep.subr.mxu0 0.0
    %700 = vmatpush2.msra.mxu0 0.0
    %701 = vmatprep.subr.mxu0 0.0
    %702 = vmatpush2.msra.mxu0 0.0
    %703 = vmatprep.subr.mxu0 0.0
    %704 = vmatpush2.msra.mxu0 0.0
    %705 = vmatprep.subr.mxu0 0.0
    %706 = vmatpush2.msra.mxu0 0.0
    %707 = vmatprep.subr.mxu0 0.0
    %708 = vmatpush2.msra.mxu0 0.0
    %709 = vmatprep.subr.mxu0 0.0
    %710 = vmatpush2.msra.mxu0 0.0
    %711 = vmatprep.subr.mxu0 0.0
    %712 = vmatpush2.msra.mxu0 0.0
    %713 = vmatprep.subr.mxu0 0.0
    %714 = vmatpush2.msra.mxu0 0.0
    %715 = vmatprep.subr.mxu0 0.0
    %716 = vmatpush2.msra.mxu0 0.0
    %717 = vmatprep.subr.mxu0 0.0
    %718 = vmatpush2.msra.mxu0 0.0
    %719 = vmatprep.subr.mxu0 0.0
    %720 = vmatpush2.msra.mxu0 0.0
    %721 = vmatprep.subr.mxu0 0.0
    %722 = vmatpush2.msra.mxu0 0.0
    %723 = vmatprep.mubr.f32.mxu0 0.0
    %724 = vmatmul.mubr.f32.gmra.mxu0 %v657
    %v725 = vpop.f32.mrf.mxu0
    %v726 = vadd.f32 0.0, %v725
    %v727 = vpop.f32.mrf.mxu0
    %728 = vdwg.mxu0
    %v729 = vadd.f32 %v211, %v726
    %v730 = vxor.u32 %v729, 2147483648
    %v731 = vmul.f32 %v730, 1.442695
    %v732 = vpow.pop %v731
    %v733 = vadd.f32 %v732, 1.0
    %v734 = vrcp.pop %v733
    %v735 = vmul.f32 1.0, %v734
    %v736 = vadd.f32 %v726, %v305
    %738 = vrot.lane.b32.xlu0 %v736, 64
    %v739 = vpop.permute.xlu0 %738
    %v741 = vmul.f32 %v735, %v739
    %743 = vrot.lane.b32.xlu0 %v741, 64
    %v744 = vpop.permute.xlu0 %743
    %v746 = vadd.f32 %v211, %v744
    %v747 = vtanh.pop %v746
    %v748 = vsub.f32 1.0, %v735
    %750 = vrot.lane.b32.xlu0 %v747, 96
    %v751 = vpop.permute.xlu0 %750
    %v753 = vmul.f32 %v748, %v751
    %v755 = vmul.f32 %v735, %v654
    %v756 = vadd.f32 %v753, %v755
    %758 = vrot.lane.b32.xlu0 %v756, 96
    %v759 = vpop.permute.xlu0 %758
    %v760 = vsel %vm132, %v759, 0
    %762 = vmatprep.subr.mxu0 0.0
    %763 = vmatpush1.msra.mxu0 0.0
    %764 = vmatprep.subr.mxu0 0.0
    %765 = vmatpush1.msra.mxu0 0.0
    %766 = vmatprep.subr.mxu0 0.0
    %767 = vmatpush1.msra.mxu0 0.0
    %768 = vmatprep.subr.mxu0 0.0
    %769 = vmatpush1.msra.mxu0 0.0
    %770 = vmatprep.subr.mxu0 0.0
    %771 = vmatpush1.msra.mxu0 0.0
    %772 = vmatprep.subr.mxu0 0.0
    %773 = vmatpush1.msra.mxu0 0.0
    %774 = vmatprep.subr.mxu0 0.0
    %775 = vmatpush1.msra.mxu0 0.0
    %776 = vmatprep.subr.mxu0 0.0
    %777 = vmatpush1.msra.mxu0 0.0
    %778 = vmatprep.subr.mxu0 0.0
    %779 = vmatpush1.msra.mxu0 0.0
    %780 = vmatprep.subr.mxu0 0.0
    %781 = vmatpush1.msra.mxu0 0.0
    %782 = vmatprep.subr.mxu0 0.0
    %783 = vmatpush1.msra.mxu0 0.0
    %784 = vmatprep.subr.mxu0 0.0
    %785 = vmatpush1.msra.mxu0 0.0
    %786 = vmatprep.subr.mxu0 0.0
    %787 = vmatpush1.msra.mxu0 %v218
    %788 = vmatprep.subr.mxu0 0.0
    %789 = vmatpush1.msra.mxu0 %v217
    %790 = vmatprep.subr.mxu0 0.0
    %791 = vmatpush1.msra.mxu0 %v216
    %792 = vmatprep.subr.mxu0 0.0
    %793 = vmatpush1.msra.mxu0 %v215
    %794 = vmatprep.subr.mxu0 0.0
    %795 = vmatpush2.msra.mxu0 0.0
    %796 = vmatprep.subr.mxu0 0.0
    %797 = vmatpush2.msra.mxu0 0.0
    %798 = vmatprep.subr.mxu0 0.0
    %799 = vmatpush2.msra.mxu0 0.0
    %800 = vmatprep.subr.mxu0 0.0
    %801 = vmatpush2.msra.mxu0 0.0
    %802 = vmatprep.subr.mxu0 0.0
    %803 = vmatpush2.msra.mxu0 0.0
    %804 = vmatprep.subr.mxu0 0.0
    %805 = vmatpush2.msra.mxu0 0.0
    %806 = vmatprep.subr.mxu0 0.0
    %807 = vmatpush2.msra.mxu0 0.0
    %808 = vmatprep.subr.mxu0 0.0
    %809 = vmatpush2.msra.mxu0 0.0
    %810 = vmatprep.subr.mxu0 0.0
    %811 = vmatpush2.msra.mxu0 0.0
    %812 = vmatprep.subr.mxu0 0.0
    %813 = vmatpush2.msra.mxu0 0.0
    %814 = vmatprep.subr.mxu0 0.0
    %815 = vmatpush2.msra.mxu0 0.0
    %816 = vmatprep.subr.mxu0 0.0
    %817 = vmatpush2.msra.mxu0 0.0
    %818 = vmatprep.subr.mxu0 0.0
    %819 = vmatpush2.msra.mxu0 0.0
    %820 = vmatprep.subr.mxu0 0.0
    %821 = vmatpush2.msra.mxu0 0.0
    %822 = vmatprep.subr.mxu0 0.0
    %823 = vmatpush2.msra.mxu0 0.0
    %824 = vmatprep.subr.mxu0 0.0
    %825 = vmatpush2.msra.mxu0 0.0
    %826 = vmatprep.mubr.f32.mxu0 0.0
    %827 = vmatmul.mubr.f32.gmra.mxu0 %v760
    %v828 = vpop.f32.mrf.mxu0
    %v829 = vadd.f32 0.0, %v828
    %v830 = vpop.f32.mrf.mxu0
    %831 = vdwg.mxu0
    %v833 = vrot.slane %v829, 6
    %v835 = vadd.f32 %v211, %v833
    %v836 = vxor.u32 %v835, 2147483648
    %v837 = vmul.f32 %v836, 1.442695
    %v838 = vpow.pop %v837
    %v839 = vadd.f32 %v838, 1.0
    %v840 = vrcp.pop %v839
    %v841 = vmul.f32 1.0, %v840
    %v842 = vadd.f32 %v829, %v305
    %v844 = vrot.slane %v842, 6
    %845 = vrot.lane.b32.xlu0 %v844, 64
    %v846 = vpop.permute.xlu0 %845
    %v848 = vmul.f32 %v841, %v846
    %850 = vrot.lane.b32.xlu0 %v848, 64
    %v851 = vpop.permute.xlu0 %850
    %v853 = vadd.f32 %v211, %v851
    %v854 = vtanh.pop %v853
    %v855 = vsub.f32 1.0, %v841
    %857 = vrot.lane.b32.xlu0 %v854, 96
    %v858 = vpop.permute.xlu0 %857
    %v860 = vmul.f32 %v855, %v858
    %v861 = vrot.slane %v756, 6
    %v863 = vmul.f32 %v841, %v861
    %v864 = vadd.f32 %v860, %v863
    %v866 = vrot.slane %v864, 2
    %867 = vrot.lane.b32.xlu0 %v866, 96
    %v868 = vpop.permute.xlu0 %867
    %v869 = vsel %vm132, %v868, 0
    %871 = vmatprep.subr.mxu0 0.0
    %872 = vmatpush1.msra.mxu0 0.0
    %873 = vmatprep.subr.mxu0 0.0
    %874 = vmatpush1.msra.mxu0 0.0
    %875 = vmatprep.subr.mxu0 0.0
    %876 = vmatpush1.msra.mxu0 0.0
    %877 = vmatprep.subr.mxu0 0.0
    %878 = vmatpush1.msra.mxu0 0.0
    %879 = vmatprep.subr.mxu0 0.0
    %880 = vmatpush1.msra.mxu0 0.0
    %881 = vmatprep.subr.mxu0 0.0
    %882 = vmatpush1.msra.mxu0 0.0
    %883 = vmatprep.subr.mxu0 0.0
    %884 = vmatpush1.msra.mxu0 0.0
    %885 = vmatprep.subr.mxu0 0.0
    %886 = vmatpush1.msra.mxu0 0.0
    %887 = vmatprep.subr.mxu0 0.0
    %888 = vmatpush1.msra.mxu0 0.0
    %889 = vmatprep.subr.mxu0 0.0
    %890 = vmatpush1.msra.mxu0 0.0
    %891 = vmatprep.subr.mxu0 0.0
    %892 = vmatpush1.msra.mxu0 0.0
    %893 = vmatprep.subr.mxu0 0.0
    %894 = vmatpush1.msra.mxu0 0.0
    %895 = vmatprep.subr.mxu0 0.0
    %896 = vmatpush1.msra.mxu0 %v218
    %897 = vmatprep.subr.mxu0 0.0
    %898 = vmatpush1.msra.mxu0 %v217
    %899 = vmatprep.subr.mxu0 0.0
    %900 = vmatpush1.msra.mxu0 %v216
    %901 = vmatprep.subr.mxu0 0.0
    %902 = vmatpush1.msra.mxu0 %v215
    %903 = vmatprep.subr.mxu0 0.0
    %904 = vmatpush2.msra.mxu0 0.0
    %905 = vmatprep.subr.mxu0 0.0
    %906 = vmatpush2.msra.mxu0 0.0
    %907 = vmatprep.subr.mxu0 0.0
    %908 = vmatpush2.msra.mxu0 0.0
    %909 = vmatprep.subr.mxu0 0.0
    %910 = vmatpush2.msra.mxu0 0.0
    %911 = vmatprep.subr.mxu0 0.0
    %912 = vmatpush2.msra.mxu0 0.0
    %913 = vmatprep.subr.mxu0 0.0
    %914 = vmatpush2.msra.mxu0 0.0
    %915 = vmatprep.subr.mxu0 0.0
    %916 = vmatpush2.msra.mxu0 0.0
    %917 = vmatprep.subr.mxu0 0.0
    %918 = vmatpush2.msra.mxu0 0.0
    %919 = vmatprep.subr.mxu0 0.0
    %920 = vmatpush2.msra.mxu0 0.0
    %921 = vmatprep.subr.mxu0 0.0
    %922 = vmatpush2.msra.mxu0 0.0
    %923 = vmatprep.subr.mxu0 0.0
    %924 = vmatpush2.msra.mxu0 0.0
    %925 = vmatprep.subr.mxu0 0.0
    %926 = vmatpush2.msra.mxu0 0.0
    %927 = vmatprep.subr.mxu0 0.0
    %928 = vmatpush2.msra.mxu0 0.0
    %929 = vmatprep.subr.mxu0 0.0
    %930 = vmatpush2.msra.mxu0 0.0
    %931 = vmatprep.subr.mxu0 0.0
    %932 = vmatpush2.msra.mxu0 0.0
    %933 = vmatprep.subr.mxu0 0.0
    %934 = vmatpush2.msra.mxu0 0.0
    %935 = vmatprep.mubr.f32.mxu0 0.0
    %936 = vmatmul.mubr.f32.gmra.mxu0 %v869
    %v937 = vpop.f32.mrf.mxu0
    %v938 = vadd.f32 0.0, %v937
    %v939 = vpop.f32.mrf.mxu0
    %940 = vdwg.mxu0
    %v942 = vrot.slane %v938, 4
    %v944 = vadd.f32 %v211, %v942
    %v945 = vxor.u32 %v944, 2147483648
    %v946 = vmul.f32 %v945, 1.442695
    %v947 = vpow.pop %v946
    %v948 = vadd.f32 %v947, 1.0
    %v949 = vrcp.pop %v948
    %v950 = vmul.f32 1.0, %v949
    %v951 = vadd.f32 %v938, %v305
    %v953 = vrot.slane %v951, 4
    %954 = vrot.lane.b32.xlu0 %v953, 64
    %v955 = vpop.permute.xlu0 %954
    %v957 = vmul.f32 %v950, %v955
    %959 = vrot.lane.b32.xlu0 %v957, 64
    %v960 = vpop.permute.xlu0 %959
    %v962 = vadd.f32 %v211, %v960
    %v963 = vtanh.pop %v962
    %v964 = vsub.f32 1.0, %v950
    %966 = vrot.lane.b32.xlu0 %v963, 96
    %v967 = vpop.permute.xlu0 %966
    %v969 = vmul.f32 %v964, %v967
    %v970 = vrot.slane %v864, 6
    %v972 = vmul.f32 %v950, %v970
    %v973 = vadd.f32 %v969, %v972
    %v975 = vrot.slane %v973, 4
    %976 = vrot.lane.b32.xlu0 %v975, 96
    %v977 = vpop.permute.xlu0 %976
    %v978 = vsel %vm132, %v977, 0
    %980 = vmatprep.subr.mxu0 0.0
    %981 = vmatpush1.msra.mxu0 0.0
    %982 = vmatprep.subr.mxu0 0.0
    %983 = vmatpush1.msra.mxu0 0.0
    %984 = vmatprep.subr.mxu0 0.0
    %985 = vmatpush1.msra.mxu0 0.0
    %986 = vmatprep.subr.mxu0 0.0
    %987 = vmatpush1.msra.mxu0 0.0
    %988 = vmatprep.subr.mxu0 0.0
    %989 = vmatpush1.msra.mxu0 0.0
    %990 = vmatprep.subr.mxu0 0.0
    %991 = vmatpush1.msra.mxu0 0.0
    %992 = vmatprep.subr.mxu0 0.0
    %993 = vmatpush1.msra.mxu0 0.0
    %994 = vmatprep.subr.mxu0 0.0
    %995 = vmatpush1.msra.mxu0 0.0
    %996 = vmatprep.subr.mxu0 0.0
    %997 = vmatpush1.msra.mxu0 0.0
    %998 = vmatprep.subr.mxu0 0.0
    %999 = vmatpush1.msra.mxu0 0.0
    %1000 = vmatprep.subr.mxu0 0.0
    %1001 = vmatpush1.msra.mxu0 0.0
    %1002 = vmatprep.subr.mxu0 0.0
    %1003 = vmatpush1.msra.mxu0 0.0
    %1004 = vmatprep.subr.mxu0 0.0
    %1005 = vmatpush1.msra.mxu0 %v218
    %1006 = vmatprep.subr.mxu0 0.0
    %1007 = vmatpush1.msra.mxu0 %v217
    %1008 = vmatprep.subr.mxu0 0.0
    %1009 = vmatpush1.msra.mxu0 %v216
    %1010 = vmatprep.subr.mxu0 0.0
    %1011 = vmatpush1.msra.mxu0 %v215
    %1012 = vmatprep.subr.mxu0 0.0
    %1013 = vmatpush2.msra.mxu0 0.0
    %1014 = vmatprep.subr.mxu0 0.0
    %1015 = vmatpush2.msra.mxu0 0.0
    %1016 = vmatprep.subr.mxu0 0.0
    %1017 = vmatpush2.msra.mxu0 0.0
    %1018 = vmatprep.subr.mxu0 0.0
    %1019 = vmatpush2.msra.mxu0 0.0
    %1020 = vmatprep.subr.mxu0 0.0
    %1021 = vmatpush2.msra.mxu0 0.0
    %1022 = vmatprep.subr.mxu0 0.0
    %1023 = vmatpush2.msra.mxu0 0.0
    %1024 = vmatprep.subr.mxu0 0.0
    %1025 = vmatpush2.msra.mxu0 0.0
    %1026 = vmatprep.subr.mxu0 0.0
    %1027 = vmatpush2.msra.mxu0 0.0
    %1028 = vmatprep.subr.mxu0 0.0
    %1029 = vmatpush2.msra.mxu0 0.0
    %1030 = vmatprep.subr.mxu0 0.0
    %1031 = vmatpush2.msra.mxu0 0.0
    %1032 = vmatprep.subr.mxu0 0.0
    %1033 = vmatpush2.msra.mxu0 0.0
    %1034 = vmatprep.subr.mxu0 0.0
    %1035 = vmatpush2.msra.mxu0 0.0
    %1036 = vmatprep.subr.mxu0 0.0
    %1037 = vmatpush2.msra.mxu0 0.0
    %1038 = vmatprep.subr.mxu0 0.0
    %1039 = vmatpush2.msra.mxu0 0.0
    %1040 = vmatprep.subr.mxu0 0.0
    %1041 = vmatpush2.msra.mxu0 0.0
    %1042 = vmatprep.subr.mxu0 0.0
    %1043 = vmatpush2.msra.mxu0 0.0
    %1044 = vmatprep.mubr.f32.mxu0 0.0
    %1045 = vmatmul.mubr.f32.gmra.mxu0 %v978
    %v1046 = vpop.f32.mrf.mxu0
    %v1047 = vadd.f32 0.0, %v1046
    %v1048 = vpop.f32.mrf.mxu0
    %1049 = vdwg.mxu0
    %v1051 = vrot.slane %v1047, 2
    %v1053 = vadd.f32 %v211, %v1051
    %v1054 = vxor.u32 %v1053, 2147483648
    %v1055 = vmul.f32 %v1054, 1.442695
    %v1056 = vpow.pop %v1055
    %v1057 = vadd.f32 %v1056, 1.0
    %v1058 = vrcp.pop %v1057
    %v1059 = vmul.f32 1.0, %v1058
    %v1060 = vadd.f32 %v1047, %v305
    %v1062 = vrot.slane %v1060, 2
    %1063 = vrot.lane.b32.xlu0 %v1062, 64
    %v1064 = vpop.permute.xlu0 %1063
    %v1066 = vmul.f32 %v1059, %v1064
    %1068 = vrot.lane.b32.xlu0 %v1066, 64
    %v1069 = vpop.permute.xlu0 %1068
    %v1071 = vadd.f32 %v211, %v1069
    %v1072 = vtanh.pop %v1071
    %v1073 = vsub.f32 1.0, %v1059
    %1075 = vrot.lane.b32.xlu0 %v1072, 96
    %v1076 = vpop.permute.xlu0 %1075
    %v1078 = vmul.f32 %v1073, %v1076
    %v1079 = vrot.slane %v973, 6
    %v1081 = vmul.f32 %v1059, %v1079
    %v1082 = vadd.f32 %v1078, %v1081
    %v1084 = vrot.slane %v1082, 6
    %1085 = vrot.lane.b32.xlu0 %v1084, 96
    %v1086 = vpop.permute.xlu0 %1085
    %v1087 = vsel %vm132, %v1086, 0
    %1089 = vmatprep.subr.mxu0 0.0
    %1090 = vmatpush1.msra.mxu0 0.0
    %1091 = vmatprep.subr.mxu0 0.0
    %1092 = vmatpush1.msra.mxu0 0.0
    %1093 = vmatprep.subr.mxu0 0.0
    %1094 = vmatpush1.msra.mxu0 0.0
    %1095 = vmatprep.subr.mxu0 0.0
    %1096 = vmatpush1.msra.mxu0 0.0
    %1097 = vmatprep.subr.mxu0 0.0
    %1098 = vmatpush1.msra.mxu0 0.0
    %1099 = vmatprep.subr.mxu0 0.0
    %1100 = vmatpush1.msra.mxu0 0.0
    %1101 = vmatprep.subr.mxu0 0.0
    %1102 = vmatpush1.msra.mxu0 0.0
    %1103 = vmatprep.subr.mxu0 0.0
    %1104 = vmatpush1.msra.mxu0 0.0
    %1105 = vmatprep.subr.mxu0 0.0
    %1106 = vmatpush1.msra.mxu0 0.0
    %1107 = vmatprep.subr.mxu0 0.0
    %1108 = vmatpush1.msra.mxu0 0.0
    %1109 = vmatprep.subr.mxu0 0.0
    %1110 = vmatpush1.msra.mxu0 0.0
    %1111 = vmatprep.subr.mxu0 0.0
    %1112 = vmatpush1.msra.mxu0 0.0
    %1113 = vmatprep.subr.mxu0 0.0
    %1114 = vmatpush1.msra.mxu0 %v218
    %1115 = vmatprep.subr.mxu0 0.0
    %1116 = vmatpush1.msra.mxu0 %v217
    %1117 = vmatprep.subr.mxu0 0.0
    %1118 = vmatpush1.msra.mxu0 %v216
    %1119 = vmatprep.subr.mxu0 0.0
    %1120 = vmatpush1.msra.mxu0 %v215
    %1121 = vmatprep.subr.mxu0 0.0
    %1122 = vmatpush2.msra.mxu0 0.0
    %1123 = vmatprep.subr.mxu0 0.0
    %1124 = vmatpush2.msra.mxu0 0.0
    %1125 = vmatprep.subr.mxu0 0.0
    %1126 = vmatpush2.msra.mxu0 0.0
    %1127 = vmatprep.subr.mxu0 0.0
    %1128 = vmatpush2.msra.mxu0 0.0
    %1129 = vmatprep.subr.mxu0 0.0
    %1130 = vmatpush2.msra.mxu0 0.0
    %1131 = vmatprep.subr.mxu0 0.0
    %1132 = vmatpush2.msra.mxu0 0.0
    %1133 = vmatprep.subr.mxu0 0.0
    %1134 = vmatpush2.msra.mxu0 0.0
    %1135 = vmatprep.subr.mxu0 0.0
    %1136 = vmatpush2.msra.mxu0 0.0
    %1137 = vmatprep.subr.mxu0 0.0
    %1138 = vmatpush2.msra.mxu0 0.0
    %1139 = vmatprep.subr.mxu0 0.0
    %1140 = vmatpush2.msra.mxu0 0.0
    %1141 = vmatprep.subr.mxu0 0.0
    %1142 = vmatpush2.msra.mxu0 0.0
    %1143 = vmatprep.subr.mxu0 0.0
    %1144 = vmatpush2.msra.mxu0 0.0
    %1145 = vmatprep.subr.mxu0 0.0
    %1146 = vmatpush2.msra.mxu0 0.0
    %1147 = vmatprep.subr.mxu0 0.0
    %1148 = vmatpush2.msra.mxu0 0.0
    %1149 = vmatprep.subr.mxu0 0.0
    %1150 = vmatpush2.msra.mxu0 0.0
    %1151 = vmatprep.subr.mxu0 0.0
    %1152 = vmatpush2.msra.mxu0 0.0
    %1153 = vmatprep.mubr.f32.mxu0 0.0
    %1154 = vmatmul.mubr.f32.gmra.mxu0 %v1087
    %v1155 = vpop.f32.mrf.mxu0
    %v1156 = vadd.f32 0.0, %v1155
    %v1157 = vpop.f32.mrf.mxu0
    %1158 = vdwg.mxu0
    %v1159 = vadd.f32 %v131, %v1156
    %v1160 = vxor.u32 %v1159, 2147483648
    %v1161 = vmul.f32 %v1160, 1.442695
    %v1162 = vpow.pop %v1161
    %v1163 = vadd.f32 %v1162, 1.0
    %v1164 = vrcp.pop %v1163
    %v1165 = vmul.f32 1.0, %v1164
    %v1166 = vadd.f32 %v1156, %v305
    %1168 = vrot.lane.b32.xlu0 %v1166, 64
    %v1169 = vpop.permute.xlu0 %1168
    %v1171 = vmul.f32 %v1165, %v1169
    %1173 = vrot.lane.b32.xlu0 %v1171, 64
    %v1174 = vpop.permute.xlu0 %1173
    %v1176 = vadd.f32 %v131, %v1174
    %v1177 = vtanh.pop %v1176
    %v1178 = vsub.f32 1.0, %v1165
    %1180 = vrot.lane.b32.xlu0 %v1177, 96
    %v1181 = vpop.permute.xlu0 %1180
    %v1183 = vmul.f32 %v1178, %v1181
    %v1185 = vmul.f32 %v1165, %v1084
    %v1186 = vadd.f32 %v1183, %v1185
    %1188 = vrot.lane.b32.xlu0 %v1186, 96
    %v1189 = vpop.permute.xlu0 %1188
    %v1190 = vsel %vm132, %v1189, 0
    %1192 = vmatprep.subr.mxu0 0.0
    %1193 = vmatpush1.msra.mxu0 0.0
    %1194 = vmatprep.subr.mxu0 0.0
    %1195 = vmatpush1.msra.mxu0 0.0
    %1196 = vmatprep.subr.mxu0 0.0
    %1197 = vmatpush1.msra.mxu0 0.0
    %1198 = vmatprep.subr.mxu0 0.0
    %1199 = vmatpush1.msra.mxu0 0.0
    %1200 = vmatprep.subr.mxu0 0.0
    %1201 = vmatpush1.msra.mxu0 0.0
    %1202 = vmatprep.subr.mxu0 0.0
    %1203 = vmatpush1.msra.mxu0 0.0
    %1204 = vmatprep.subr.mxu0 0.0
    %1205 = vmatpush1.msra.mxu0 0.0
    %1206 = vmatprep.subr.mxu0 0.0
    %1207 = vmatpush1.msra.mxu0 0.0
    %1208 = vmatprep.subr.mxu0 0.0
    %1209 = vmatpush1.msra.mxu0 0.0
    %1210 = vmatprep.subr.mxu0 0.0
    %1211 = vmatpush1.msra.mxu0 0.0
    %1212 = vmatprep.subr.mxu0 0.0
    %1213 = vmatpush1.msra.mxu0 0.0
    %1214 = vmatprep.subr.mxu0 0.0
    %1215 = vmatpush1.msra.mxu0 0.0
    %1216 = vmatprep.subr.mxu0 0.0
    %1217 = vmatpush1.msra.mxu0 %v218
    %1218 = vmatprep.subr.mxu0 0.0
    %1219 = vmatpush1.msra.mxu0 %v217
    %1220 = vmatprep.subr.mxu0 0.0
    %1221 = vmatpush1.msra.mxu0 %v216
    %1222 = vmatprep.subr.mxu0 0.0
    %1223 = vmatpush1.msra.mxu0 %v215
    %1224 = vmatprep.subr.mxu0 0.0
    %1225 = vmatpush2.msra.mxu0 0.0
    %1226 = vmatprep.subr.mxu0 0.0
    %1227 = vmatpush2.msra.mxu0 0.0
    %1228 = vmatprep.subr.mxu0 0.0
    %1229 = vmatpush2.msra.mxu0 0.0
    %1230 = vmatprep.subr.mxu0 0.0
    %1231 = vmatpush2.msra.mxu0 0.0
    %1232 = vmatprep.subr.mxu0 0.0
    %1233 = vmatpush2.msra.mxu0 0.0
    %1234 = vmatprep.subr.mxu0 0.0
    %1235 = vmatpush2.msra.mxu0 0.0
    %1236 = vmatprep.subr.mxu0 0.0
    %1237 = vmatpush2.msra.mxu0 0.0
    %1238 = vmatprep.subr.mxu0 0.0
    %1239 = vmatpush2.msra.mxu0 0.0
    %1240 = vmatprep.subr.mxu0 0.0
    %1241 = vmatpush2.msra.mxu0 0.0
    %1242 = vmatprep.subr.mxu0 0.0
    %1243 = vmatpush2.msra.mxu0 0.0
    %1244 = vmatprep.subr.mxu0 0.0
    %1245 = vmatpush2.msra.mxu0 0.0
    %1246 = vmatprep.subr.mxu0 0.0
    %1247 = vmatpush2.msra.mxu0 0.0
    %1248 = vmatprep.subr.mxu0 0.0
    %1249 = vmatpush2.msra.mxu0 0.0
    %1250 = vmatprep.subr.mxu0 0.0
    %1251 = vmatpush2.msra.mxu0 0.0
    %1252 = vmatprep.subr.mxu0 0.0
    %1253 = vmatpush2.msra.mxu0 0.0
    %1254 = vmatprep.subr.mxu0 0.0
    %1255 = vmatpush2.msra.mxu0 0.0
    %1256 = vmatprep.mubr.f32.mxu0 0.0
    %1257 = vmatmul.mubr.f32.gmra.mxu0 %v1190
    %v1258 = vpop.f32.mrf.mxu0
    %v1259 = vadd.f32 0.0, %v1258
    %v1260 = vpop.f32.mrf.mxu0
    %1261 = vdwg.mxu0
    %v1262 = vadd.f32 %v131, %v1259
    %v1263 = vxor.u32 %v1262, 2147483648
    %v1264 = vmul.f32 %v1263, 1.442695
    %v1265 = vpow.pop %v1264
    %v1266 = vadd.f32 %v1265, 1.0
    %v1267 = vrcp.pop %v1266
    %v1268 = vmul.f32 1.0, %v1267
    %v1269 = vadd.f32 %v1259, %v305
    %1271 = vrot.lane.b32.xlu0 %v1269, 64
    %v1272 = vpop.permute.xlu0 %1271
    %v1274 = vmul.f32 %v1268, %v1272
    %1276 = vrot.lane.b32.xlu0 %v1274, 64
    %v1277 = vpop.permute.xlu0 %1276
    %v1279 = vadd.f32 %v131, %v1277
    %v1280 = vtanh.pop %v1279
    %v1281 = vsub.f32 1.0, %v1268
    %1283 = vrot.lane.b32.xlu0 %v1280, 96
    %v1284 = vpop.permute.xlu0 %1283
    %v1286 = vmul.f32 %v1281, %v1284
    %v1287 = vmul.f32 %v1268, %v1186
    %v1288 = vadd.f32 %v1286, %v1287
    %1290 = vrot.lane.b32.xlu0 %v1288, 96
    %v1291 = vpop.permute.xlu0 %1290
    %v1292 = vsel %vm132, %v1291, 0
    %1294 = vmatprep.subr.mxu0 0.0
    %1295 = vmatpush1.msra.mxu0 0.0
    %1296 = vmatprep.subr.mxu0 0.0
    %1297 = vmatpush1.msra.mxu0 0.0
    %1298 = vmatprep.subr.mxu0 0.0
    %1299 = vmatpush1.msra.mxu0 0.0
    %1300 = vmatprep.subr.mxu0 0.0
    %1301 = vmatpush1.msra.mxu0 0.0
    %1302 = vmatprep.subr.mxu0 0.0
    %1303 = vmatpush1.msra.mxu0 0.0
    %1304 = vmatprep.subr.mxu0 0.0
    %1305 = vmatpush1.msra.mxu0 0.0
    %1306 = vmatprep.subr.mxu0 0.0
    %1307 = vmatpush1.msra.mxu0 0.0
    %1308 = vmatprep.subr.mxu0 0.0
    %1309 = vmatpush1.msra.mxu0 0.0
    %1310 = vmatprep.subr.mxu0 0.0
    %1311 = vmatpush1.msra.mxu0 0.0
    %1312 = vmatprep.subr.mxu0 0.0
    %1313 = vmatpush1.msra.mxu0 0.0
    %1314 = vmatprep.subr.mxu0 0.0
    %1315 = vmatpush1.msra.mxu0 0.0
    %1316 = vmatprep.subr.mxu0 0.0
    %1317 = vmatpush1.msra.mxu0 0.0
    %1318 = vmatprep.subr.mxu0 0.0
    %1319 = vmatpush1.msra.mxu0 %v218
    %1320 = vmatprep.subr.mxu0 0.0
    %1321 = vmatpush1.msra.mxu0 %v217
    %1322 = vmatprep.subr.mxu0 0.0
    %1323 = vmatpush1.msra.mxu0 %v216
    %1324 = vmatprep.subr.mxu0 0.0
    %1325 = vmatpush1.msra.mxu0 %v215
    %1326 = vmatprep.subr.mxu0 0.0
    %1327 = vmatpush2.msra.mxu0 0.0
    %1328 = vmatprep.subr.mxu0 0.0
    %1329 = vmatpush2.msra.mxu0 0.0
    %1330 = vmatprep.subr.mxu0 0.0
    %1331 = vmatpush2.msra.mxu0 0.0
    %1332 = vmatprep.subr.mxu0 0.0
    %1333 = vmatpush2.msra.mxu0 0.0
    %1334 = vmatprep.subr.mxu0 0.0
    %1335 = vmatpush2.msra.mxu0 0.0
    %1336 = vmatprep.subr.mxu0 0.0
    %1337 = vmatpush2.msra.mxu0 0.0
    %1338 = vmatprep.subr.mxu0 0.0
    %1339 = vmatpush2.msra.mxu0 0.0
    %1340 = vmatprep.subr.mxu0 0.0
    %1341 = vmatpush2.msra.mxu0 0.0
    %1342 = vmatprep.subr.mxu0 0.0
    %1343 = vmatpush2.msra.mxu0 0.0
    %1344 = vmatprep.subr.mxu0 0.0
    %1345 = vmatpush2.msra.mxu0 0.0
    %1346 = vmatprep.subr.mxu0 0.0
    %1347 = vmatpush2.msra.mxu0 0.0
    %1348 = vmatprep.subr.mxu0 0.0
    %1349 = vmatpush2.msra.mxu0 0.0
    %1350 = vmatprep.subr.mxu0 0.0
    %1351 = vmatpush2.msra.mxu0 0.0
    %1352 = vmatprep.subr.mxu0 0.0
    %1353 = vmatpush2.msra.mxu0 0.0
    %1354 = vmatprep.subr.mxu0 0.0
    %1355 = vmatpush2.msra.mxu0 0.0
    %1356 = vmatprep.subr.mxu0 0.0
    %1357 = vmatpush2.msra.mxu0 0.0
    %1358 = vmatprep.mubr.f32.mxu0 0.0
    %1359 = vmatmul.mubr.f32.gmra.mxu0 %v1292
    %v1360 = vpop.f32.mrf.mxu0
    %v1361 = vadd.f32 0.0, %v1360
    %v1362 = vpop.f32.mrf.mxu0
    %1363 = vdwg.mxu0
    %v1364 = vadd.f32 %v131, %v1361
    %v1365 = vxor.u32 %v1364, 2147483648
    %v1366 = vmul.f32 %v1365, 1.442695
    %v1367 = vpow.pop %v1366
    %v1368 = vadd.f32 %v1367, 1.0
    %v1369 = vrcp.pop %v1368
    %v1370 = vmul.f32 1.0, %v1369
    %v1371 = vadd.f32 %v1361, %v305
    %1373 = vrot.lane.b32.xlu0 %v1371, 64
    %v1374 = vpop.permute.xlu0 %1373
    %v1376 = vmul.f32 %v1370, %v1374
    %1378 = vrot.lane.b32.xlu0 %v1376, 64
    %v1379 = vpop.permute.xlu0 %1378
    %v1381 = vadd.f32 %v131, %v1379
    %v1382 = vtanh.pop %v1381
    %v1383 = vsub.f32 1.0, %v1370
    %1385 = vrot.lane.b32.xlu0 %v1382, 96
    %v1386 = vpop.permute.xlu0 %1385
    %v1388 = vmul.f32 %v1383, %v1386
    %v1389 = vmul.f32 %v1370, %v1288
    %v1390 = vadd.f32 %v1388, %v1389
    %1392 = vrot.lane.b32.xlu0 %v1390, 96
    %v1393 = vpop.permute.xlu0 %1392
    %v1394 = vsel %vm132, %v1393, 0
    %1396 = vmatprep.subr.mxu0 0.0
    %1397 = vmatpush1.msra.mxu0 0.0
    %1398 = vmatprep.subr.mxu0 0.0
    %1399 = vmatpush1.msra.mxu0 0.0
    %1400 = vmatprep.subr.mxu0 0.0
    %1401 = vmatpush1.msra.mxu0 0.0
    %1402 = vmatprep.subr.mxu0 0.0
    %1403 = vmatpush1.msra.mxu0 0.0
    %1404 = vmatprep.subr.mxu0 0.0
    %1405 = vmatpush1.msra.mxu0 0.0
    %1406 = vmatprep.subr.mxu0 0.0
    %1407 = vmatpush1.msra.mxu0 0.0
    %1408 = vmatprep.subr.mxu0 0.0
    %1409 = vmatpush1.msra.mxu0 0.0
    %1410 = vmatprep.subr.mxu0 0.0
    %1411 = vmatpush1.msra.mxu0 0.0
    %1412 = vmatprep.subr.mxu0 0.0
    %1413 = vmatpush1.msra.mxu0 0.0
    %1414 = vmatprep.subr.mxu0 0.0
    %1415 = vmatpush1.msra.mxu0 0.0
    %1416 = vmatprep.subr.mxu0 0.0
    %1417 = vmatpush1.msra.mxu0 0.0
    %1418 = vmatprep.subr.mxu0 0.0
    %1419 = vmatpush1.msra.mxu0 0.0
    %1420 = vmatprep.subr.mxu0 0.0
    %1421 = vmatpush1.msra.mxu0 %v218
    %1422 = vmatprep.subr.mxu0 0.0
    %1423 = vmatpush1.msra.mxu0 %v217
    %1424 = vmatprep.subr.mxu0 0.0
    %1425 = vmatpush1.msra.mxu0 %v216
    %1426 = vmatprep.subr.mxu0 0.0
    %1427 = vmatpush1.msra.mxu0 %v215
    %1428 = vmatprep.subr.mxu0 0.0
    %1429 = vmatpush2.msra.mxu0 0.0
    %1430 = vmatprep.subr.mxu0 0.0
    %1431 = vmatpush2.msra.mxu0 0.0
    %1432 = vmatprep.subr.mxu0 0.0
    %1433 = vmatpush2.msra.mxu0 0.0
    %1434 = vmatprep.subr.mxu0 0.0
    %1435 = vmatpush2.msra.mxu0 0.0
    %1436 = vmatprep.subr.mxu0 0.0
    %1437 = vmatpush2.msra.mxu0 0.0
    %1438 = vmatprep.subr.mxu0 0.0
    %1439 = vmatpush2.msra.mxu0 0.0
    %1440 = vmatprep.subr.mxu0 0.0
    %1441 = vmatpush2.msra.mxu0 0.0
    %1442 = vmatprep.subr.mxu0 0.0
    %1443 = vmatpush2.msra.mxu0 0.0
    %1444 = vmatprep.subr.mxu0 0.0
    %1445 = vmatpush2.msra.mxu0 0.0
    %1446 = vmatprep.subr.mxu0 0.0
    %1447 = vmatpush2.msra.mxu0 0.0
    %1448 = vmatprep.subr.mxu0 0.0
    %1449 = vmatpush2.msra.mxu0 0.0
    %1450 = vmatprep.subr.mxu0 0.0
    %1451 = vmatpush2.msra.mxu0 0.0
    %1452 = vmatprep.subr.mxu0 0.0
    %1453 = vmatpush2.msra.mxu0 0.0
    %1454 = vmatprep.subr.mxu0 0.0
    %1455 = vmatpush2.msra.mxu0 0.0
    %1456 = vmatprep.subr.mxu0 0.0
    %1457 = vmatpush2.msra.mxu0 0.0
    %1458 = vmatprep.subr.mxu0 0.0
    %1459 = vmatpush2.msra.mxu0 0.0
    %1460 = vmatprep.mubr.f32.mxu0 0.0
    %1461 = vmatmul.mubr.f32.gmra.mxu0 %v1394
    %v1462 = vpop.f32.mrf.mxu0
    %v1463 = vadd.f32 0.0, %v1462
    %v1464 = vpop.f32.mrf.mxu0
    %1465 = vdwg.mxu0
    %v1466 = vadd.f32 %v131, %v1463
    %v1467 = vxor.u32 %v1466, 2147483648
    %v1468 = vmul.f32 %v1467, 1.442695
    %v1469 = vpow.pop %v1468
    %v1470 = vadd.f32 %v1469, 1.0
    %v1471 = vrcp.pop %v1470
    %v1472 = vmul.f32 1.0, %v1471
    %v1473 = vadd.f32 %v1463, %v305
    %1475 = vrot.lane.b32.xlu0 %v1473, 64
    %v1476 = vpop.permute.xlu0 %1475
    %v1478 = vmul.f32 %v1472, %v1476
    %1480 = vrot.lane.b32.xlu0 %v1478, 64
    %v1481 = vpop.permute.xlu0 %1480
    %v1483 = vadd.f32 %v131, %v1481
    %v1484 = vtanh.pop %v1483
    %v1485 = vsub.f32 1.0, %v1472
    %1487 = vrot.lane.b32.xlu0 %v1484, 96
    %v1488 = vpop.permute.xlu0 %1487
    %v1490 = vmul.f32 %v1485, %v1488
    %v1491 = vmul.f32 %v1472, %v1390
    %v1492 = vadd.f32 %v1490, %v1491
    %vm1493 = vcmask 1041408
    %v1494 = vsel %vm1493, %v326, %v434
    %vm1495 = vcmask 1043456
    %v1496 = vsel %vm1495, %v1494, %v543
    %vm1497 = vcmask 1045504
    %v1498 = vsel %vm1497, %v1496, %v652
    %v1499 = vsel %vm1493, %v756, %v864
    %v1500 = vsel %vm1495, %v1499, %v973
    %v1501 = vsel %vm1497, %v1500, %v1082
    %s1502 = scalar_lea.vmem %s3, 96
    %v1503 = vld [vmem:[%s1502] sm:$0xff]
    %v1504 = vld [vmem:[%s1502 + $0x8] sm:$0xff]
    %v1505 = vld [vmem:[%s1502 + $0x10] sm:$0xff]
    %v1506 = vld [vmem:[%s1502 + $0x18] sm:$0xff]
    %v1507 = vlaneseq
    %v1508 = vshrl.u32 %v1507, 7
    %v1509 = vsub.s32 3, %v1508
    %v1510 = vrot.slane %v21, %v1509
    %1513 = vrot.lane.b32.xlu0 %v1498, 96
    %v1514 = vpop.permute.xlu0 %1513
    %1515 = vrot.lane.b32.xlu0 %v1501, 96
    %v1516 = vpop.permute.xlu0 %1515
    %v1517 = vsel %vm132, %v1514, 0
    %v1519 = vsel %vm132, %v1516, 0
    %1521 = vmatprep.subr.mxu0 0.0
    %1522 = vmatpush1.msra.mxu0 0.0
    %1523 = vmatprep.subr.mxu0 0.0
    %1524 = vmatpush1.msra.mxu0 0.0
    %1525 = vmatprep.subr.mxu0 0.0
    %1526 = vmatpush1.msra.mxu0 0.0
    %1527 = vmatprep.subr.mxu0 0.0
    %1528 = vmatpush1.msra.mxu0 0.0
    %1529 = vmatprep.subr.mxu0 0.0
    %1530 = vmatpush1.msra.mxu0 0.0
    %1531 = vmatprep.subr.mxu0 0.0
    %1532 = vmatpush1.msra.mxu0 0.0
    %1533 = vmatprep.subr.mxu0 0.0
    %1534 = vmatpush1.msra.mxu0 0.0
    %1535 = vmatprep.subr.mxu0 0.0
    %1536 = vmatpush1.msra.mxu0 0.0
    %1537 = vmatprep.subr.mxu0 0.0
    %1538 = vmatpush1.msra.mxu0 0.0
    %1539 = vmatprep.subr.mxu0 0.0
    %1540 = vmatpush1.msra.mxu0 0.0
    %1541 = vmatprep.subr.mxu0 0.0
    %1542 = vmatpush1.msra.mxu0 0.0
    %1543 = vmatprep.subr.mxu0 0.0
    %1544 = vmatpush1.msra.mxu0 0.0
    %1545 = vmatprep.subr.mxu0 0.0
    %1546 = vmatpush1.msra.mxu0 %v1506
    %1547 = vmatprep.subr.mxu0 0.0
    %1548 = vmatpush1.msra.mxu0 %v1505
    %1549 = vmatprep.subr.mxu0 0.0
    %1550 = vmatpush1.msra.mxu0 %v1504
    %1551 = vmatprep.subr.mxu0 0.0
    %1552 = vmatpush1.msra.mxu0 %v1503
    %1553 = vmatprep.subr.mxu0 0.0
    %1554 = vmatpush2.msra.mxu0 0.0
    %1555 = vmatprep.subr.mxu0 0.0
    %1556 = vmatpush2.msra.mxu0 0.0
    %1557 = vmatprep.subr.mxu0 0.0
    %1558 = vmatpush2.msra.mxu0 0.0
    %1559 = vmatprep.subr.mxu0 0.0
    %1560 = vmatpush2.msra.mxu0 0.0
    %1561 = vmatprep.subr.mxu0 0.0
    %1562 = vmatpush2.msra.mxu0 0.0
    %1563 = vmatprep.subr.mxu0 0.0
    %1564 = vmatpush2.msra.mxu0 0.0
    %1565 = vmatprep.subr.mxu0 0.0
    %1566 = vmatpush2.msra.mxu0 0.0
    %1567 = vmatprep.subr.mxu0 0.0
    %1568 = vmatpush2.msra.mxu0 0.0
    %1569 = vmatprep.subr.mxu0 0.0
    %1570 = vmatpush2.msra.mxu0 0.0
    %1571 = vmatprep.subr.mxu0 0.0
    %1572 = vmatpush2.msra.mxu0 0.0
    %1573 = vmatprep.subr.mxu0 0.0
    %1574 = vmatpush2.msra.mxu0 0.0
    %1575 = vmatprep.subr.mxu0 0.0
    %1576 = vmatpush2.msra.mxu0 0.0
    %1577 = vmatprep.subr.mxu0 0.0
    %1578 = vmatpush2.msra.mxu0 0.0
    %1579 = vmatprep.subr.mxu0 0.0
    %1580 = vmatpush2.msra.mxu0 0.0
    %1581 = vmatprep.subr.mxu0 0.0
    %1582 = vmatpush2.msra.mxu0 0.0
    %1583 = vmatprep.subr.mxu0 0.0
    %1584 = vmatpush2.msra.mxu0 0.0
    %1585 = vmatprep.mubr.f32.mxu0 0.0
    %1586 = vmatmul.mubr.f32.gmra.mxu0 %v1517
    %v1587 = vpop.f32.mrf.mxu0
    %v1588 = vadd.f32 %v1510, %v1587
    %v1589 = vpop.f32.mrf.mxu0
    %1590 = vmatprep.mubr.f32.mxu0 0.0
    %1591 = vmatmul.mubr.f32.gmra.mxu0 %v1519
    %v1592 = vpop.f32.mrf.mxu0
    %v1593 = vadd.f32 %v1510, %v1592
    %v1594 = vpop.f32.mrf.mxu0
    %1595 = vdwg.mxu0
    %s1596 = scalar_lea.vmem %s3, 64
    %v1597 = vld [vmem:[%s1596] sm:$0xff]
    %v1598 = vld [vmem:[%s1596 + $0x8] sm:$0xff]
    %v1599 = vld [vmem:[%s1596 + $0x10] sm:$0xff]
    %v1600 = vld [vmem:[%s1596 + $0x18] sm:$0xff]
    %1601 = vmatprep.subr.mxu0 0.0
    %1602 = vmatpush1.msra.mxu0 0.0
    %1603 = vmatprep.subr.mxu0 0.0
    %1604 = vmatpush1.msra.mxu0 0.0
    %1605 = vmatprep.subr.mxu0 0.0
    %1606 = vmatpush1.msra.mxu0 0.0
    %1607 = vmatprep.subr.mxu0 0.0
    %1608 = vmatpush1.msra.mxu0 0.0
    %1609 = vmatprep.subr.mxu0 0.0
    %1610 = vmatpush1.msra.mxu0 0.0
    %1611 = vmatprep.subr.mxu0 0.0
    %1612 = vmatpush1.msra.mxu0 0.0
    %1613 = vmatprep.subr.mxu0 0.0
    %1614 = vmatpush1.msra.mxu0 0.0
    %1615 = vmatprep.subr.mxu0 0.0
    %1616 = vmatpush1.msra.mxu0 0.0
    %1617 = vmatprep.subr.mxu0 0.0
    %1618 = vmatpush1.msra.mxu0 0.0
    %1619 = vmatprep.subr.mxu0 0.0
    %1620 = vmatpush1.msra.mxu0 0.0
    %1621 = vmatprep.subr.mxu0 0.0
    %1622 = vmatpush1.msra.mxu0 0.0
    %1623 = vmatprep.subr.mxu0 0.0
    %1624 = vmatpush1.msra.mxu0 0.0
    %1625 = vmatprep.subr.mxu0 0.0
    %1626 = vmatpush1.msra.mxu0 %v1600
    %1627 = vmatprep.subr.mxu0 0.0
    %1628 = vmatpush1.msra.mxu0 %v1599
    %1629 = vmatprep.subr.mxu0 0.0
    %1630 = vmatpush1.msra.mxu0 %v1598
    %1631 = vmatprep.subr.mxu0 0.0
    %1632 = vmatpush1.msra.mxu0 %v1597
    %1633 = vmatprep.subr.mxu0 0.0
    %1634 = vmatpush2.msra.mxu0 0.0
    %1635 = vmatprep.subr.mxu0 0.0
    %1636 = vmatpush2.msra.mxu0 0.0
    %1637 = vmatprep.subr.mxu0 0.0
    %1638 = vmatpush2.msra.mxu0 0.0
    %1639 = vmatprep.subr.mxu0 0.0
    %1640 = vmatpush2.msra.mxu0 0.0
    %1641 = vmatprep.subr.mxu0 0.0
    %1642 = vmatpush2.msra.mxu0 0.0
    %1643 = vmatprep.subr.mxu0 0.0
    %1644 = vmatpush2.msra.mxu0 0.0
    %1645 = vmatprep.subr.mxu0 0.0
    %1646 = vmatpush2.msra.mxu0 0.0
    %1647 = vmatprep.subr.mxu0 0.0
    %1648 = vmatpush2.msra.mxu0 0.0
    %1649 = vmatprep.subr.mxu0 0.0
    %1650 = vmatpush2.msra.mxu0 0.0
    %1651 = vmatprep.subr.mxu0 0.0
    %1652 = vmatpush2.msra.mxu0 0.0
    %1653 = vmatprep.subr.mxu0 0.0
    %1654 = vmatpush2.msra.mxu0 0.0
    %1655 = vmatprep.subr.mxu0 0.0
    %1656 = vmatpush2.msra.mxu0 0.0
    %1657 = vmatprep.subr.mxu0 0.0
    %1658 = vmatpush2.msra.mxu0 0.0
    %1659 = vmatprep.subr.mxu0 0.0
    %1660 = vmatpush2.msra.mxu0 0.0
    %1661 = vmatprep.subr.mxu0 0.0
    %1662 = vmatpush2.msra.mxu0 0.0
    %1663 = vmatprep.subr.mxu0 0.0
    %1664 = vmatpush2.msra.mxu0 0.0
    %1665 = vmatprep.mubr.f32.mxu0 0.0
    %1666 = vmatmul.mubr.f32.gmra.mxu0 %v220
    %v1667 = vpop.f32.mrf.mxu0
    %v1668 = vadd.f32 0.0, %v1667
    %v1669 = vpop.f32.mrf.mxu0
    %1670 = vdwg.mxu0
    %v1671 = vadd.f32 %v1588, %v1668
    %v1672 = vxor.u32 %v1671, 2147483648
    %v1673 = vmul.f32 %v1672, 1.442695
    %v1674 = vpow.pop %v1673
    %v1675 = vadd.f32 %v1674, 1.0
    %v1676 = vrcp.pop %v1675
    %v1677 = vmul.f32 1.0, %v1676
    %v1678 = vlaneseq
    %v1679 = vshrl.u32 %v1678, 7
    %v1680 = vsub.s32 4, %v1679
    %v1681 = vrot.slane %v21, %v1680
    %1683 = vrot.lane.b32.xlu0 %v1681, 64
    %v1684 = vpop.permute.xlu0 %1683
    %v1686 = vadd.f32 %v1668, %v1684
    %1688 = vrot.lane.b32.xlu0 %v1686, 64
    %v1689 = vpop.permute.xlu0 %1688
    %v1691 = vmul.f32 %v1677, %v1689
    %1693 = vrot.lane.b32.xlu0 %v1691, 64
    %v1694 = vpop.permute.xlu0 %1693
    %v1696 = vadd.f32 %v1588, %v1694
    %v1697 = vtanh.pop %v1696
    %v1698 = vsub.f32 1.0, %v1677
    %1700 = vrot.lane.b32.xlu0 %v1697, 96
    %v1701 = vpop.permute.xlu0 %1700
    %v1703 = vmul.f32 %v1698, %v1701
    %v1704 = vmul.f32 %v1677, 0.0
    %v1705 = vadd.f32 %v1703, %v1704
    %1707 = vrot.lane.b32.xlu0 %v1705, 96
    %v1708 = vpop.permute.xlu0 %1707
    %v1709 = vsel %vm132, %v1708, 0
    %1711 = vmatprep.subr.mxu0 0.0
    %1712 = vmatpush1.msra.mxu0 0.0
    %1713 = vmatprep.subr.mxu0 0.0
    %1714 = vmatpush1.msra.mxu0 0.0
    %1715 = vmatprep.subr.mxu0 0.0
    %1716 = vmatpush1.msra.mxu0 0.0
    %1717 = vmatprep.subr.mxu0 0.0
    %1718 = vmatpush1.msra.mxu0 0.0
    %1719 = vmatprep.subr.mxu0 0.0
    %1720 = vmatpush1.msra.mxu0 0.0
    %1721 = vmatprep.subr.mxu0 0.0
    %1722 = vmatpush1.msra.mxu0 0.0
    %1723 = vmatprep.subr.mxu0 0.0
    %1724 = vmatpush1.msra.mxu0 0.0
    %1725 = vmatprep.subr.mxu0 0.0
    %1726 = vmatpush1.msra.mxu0 0.0
    %1727 = vmatprep.subr.mxu0 0.0
    %1728 = vmatpush1.msra.mxu0 0.0
    %1729 = vmatprep.subr.mxu0 0.0
    %1730 = vmatpush1.msra.mxu0 0.0
    %1731 = vmatprep.subr.mxu0 0.0
    %1732 = vmatpush1.msra.mxu0 0.0
    %1733 = vmatprep.subr.mxu0 0.0
    %1734 = vmatpush1.msra.mxu0 0.0
    %1735 = vmatprep.subr.mxu0 0.0
    %1736 = vmatpush1.msra.mxu0 %v1600
    %1737 = vmatprep.subr.mxu0 0.0
    %1738 = vmatpush1.msra.mxu0 %v1599
    %1739 = vmatprep.subr.mxu0 0.0
    %1740 = vmatpush1.msra.mxu0 %v1598
    %1741 = vmatprep.subr.mxu0 0.0
    %1742 = vmatpush1.msra.mxu0 %v1597
    %1743 = vmatprep.subr.mxu0 0.0
    %1744 = vmatpush2.msra.mxu0 0.0
    %1745 = vmatprep.subr.mxu0 0.0
    %1746 = vmatpush2.msra.mxu0 0.0
    %1747 = vmatprep.subr.mxu0 0.0
    %1748 = vmatpush2.msra.mxu0 0.0
    %1749 = vmatprep.subr.mxu0 0.0
    %1750 = vmatpush2.msra.mxu0 0.0
    %1751 = vmatprep.subr.mxu0 0.0
    %1752 = vmatpush2.msra.mxu0 0.0
    %1753 = vmatprep.subr.mxu0 0.0
    %1754 = vmatpush2.msra.mxu0 0.0
    %1755 = vmatprep.subr.mxu0 0.0
    %1756 = vmatpush2.msra.mxu0 0.0
    %1757 = vmatprep.subr.mxu0 0.0
    %1758 = vmatpush2.msra.mxu0 0.0
    %1759 = vmatprep.subr.mxu0 0.0
    %1760 = vmatpush2.msra.mxu0 0.0
    %1761 = vmatprep.subr.mxu0 0.0
    %1762 = vmatpush2.msra.mxu0 0.0
    %1763 = vmatprep.subr.mxu0 0.0
    %1764 = vmatpush2.msra.mxu0 0.0
    %1765 = vmatprep.subr.mxu0 0.0
    %1766 = vmatpush2.msra.mxu0 0.0
    %1767 = vmatprep.subr.mxu0 0.0
    %1768 = vmatpush2.msra.mxu0 0.0
    %1769 = vmatprep.subr.mxu0 0.0
    %1770 = vmatpush2.msra.mxu0 0.0
    %1771 = vmatprep.subr.mxu0 0.0
    %1772 = vmatpush2.msra.mxu0 0.0
    %1773 = vmatprep.subr.mxu0 0.0
    %1774 = vmatpush2.msra.mxu0 0.0
    %1775 = vmatprep.mubr.f32.mxu0 0.0
    %1776 = vmatmul.mubr.f32.gmra.mxu0 %v1709
    %v1777 = vpop.f32.mrf.mxu0
    %v1778 = vadd.f32 0.0, %v1777
    %v1779 = vpop.f32.mrf.mxu0
    %1780 = vdwg.mxu0
    %v1782 = vrot.slane %v1778, 6
    %v1784 = vadd.f32 %v1588, %v1782
    %v1785 = vxor.u32 %v1784, 2147483648
    %v1786 = vmul.f32 %v1785, 1.442695
    %v1787 = vpow.pop %v1786
    %v1788 = vadd.f32 %v1787, 1.0
    %v1789 = vrcp.pop %v1788
    %v1790 = vmul.f32 1.0, %v1789
    %v1791 = vadd.f32 %v1778, %v1684
    %v1793 = vrot.slane %v1791, 6
    %1794 = vrot.lane.b32.xlu0 %v1793, 64
    %v1795 = vpop.permute.xlu0 %1794
    %v1797 = vmul.f32 %v1790, %v1795
    %1799 = vrot.lane.b32.xlu0 %v1797, 64
    %v1800 = vpop.permute.xlu0 %1799
    %v1802 = vadd.f32 %v1588, %v1800
    %v1803 = vtanh.pop %v1802
    %v1804 = vsub.f32 1.0, %v1790
    %1806 = vrot.lane.b32.xlu0 %v1803, 96
    %v1807 = vpop.permute.xlu0 %1806
    %v1809 = vmul.f32 %v1804, %v1807
    %v1810 = vrot.slane %v1705, 6
    %v1812 = vmul.f32 %v1790, %v1810
    %v1813 = vadd.f32 %v1809, %v1812
    %v1815 = vrot.slane %v1813, 2
    %1816 = vrot.lane.b32.xlu0 %v1815, 96
    %v1817 = vpop.permute.xlu0 %1816
    %v1818 = vsel %vm132, %v1817, 0
    %1820 = vmatprep.subr.mxu0 0.0
    %1821 = vmatpush1.msra.mxu0 0.0
    %1822 = vmatprep.subr.mxu0 0.0
    %1823 = vmatpush1.msra.mxu0 0.0
    %1824 = vmatprep.subr.mxu0 0.0
    %1825 = vmatpush1.msra.mxu0 0.0
    %1826 = vmatprep.subr.mxu0 0.0
    %1827 = vmatpush1.msra.mxu0 0.0
    %1828 = vmatprep.subr.mxu0 0.0
    %1829 = vmatpush1.msra.mxu0 0.0
    %1830 = vmatprep.subr.mxu0 0.0
    %1831 = vmatpush1.msra.mxu0 0.0
    %1832 = vmatprep.subr.mxu0 0.0
    %1833 = vmatpush1.msra.mxu0 0.0
    %1834 = vmatprep.subr.mxu0 0.0
    %1835 = vmatpush1.msra.mxu0 0.0
    %1836 = vmatprep.subr.mxu0 0.0
    %1837 = vmatpush1.msra.mxu0 0.0
    %1838 = vmatprep.subr.mxu0 0.0
    %1839 = vmatpush1.msra.mxu0 0.0
    %1840 = vmatprep.subr.mxu0 0.0
    %1841 = vmatpush1.msra.mxu0 0.0
    %1842 = vmatprep.subr.mxu0 0.0
    %1843 = vmatpush1.msra.mxu0 0.0
    %1844 = vmatprep.subr.mxu0 0.0
    %1845 = vmatpush1.msra.mxu0 %v1600
    %1846 = vmatprep.subr.mxu0 0.0
    %1847 = vmatpush1.msra.mxu0 %v1599
    %1848 = vmatprep.subr.mxu0 0.0
    %1849 = vmatpush1.msra.mxu0 %v1598
    %1850 = vmatprep.subr.mxu0 0.0
    %1851 = vmatpush1.msra.mxu0 %v1597
    %1852 = vmatprep.subr.mxu0 0.0
    %1853 = vmatpush2.msra.mxu0 0.0
    %1854 = vmatprep.subr.mxu0 0.0
    %1855 = vmatpush2.msra.mxu0 0.0
    %1856 = vmatprep.subr.mxu0 0.0
    %1857 = vmatpush2.msra.mxu0 0.0
    %1858 = vmatprep.subr.mxu0 0.0
    %1859 = vmatpush2.msra.mxu0 0.0
    %1860 = vmatprep.subr.mxu0 0.0
    %1861 = vmatpush2.msra.mxu0 0.0
    %1862 = vmatprep.subr.mxu0 0.0
    %1863 = vmatpush2.msra.mxu0 0.0
    %1864 = vmatprep.subr.mxu0 0.0
    %1865 = vmatpush2.msra.mxu0 0.0
    %1866 = vmatprep.subr.mxu0 0.0
    %1867 = vmatpush2.msra.mxu0 0.0
    %1868 = vmatprep.subr.mxu0 0.0
    %1869 = vmatpush2.msra.mxu0 0.0
    %1870 = vmatprep.subr.mxu0 0.0
    %1871 = vmatpush2.msra.mxu0 0.0
    %1872 = vmatprep.subr.mxu0 0.0
    %1873 = vmatpush2.msra.mxu0 0.0
    %1874 = vmatprep.subr.mxu0 0.0
    %1875 = vmatpush2.msra.mxu0 0.0
    %1876 = vmatprep.subr.mxu0 0.0
    %1877 = vmatpush2.msra.mxu0 0.0
    %1878 = vmatprep.subr.mxu0 0.0
    %1879 = vmatpush2.msra.mxu0 0.0
    %1880 = vmatprep.subr.mxu0 0.0
    %1881 = vmatpush2.msra.mxu0 0.0
    %1882 = vmatprep.subr.mxu0 0.0
    %1883 = vmatpush2.msra.mxu0 0.0
    %1884 = vmatprep.mubr.f32.mxu0 0.0
    %1885 = vmatmul.mubr.f32.gmra.mxu0 %v1818
    %v1886 = vpop.f32.mrf.mxu0
    %v1887 = vadd.f32 0.0, %v1886
    %v1888 = vpop.f32.mrf.mxu0
    %1889 = vdwg.mxu0
    %v1891 = vrot.slane %v1887, 4
    %v1893 = vadd.f32 %v1588, %v1891
    %v1894 = vxor.u32 %v1893, 2147483648
    %v1895 = vmul.f32 %v1894, 1.442695
    %v1896 = vpow.pop %v1895
    %v1897 = vadd.f32 %v1896, 1.0
    %v1898 = vrcp.pop %v1897
    %v1899 = vmul.f32 1.0, %v1898
    %v1900 = vadd.f32 %v1887, %v1684
    %v1902 = vrot.slane %v1900, 4
    %1903 = vrot.lane.b32.xlu0 %v1902, 64
    %v1904 = vpop.permute.xlu0 %1903
    %v1906 = vmul.f32 %v1899, %v1904
    %1908 = vrot.lane.b32.xlu0 %v1906, 64
    %v1909 = vpop.permute.xlu0 %1908
    %v1911 = vadd.f32 %v1588, %v1909
    %v1912 = vtanh.pop %v1911
    %v1913 = vsub.f32 1.0, %v1899
    %1915 = vrot.lane.b32.xlu0 %v1912, 96
    %v1916 = vpop.permute.xlu0 %1915
    %v1918 = vmul.f32 %v1913, %v1916
    %v1919 = vrot.slane %v1813, 6
    %v1921 = vmul.f32 %v1899, %v1919
    %v1922 = vadd.f32 %v1918, %v1921
    %v1924 = vrot.slane %v1922, 4
    %1925 = vrot.lane.b32.xlu0 %v1924, 96
    %v1926 = vpop.permute.xlu0 %1925
    %v1927 = vsel %vm132, %v1926, 0
    %1929 = vmatprep.subr.mxu0 0.0
    %1930 = vmatpush1.msra.mxu0 0.0
    %1931 = vmatprep.subr.mxu0 0.0
    %1932 = vmatpush1.msra.mxu0 0.0
    %1933 = vmatprep.subr.mxu0 0.0
    %1934 = vmatpush1.msra.mxu0 0.0
    %1935 = vmatprep.subr.mxu0 0.0
    %1936 = vmatpush1.msra.mxu0 0.0
    %1937 = vmatprep.subr.mxu0 0.0
    %1938 = vmatpush1.msra.mxu0 0.0
    %1939 = vmatprep.subr.mxu0 0.0
    %1940 = vmatpush1.msra.mxu0 0.0
    %1941 = vmatprep.subr.mxu0 0.0
    %1942 = vmatpush1.msra.mxu0 0.0
    %1943 = vmatprep.subr.mxu0 0.0
    %1944 = vmatpush1.msra.mxu0 0.0
    %1945 = vmatprep.subr.mxu0 0.0
    %1946 = vmatpush1.msra.mxu0 0.0
    %1947 = vmatprep.subr.mxu0 0.0
    %1948 = vmatpush1.msra.mxu0 0.0
    %1949 = vmatprep.subr.mxu0 0.0
    %1950 = vmatpush1.msra.mxu0 0.0
    %1951 = vmatprep.subr.mxu0 0.0
    %1952 = vmatpush1.msra.mxu0 0.0
    %1953 = vmatprep.subr.mxu0 0.0
    %1954 = vmatpush1.msra.mxu0 %v1600
    %1955 = vmatprep.subr.mxu0 0.0
    %1956 = vmatpush1.msra.mxu0 %v1599
    %1957 = vmatprep.subr.mxu0 0.0
    %1958 = vmatpush1.msra.mxu0 %v1598
    %1959 = vmatprep.subr.mxu0 0.0
    %1960 = vmatpush1.msra.mxu0 %v1597
    %1961 = vmatprep.subr.mxu0 0.0
    %1962 = vmatpush2.msra.mxu0 0.0
    %1963 = vmatprep.subr.mxu0 0.0
    %1964 = vmatpush2.msra.mxu0 0.0
    %1965 = vmatprep.subr.mxu0 0.0
    %1966 = vmatpush2.msra.mxu0 0.0
    %1967 = vmatprep.subr.mxu0 0.0
    %1968 = vmatpush2.msra.mxu0 0.0
    %1969 = vmatprep.subr.mxu0 0.0
    %1970 = vmatpush2.msra.mxu0 0.0
    %1971 = vmatprep.subr.mxu0 0.0
    %1972 = vmatpush2.msra.mxu0 0.0
    %1973 = vmatprep.subr.mxu0 0.0
    %1974 = vmatpush2.msra.mxu0 0.0
    %1975 = vmatprep.subr.mxu0 0.0
    %1976 = vmatpush2.msra.mxu0 0.0
    %1977 = vmatprep.subr.mxu0 0.0
    %1978 = vmatpush2.msra.mxu0 0.0
    %1979 = vmatprep.subr.mxu0 0.0
    %1980 = vmatpush2.msra.mxu0 0.0
    %1981 = vmatprep.subr.mxu0 0.0
    %1982 = vmatpush2.msra.mxu0 0.0
    %1983 = vmatprep.subr.mxu0 0.0
    %1984 = vmatpush2.msra.mxu0 0.0
    %1985 = vmatprep.subr.mxu0 0.0
    %1986 = vmatpush2.msra.mxu0 0.0
    %1987 = vmatprep.subr.mxu0 0.0
    %1988 = vmatpush2.msra.mxu0 0.0
    %1989 = vmatprep.subr.mxu0 0.0
    %1990 = vmatpush2.msra.mxu0 0.0
    %1991 = vmatprep.subr.mxu0 0.0
    %1992 = vmatpush2.msra.mxu0 0.0
    %1993 = vmatprep.mubr.f32.mxu0 0.0
    %1994 = vmatmul.mubr.f32.gmra.mxu0 %v1927
    %v1995 = vpop.f32.mrf.mxu0
    %v1996 = vadd.f32 0.0, %v1995
    %v1997 = vpop.f32.mrf.mxu0
    %1998 = vdwg.mxu0
    %v2000 = vrot.slane %v1996, 2
    %v2002 = vadd.f32 %v1588, %v2000
    %v2003 = vxor.u32 %v2002, 2147483648
    %v2004 = vmul.f32 %v2003, 1.442695
    %v2005 = vpow.pop %v2004
    %v2006 = vadd.f32 %v2005, 1.0
    %v2007 = vrcp.pop %v2006
    %v2008 = vmul.f32 1.0, %v2007
    %v2009 = vadd.f32 %v1996, %v1684
    %v2011 = vrot.slane %v2009, 2
    %2012 = vrot.lane.b32.xlu0 %v2011, 64
    %v2013 = vpop.permute.xlu0 %2012
    %v2015 = vmul.f32 %v2008, %v2013
    %2017 = vrot.lane.b32.xlu0 %v2015, 64
    %v2018 = vpop.permute.xlu0 %2017
    %v2020 = vadd.f32 %v1588, %v2018
    %v2021 = vtanh.pop %v2020
    %v2022 = vsub.f32 1.0, %v2008
    %2024 = vrot.lane.b32.xlu0 %v2021, 96
    %v2025 = vpop.permute.xlu0 %2024
    %v2027 = vmul.f32 %v2022, %v2025
    %v2028 = vrot.slane %v1922, 6
    %v2030 = vmul.f32 %v2008, %v2028
    %v2031 = vadd.f32 %v2027, %v2030
    %v2033 = vrot.slane %v2031, 6
    %2034 = vrot.lane.b32.xlu0 %v2033, 96
    %v2035 = vpop.permute.xlu0 %2034
    %v2036 = vsel %vm132, %v2035, 0
    %2038 = vmatprep.subr.mxu0 0.0
    %2039 = vmatpush1.msra.mxu0 0.0
    %2040 = vmatprep.subr.mxu0 0.0
    %2041 = vmatpush1.msra.mxu0 0.0
    %2042 = vmatprep.subr.mxu0 0.0
    %2043 = vmatpush1.msra.mxu0 0.0
    %2044 = vmatprep.subr.mxu0 0.0
    %2045 = vmatpush1.msra.mxu0 0.0
    %2046 = vmatprep.subr.mxu0 0.0
    %2047 = vmatpush1.msra.mxu0 0.0
    %2048 = vmatprep.subr.mxu0 0.0
    %2049 = vmatpush1.msra.mxu0 0.0
    %2050 = vmatprep.subr.mxu0 0.0
    %2051 = vmatpush1.msra.mxu0 0.0
    %2052 = vmatprep.subr.mxu0 0.0
    %2053 = vmatpush1.msra.mxu0 0.0
    %2054 = vmatprep.subr.mxu0 0.0
    %2055 = vmatpush1.msra.mxu0 0.0
    %2056 = vmatprep.subr.mxu0 0.0
    %2057 = vmatpush1.msra.mxu0 0.0
    %2058 = vmatprep.subr.mxu0 0.0
    %2059 = vmatpush1.msra.mxu0 0.0
    %2060 = vmatprep.subr.mxu0 0.0
    %2061 = vmatpush1.msra.mxu0 0.0
    %2062 = vmatprep.subr.mxu0 0.0
    %2063 = vmatpush1.msra.mxu0 %v1600
    %2064 = vmatprep.subr.mxu0 0.0
    %2065 = vmatpush1.msra.mxu0 %v1599
    %2066 = vmatprep.subr.mxu0 0.0
    %2067 = vmatpush1.msra.mxu0 %v1598
    %2068 = vmatprep.subr.mxu0 0.0
    %2069 = vmatpush1.msra.mxu0 %v1597
    %2070 = vmatprep.subr.mxu0 0.0
    %2071 = vmatpush2.msra.mxu0 0.0
    %2072 = vmatprep.subr.mxu0 0.0
    %2073 = vmatpush2.msra.mxu0 0.0
    %2074 = vmatprep.subr.mxu0 0.0
    %2075 = vmatpush2.msra.mxu0 0.0
    %2076 = vmatprep.subr.mxu0 0.0
    %2077 = vmatpush2.msra.mxu0 0.0
    %2078 = vmatprep.subr.mxu0 0.0
    %2079 = vmatpush2.msra.mxu0 0.0
    %2080 = vmatprep.subr.mxu0 0.0
    %2081 = vmatpush2.msra.mxu0 0.0
    %2082 = vmatprep.subr.mxu0 0.0
    %2083 = vmatpush2.msra.mxu0 0.0
    %2084 = vmatprep.subr.mxu0 0.0
    %2085 = vmatpush2.msra.mxu0 0.0
    %2086 = vmatprep.subr.mxu0 0.0
    %2087 = vmatpush2.msra.mxu0 0.0
    %2088 = vmatprep.subr.mxu0 0.0
    %2089 = vmatpush2.msra.mxu0 0.0
    %2090 = vmatprep.subr.mxu0 0.0
    %2091 = vmatpush2.msra.mxu0 0.0
    %2092 = vmatprep.subr.mxu0 0.0
    %2093 = vmatpush2.msra.mxu0 0.0
    %2094 = vmatprep.subr.mxu0 0.0
    %2095 = vmatpush2.msra.mxu0 0.0
    %2096 = vmatprep.subr.mxu0 0.0
    %2097 = vmatpush2.msra.mxu0 0.0
    %2098 = vmatprep.subr.mxu0 0.0
    %2099 = vmatpush2.msra.mxu0 0.0
    %2100 = vmatprep.subr.mxu0 0.0
    %2101 = vmatpush2.msra.mxu0 0.0
    %2102 = vmatprep.mubr.f32.mxu0 0.0
    %2103 = vmatmul.mubr.f32.gmra.mxu0 %v2036
    %v2104 = vpop.f32.mrf.mxu0
    %v2105 = vadd.f32 0.0, %v2104
    %v2106 = vpop.f32.mrf.mxu0
    %2107 = vdwg.mxu0
    %v2108 = vadd.f32 %v1593, %v2105
    %v2109 = vxor.u32 %v2108, 2147483648
    %v2110 = vmul.f32 %v2109, 1.442695
    %v2111 = vpow.pop %v2110
    %v2112 = vadd.f32 %v2111, 1.0
    %v2113 = vrcp.pop %v2112
    %v2114 = vmul.f32 1.0, %v2113
    %v2115 = vadd.f32 %v2105, %v1684
    %2117 = vrot.lane.b32.xlu0 %v2115, 64
    %v2118 = vpop.permute.xlu0 %2117
    %v2120 = vmul.f32 %v2114, %v2118
    %2122 = vrot.lane.b32.xlu0 %v2120, 64
    %v2123 = vpop.permute.xlu0 %2122
    %v2125 = vadd.f32 %v1593, %v2123
    %v2126 = vtanh.pop %v2125
    %v2127 = vsub.f32 1.0, %v2114
    %2129 = vrot.lane.b32.xlu0 %v2126, 96
    %v2130 = vpop.permute.xlu0 %2129
    %v2132 = vmul.f32 %v2127, %v2130
    %v2134 = vmul.f32 %v2114, %v2033
    %v2135 = vadd.f32 %v2132, %v2134
    %2137 = vrot.lane.b32.xlu0 %v2135, 96
    %v2138 = vpop.permute.xlu0 %2137
    %v2139 = vsel %vm132, %v2138, 0
    %2141 = vmatprep.subr.mxu0 0.0
    %2142 = vmatpush1.msra.mxu0 0.0
    %2143 = vmatprep.subr.mxu0 0.0
    %2144 = vmatpush1.msra.mxu0 0.0
    %2145 = vmatprep.subr.mxu0 0.0
    %2146 = vmatpush1.msra.mxu0 0.0
    %2147 = vmatprep.subr.mxu0 0.0
    %2148 = vmatpush1.msra.mxu0 0.0
    %2149 = vmatprep.subr.mxu0 0.0
    %2150 = vmatpush1.msra.mxu0 0.0
    %2151 = vmatprep.subr.mxu0 0.0
    %2152 = vmatpush1.msra.mxu0 0.0
    %2153 = vmatprep.subr.mxu0 0.0
    %2154 = vmatpush1.msra.mxu0 0.0
    %2155 = vmatprep.subr.mxu0 0.0
    %2156 = vmatpush1.msra.mxu0 0.0
    %2157 = vmatprep.subr.mxu0 0.0
    %2158 = vmatpush1.msra.mxu0 0.0
    %2159 = vmatprep.subr.mxu0 0.0
    %2160 = vmatpush1.msra.mxu0 0.0
    %2161 = vmatprep.subr.mxu0 0.0
    %2162 = vmatpush1.msra.mxu0 0.0
    %2163 = vmatprep.subr.mxu0 0.0
    %2164 = vmatpush1.msra.mxu0 0.0
    %2165 = vmatprep.subr.mxu0 0.0
    %2166 = vmatpush1.msra.mxu0 %v1600
    %2167 = vmatprep.subr.mxu0 0.0
    %2168 = vmatpush1.msra.mxu0 %v1599
    %2169 = vmatprep.subr.mxu0 0.0
    %2170 = vmatpush1.msra.mxu0 %v1598
    %2171 = vmatprep.subr.mxu0 0.0
    %2172 = vmatpush1.msra.mxu0 %v1597
    %2173 = vmatprep.subr.mxu0 0.0
    %2174 = vmatpush2.msra.mxu0 0.0
    %2175 = vmatprep.subr.mxu0 0.0
    %2176 = vmatpush2.msra.mxu0 0.0
    %2177 = vmatprep.subr.mxu0 0.0
    %2178 = vmatpush2.msra.mxu0 0.0
    %2179 = vmatprep.subr.mxu0 0.0
    %2180 = vmatpush2.msra.mxu0 0.0
    %2181 = vmatprep.subr.mxu0 0.0
    %2182 = vmatpush2.msra.mxu0 0.0
    %2183 = vmatprep.subr.mxu0 0.0
    %2184 = vmatpush2.msra.mxu0 0.0
    %2185 = vmatprep.subr.mxu0 0.0
    %2186 = vmatpush2.msra.mxu0 0.0
    %2187 = vmatprep.subr.mxu0 0.0
    %2188 = vmatpush2.msra.mxu0 0.0
    %2189 = vmatprep.subr.mxu0 0.0
    %2190 = vmatpush2.msra.mxu0 0.0
    %2191 = vmatprep.subr.mxu0 0.0
    %2192 = vmatpush2.msra.mxu0 0.0
    %2193 = vmatprep.subr.mxu0 0.0
    %2194 = vmatpush2.msra.mxu0 0.0
    %2195 = vmatprep.subr.mxu0 0.0
    %2196 = vmatpush2.msra.mxu0 0.0
    %2197 = vmatprep.subr.mxu0 0.0
    %2198 = vmatpush2.msra.mxu0 0.0
    %2199 = vmatprep.subr.mxu0 0.0
    %2200 = vmatpush2.msra.mxu0 0.0
    %2201 = vmatprep.subr.mxu0 0.0
    %2202 = vmatpush2.msra.mxu0 0.0
    %2203 = vmatprep.subr.mxu0 0.0
    %2204 = vmatpush2.msra.mxu0 0.0
    %2205 = vmatprep.mubr.f32.mxu0 0.0
    %2206 = vmatmul.mubr.f32.gmra.mxu0 %v2139
    %v2207 = vpop.f32.mrf.mxu0
    %v2208 = vadd.f32 0.0, %v2207
    %v2209 = vpop.f32.mrf.mxu0
    %2210 = vdwg.mxu0
    %v2212 = vrot.slane %v2208, 6
    %v2214 = vadd.f32 %v1593, %v2212
    %v2215 = vxor.u32 %v2214, 2147483648
    %v2216 = vmul.f32 %v2215, 1.442695
    %v2217 = vpow.pop %v2216
    %v2218 = vadd.f32 %v2217, 1.0
    %v2219 = vrcp.pop %v2218
    %v2220 = vmul.f32 1.0, %v2219
    %v2221 = vadd.f32 %v2208, %v1684
    %v2223 = vrot.slane %v2221, 6
    %2224 = vrot.lane.b32.xlu0 %v2223, 64
    %v2225 = vpop.permute.xlu0 %2224
    %v2227 = vmul.f32 %v2220, %v2225
    %2229 = vrot.lane.b32.xlu0 %v2227, 64
    %v2230 = vpop.permute.xlu0 %2229
    %v2232 = vadd.f32 %v1593, %v2230
    %v2233 = vtanh.pop %v2232
    %v2234 = vsub.f32 1.0, %v2220
    %2236 = vrot.lane.b32.xlu0 %v2233, 96
    %v2237 = vpop.permute.xlu0 %2236
    %v2239 = vmul.f32 %v2234, %v2237
    %v2240 = vrot.slane %v2135, 6
    %v2242 = vmul.f32 %v2220, %v2240
    %v2243 = vadd.f32 %v2239, %v2242
    %v2245 = vrot.slane %v2243, 2
    %2246 = vrot.lane.b32.xlu0 %v2245, 96
    %v2247 = vpop.permute.xlu0 %2246
    %v2248 = vsel %vm132, %v2247, 0
    %2250 = vmatprep.subr.mxu0 0.0
    %2251 = vmatpush1.msra.mxu0 0.0
    %2252 = vmatprep.subr.mxu0 0.0
    %2253 = vmatpush1.msra.mxu0 0.0
    %2254 = vmatprep.subr.mxu0 0.0
    %2255 = vmatpush1.msra.mxu0 0.0
    %2256 = vmatprep.subr.mxu0 0.0
    %2257 = vmatpush1.msra.mxu0 0.0
    %2258 = vmatprep.subr.mxu0 0.0
    %2259 = vmatpush1.msra.mxu0 0.0
    %2260 = vmatprep.subr.mxu0 0.0
    %2261 = vmatpush1.msra.mxu0 0.0
    %2262 = vmatprep.subr.mxu0 0.0
    %2263 = vmatpush1.msra.mxu0 0.0
    %2264 = vmatprep.subr.mxu0 0.0
    %2265 = vmatpush1.msra.mxu0 0.0
    %2266 = vmatprep.subr.mxu0 0.0
    %2267 = vmatpush1.msra.mxu0 0.0
    %2268 = vmatprep.subr.mxu0 0.0
    %2269 = vmatpush1.msra.mxu0 0.0
    %2270 = vmatprep.subr.mxu0 0.0
    %2271 = vmatpush1.msra.mxu0 0.0
    %2272 = vmatprep.subr.mxu0 0.0
    %2273 = vmatpush1.msra.mxu0 0.0
    %2274 = vmatprep.subr.mxu0 0.0
    %2275 = vmatpush1.msra.mxu0 %v1600
    %2276 = vmatprep.subr.mxu0 0.0
    %2277 = vmatpush1.msra.mxu0 %v1599
    %2278 = vmatprep.subr.mxu0 0.0
    %2279 = vmatpush1.msra.mxu0 %v1598
    %2280 = vmatprep.subr.mxu0 0.0
    %2281 = vmatpush1.msra.mxu0 %v1597
    %2282 = vmatprep.subr.mxu0 0.0
    %2283 = vmatpush2.msra.mxu0 0.0
    %2284 = vmatprep.subr.mxu0 0.0
    %2285 = vmatpush2.msra.mxu0 0.0
    %2286 = vmatprep.subr.mxu0 0.0
    %2287 = vmatpush2.msra.mxu0 0.0
    %2288 = vmatprep.subr.mxu0 0.0
    %2289 = vmatpush2.msra.mxu0 0.0
    %2290 = vmatprep.subr.mxu0 0.0
    %2291 = vmatpush2.msra.mxu0 0.0
    %2292 = vmatprep.subr.mxu0 0.0
    %2293 = vmatpush2.msra.mxu0 0.0
    %2294 = vmatprep.subr.mxu0 0.0
    %2295 = vmatpush2.msra.mxu0 0.0
    %2296 = vmatprep.subr.mxu0 0.0
    %2297 = vmatpush2.msra.mxu0 0.0
    %2298 = vmatprep.subr.mxu0 0.0
    %2299 = vmatpush2.msra.mxu0 0.0
    %2300 = vmatprep.subr.mxu0 0.0
    %2301 = vmatpush2.msra.mxu0 0.0
    %2302 = vmatprep.subr.mxu0 0.0
    %2303 = vmatpush2.msra.mxu0 0.0
    %2304 = vmatprep.subr.mxu0 0.0
    %2305 = vmatpush2.msra.mxu0 0.0
    %2306 = vmatprep.subr.mxu0 0.0
    %2307 = vmatpush2.msra.mxu0 0.0
    %2308 = vmatprep.subr.mxu0 0.0
    %2309 = vmatpush2.msra.mxu0 0.0
    %2310 = vmatprep.subr.mxu0 0.0
    %2311 = vmatpush2.msra.mxu0 0.0
    %2312 = vmatprep.subr.mxu0 0.0
    %2313 = vmatpush2.msra.mxu0 0.0
    %2314 = vmatprep.mubr.f32.mxu0 0.0
    %2315 = vmatmul.mubr.f32.gmra.mxu0 %v2248
    %v2316 = vpop.f32.mrf.mxu0
    %v2317 = vadd.f32 0.0, %v2316
    %v2318 = vpop.f32.mrf.mxu0
    %2319 = vdwg.mxu0
    %v2321 = vrot.slane %v2317, 4
    %v2323 = vadd.f32 %v1593, %v2321
    %v2324 = vxor.u32 %v2323, 2147483648
    %v2325 = vmul.f32 %v2324, 1.442695
    %v2326 = vpow.pop %v2325
    %v2327 = vadd.f32 %v2326, 1.0
    %v2328 = vrcp.pop %v2327
    %v2329 = vmul.f32 1.0, %v2328
    %v2330 = vadd.f32 %v2317, %v1684
    %v2332 = vrot.slane %v2330, 4
    %2333 = vrot.lane.b32.xlu0 %v2332, 64
    %v2334 = vpop.permute.xlu0 %2333
    %v2336 = vmul.f32 %v2329, %v2334
    %2338 = vrot.lane.b32.xlu0 %v2336, 64
    %v2339 = vpop.permute.xlu0 %2338
    %v2341 = vadd.f32 %v1593, %v2339
    %v2342 = vtanh.pop %v2341
    %v2343 = vsub.f32 1.0, %v2329
    %2345 = vrot.lane.b32.xlu0 %v2342, 96
    %v2346 = vpop.permute.xlu0 %2345
    %v2348 = vmul.f32 %v2343, %v2346
    %v2349 = vrot.slane %v2243, 6
    %v2351 = vmul.f32 %v2329, %v2349
    %v2352 = vadd.f32 %v2348, %v2351
    %v2354 = vrot.slane %v2352, 4
    %2355 = vrot.lane.b32.xlu0 %v2354, 96
    %v2356 = vpop.permute.xlu0 %2355
    %v2357 = vsel %vm132, %v2356, 0
    %2359 = vmatprep.subr.mxu0 0.0
    %2360 = vmatpush1.msra.mxu0 0.0
    %2361 = vmatprep.subr.mxu0 0.0
    %2362 = vmatpush1.msra.mxu0 0.0
    %2363 = vmatprep.subr.mxu0 0.0
    %2364 = vmatpush1.msra.mxu0 0.0
    %2365 = vmatprep.subr.mxu0 0.0
    %2366 = vmatpush1.msra.mxu0 0.0
    %2367 = vmatprep.subr.mxu0 0.0
    %2368 = vmatpush1.msra.mxu0 0.0
    %2369 = vmatprep.subr.mxu0 0.0
    %2370 = vmatpush1.msra.mxu0 0.0
    %2371 = vmatprep.subr.mxu0 0.0
    %2372 = vmatpush1.msra.mxu0 0.0
    %2373 = vmatprep.subr.mxu0 0.0
    %2374 = vmatpush1.msra.mxu0 0.0
    %2375 = vmatprep.subr.mxu0 0.0
    %2376 = vmatpush1.msra.mxu0 0.0
    %2377 = vmatprep.subr.mxu0 0.0
    %2378 = vmatpush1.msra.mxu0 0.0
    %2379 = vmatprep.subr.mxu0 0.0
    %2380 = vmatpush1.msra.mxu0 0.0
    %2381 = vmatprep.subr.mxu0 0.0
    %2382 = vmatpush1.msra.mxu0 0.0
    %2383 = vmatprep.subr.mxu0 0.0
    %2384 = vmatpush1.msra.mxu0 %v1600
    %2385 = vmatprep.subr.mxu0 0.0
    %2386 = vmatpush1.msra.mxu0 %v1599
    %2387 = vmatprep.subr.mxu0 0.0
    %2388 = vmatpush1.msra.mxu0 %v1598
    %2389 = vmatprep.subr.mxu0 0.0
    %2390 = vmatpush1.msra.mxu0 %v1597
    %2391 = vmatprep.subr.mxu0 0.0
    %2392 = vmatpush2.msra.mxu0 0.0
    %2393 = vmatprep.subr.mxu0 0.0
    %2394 = vmatpush2.msra.mxu0 0.0
    %2395 = vmatprep.subr.mxu0 0.0
    %2396 = vmatpush2.msra.mxu0 0.0
    %2397 = vmatprep.subr.mxu0 0.0
    %2398 = vmatpush2.msra.mxu0 0.0
    %2399 = vmatprep.subr.mxu0 0.0
    %2400 = vmatpush2.msra.mxu0 0.0
    %2401 = vmatprep.subr.mxu0 0.0
    %2402 = vmatpush2.msra.mxu0 0.0
    %2403 = vmatprep.subr.mxu0 0.0
    %2404 = vmatpush2.msra.mxu0 0.0
    %2405 = vmatprep.subr.mxu0 0.0
    %2406 = vmatpush2.msra.mxu0 0.0
    %2407 = vmatprep.subr.mxu0 0.0
    %2408 = vmatpush2.msra.mxu0 0.0
    %2409 = vmatprep.subr.mxu0 0.0
    %2410 = vmatpush2.msra.mxu0 0.0
    %2411 = vmatprep.subr.mxu0 0.0
    %2412 = vmatpush2.msra.mxu0 0.0
    %2413 = vmatprep.subr.mxu0 0.0
    %2414 = vmatpush2.msra.mxu0 0.0
    %2415 = vmatprep.subr.mxu0 0.0
    %2416 = vmatpush2.msra.mxu0 0.0
    %2417 = vmatprep.subr.mxu0 0.0
    %2418 = vmatpush2.msra.mxu0 0.0
    %2419 = vmatprep.subr.mxu0 0.0
    %2420 = vmatpush2.msra.mxu0 0.0
    %2421 = vmatprep.subr.mxu0 0.0
    %2422 = vmatpush2.msra.mxu0 0.0
    %2423 = vmatprep.mubr.f32.mxu0 0.0
    %2424 = vmatmul.mubr.f32.gmra.mxu0 %v2357
    %v2425 = vpop.f32.mrf.mxu0
    %v2426 = vadd.f32 0.0, %v2425
    %v2427 = vpop.f32.mrf.mxu0
    %2428 = vdwg.mxu0
    %v2430 = vrot.slane %v2426, 2
    %v2432 = vadd.f32 %v1593, %v2430
    %v2433 = vxor.u32 %v2432, 2147483648
    %v2434 = vmul.f32 %v2433, 1.442695
    %v2435 = vpow.pop %v2434
    %v2436 = vadd.f32 %v2435, 1.0
    %v2437 = vrcp.pop %v2436
    %v2438 = vmul.f32 1.0, %v2437
    %v2439 = vadd.f32 %v2426, %v1684
    %v2441 = vrot.slane %v2439, 2
    %2442 = vrot.lane.b32.xlu0 %v2441, 64
    %v2443 = vpop.permute.xlu0 %2442
    %v2445 = vmul.f32 %v2438, %v2443
    %2447 = vrot.lane.b32.xlu0 %v2445, 64
    %v2448 = vpop.permute.xlu0 %2447
    %v2450 = vadd.f32 %v1593, %v2448
    %v2451 = vtanh.pop %v2450
    %v2452 = vsub.f32 1.0, %v2438
    %2454 = vrot.lane.b32.xlu0 %v2451, 96
    %v2455 = vpop.permute.xlu0 %2454
    %v2457 = vmul.f32 %v2452, %v2455
    %v2458 = vrot.slane %v2352, 6
    %v2460 = vmul.f32 %v2438, %v2458
    %v2461 = vadd.f32 %v2457, %v2460
    %v2462 = vrot.slane %v1288, 6
    %v2464 = vrot.slane %v1390, 4
    %v2467 = vrot.slane %v1492, 2
    %v2469 = vsel %vm1493, %v1186, %v2462
    %v2470 = vsel %vm1495, %v2469, %v2464
    %v2471 = vsel %vm1497, %v2470, %v2467
    %s2472 = scalar_lea.vmem %s3, 128
    %v2473 = vld [vmem:[%s2472] sm:$0xff]
    %v2474 = vld [vmem:[%s2472 + $0x8] sm:$0xff]
    %v2475 = vld [vmem:[%s2472 + $0x10] sm:$0xff]
    %v2476 = vld [vmem:[%s2472 + $0x18] sm:$0xff]
    %2478 = vrot.lane.b32.xlu0 %v2471, 96
    %v2479 = vpop.permute.xlu0 %2478
    %v2480 = vsel %vm132, %v2479, 0
    %2482 = vmatprep.subr.mxu0 0.0
    %2483 = vmatpush1.msra.mxu0 0.0
    %2484 = vmatprep.subr.mxu0 0.0
    %2485 = vmatpush1.msra.mxu0 0.0
    %2486 = vmatprep.subr.mxu0 0.0
    %2487 = vmatpush1.msra.mxu0 0.0
    %2488 = vmatprep.subr.mxu0 0.0
    %2489 = vmatpush1.msra.mxu0 0.0
    %2490 = vmatprep.subr.mxu0 0.0
    %2491 = vmatpush1.msra.mxu0 0.0
    %2492 = vmatprep.subr.mxu0 0.0
    %2493 = vmatpush1.msra.mxu0 0.0
    %2494 = vmatprep.subr.mxu0 0.0
    %2495 = vmatpush1.msra.mxu0 0.0
    %2496 = vmatprep.subr.mxu0 0.0
    %2497 = vmatpush1.msra.mxu0 0.0
    %2498 = vmatprep.subr.mxu0 0.0
    %2499 = vmatpush1.msra.mxu0 0.0
    %2500 = vmatprep.subr.mxu0 0.0
    %2501 = vmatpush1.msra.mxu0 0.0
    %2502 = vmatprep.subr.mxu0 0.0
    %2503 = vmatpush1.msra.mxu0 0.0
    %2504 = vmatprep.subr.mxu0 0.0
    %2505 = vmatpush1.msra.mxu0 0.0
    %2506 = vmatprep.subr.mxu0 0.0
    %2507 = vmatpush1.msra.mxu0 %v2476
    %2508 = vmatprep.subr.mxu0 0.0
    %2509 = vmatpush1.msra.mxu0 %v2475
    %2510 = vmatprep.subr.mxu0 0.0
    %2511 = vmatpush1.msra.mxu0 %v2474
    %2512 = vmatprep.subr.mxu0 0.0
    %2513 = vmatpush1.msra.mxu0 %v2473
    %2514 = vmatprep.subr.mxu0 0.0
    %2515 = vmatpush2.msra.mxu0 0.0
    %2516 = vmatprep.subr.mxu0 0.0
    %2517 = vmatpush2.msra.mxu0 0.0
    %2518 = vmatprep.subr.mxu0 0.0
    %2519 = vmatpush2.msra.mxu0 0.0
    %2520 = vmatprep.subr.mxu0 0.0
    %2521 = vmatpush2.msra.mxu0 0.0
    %2522 = vmatprep.subr.mxu0 0.0
    %2523 = vmatpush2.msra.mxu0 0.0
    %2524 = vmatprep.subr.mxu0 0.0
    %2525 = vmatpush2.msra.mxu0 0.0
    %2526 = vmatprep.subr.mxu0 0.0
    %2527 = vmatpush2.msra.mxu0 0.0
    %2528 = vmatprep.subr.mxu0 0.0
    %2529 = vmatpush2.msra.mxu0 0.0
    %2530 = vmatprep.subr.mxu0 0.0
    %2531 = vmatpush2.msra.mxu0 0.0
    %2532 = vmatprep.subr.mxu0 0.0
    %2533 = vmatpush2.msra.mxu0 0.0
    %2534 = vmatprep.subr.mxu0 0.0
    %2535 = vmatpush2.msra.mxu0 0.0
    %2536 = vmatprep.subr.mxu0 0.0
    %2537 = vmatpush2.msra.mxu0 0.0
    %2538 = vmatprep.subr.mxu0 0.0
    %2539 = vmatpush2.msra.mxu0 0.0
    %2540 = vmatprep.subr.mxu0 0.0
    %2541 = vmatpush2.msra.mxu0 0.0
    %2542 = vmatprep.subr.mxu0 0.0
    %2543 = vmatpush2.msra.mxu0 0.0
    %2544 = vmatprep.subr.mxu0 0.0
    %2545 = vmatpush2.msra.mxu0 0.0
    %2546 = vmatprep.mubr.f32.mxu0 0.0
    %2547 = vmatmul.mubr.f32.gmra.mxu0 %v2480
    %v2548 = vpop.f32.mrf.mxu0
    %v2549 = vadd.f32 %v1510, %v2548
    %v2550 = vpop.f32.mrf.mxu0
    %2551 = vdwg.mxu0
    %v2556 = vld [vmem:[%s1] sm:$0xff]
    %v2557 = vlaneseq
    %v2558 = vand.u32 %v2557, 127
    %s2559 = scalar_lea.vmem %s3, 160
    %v2560 = vld [vmem:[%s2559] sm:$0xff]
    %v2561 = vld [vmem:[%s2559 + $0x8] sm:$0xff]
    %v2562 = vld [vmem:[%s2559 + $0x10] sm:$0xff]
    %v2563 = vld [vmem:[%s2559 + $0x18] sm:$0xff]
    %v2565 = vrot.slane %v2461, 6
    %v2567 = vmul.f32 %v326, %v2565
    %v2568 = vmul.f32 %v436, %v2565
    %v2569 = vmul.f32 %v545, %v2565
    %v2570 = vmul.f32 %v654, %v2565
    %v2571 = vmul.f32 %v756, %v2565
    %v2572 = vmul.f32 %v866, %v2565
    %v2573 = vmul.f32 %v975, %v2565
    %v2574 = vmul.f32 %v1084, %v2565
    %2583 = vrot.lane.b32.xlu0 %v2567, 96
    %v2584 = vpop.permute.xlu0 %2583
    %2585 = vrot.lane.b32.xlu0 %v2568, 96
    %v2586 = vpop.permute.xlu0 %2585
    %2587 = vrot.lane.b32.xlu0 %v2569, 96
    %v2588 = vpop.permute.xlu0 %2587
    %2589 = vrot.lane.b32.xlu0 %v2570, 96
    %v2590 = vpop.permute.xlu0 %2589
    %2591 = vrot.lane.b32.xlu0 %v2571, 96
    %v2592 = vpop.permute.xlu0 %2591
    %2593 = vrot.lane.b32.xlu0 %v2572, 96
    %v2594 = vpop.permute.xlu0 %2593
    %2595 = vrot.lane.b32.xlu0 %v2573, 96
    %v2596 = vpop.permute.xlu0 %2595
    %2597 = vrot.lane.b32.xlu0 %v2574, 96
    %v2598 = vpop.permute.xlu0 %2597
    %vm2607 = vcmask 254976
    %v2608 = vsel %vm2607, %v2584, 0.0
    %2609 = vadd.xlane.f32.xlu0 %v2608
    %v2610 = vpop.xlane.xlu0 %2609
    %v2611 = vsel %vm2607, %v2586, 0.0
    %2612 = vadd.xlane.f32.xlu0 %v2611
    %v2613 = vpop.xlane.xlu0 %2612
    %v2614 = vsel %vm2607, %v2588, 0.0
    %2615 = vadd.xlane.f32.xlu0 %v2614
    %v2616 = vpop.xlane.xlu0 %2615
    %v2617 = vsel %vm2607, %v2590, 0.0
    %2618 = vadd.xlane.f32.xlu0 %v2617
    %v2619 = vpop.xlane.xlu0 %2618
    %v2620 = vsel %vm2607, %v2592, 0.0
    %2621 = vadd.xlane.f32.xlu0 %v2620
    %v2622 = vpop.xlane.xlu0 %2621
    %v2623 = vsel %vm2607, %v2594, 0.0
    %2624 = vadd.xlane.f32.xlu0 %v2623
    %v2625 = vpop.xlane.xlu0 %2624
    %v2626 = vsel %vm2607, %v2596, 0.0
    %2627 = vadd.xlane.f32.xlu0 %v2626
    %v2628 = vpop.xlane.xlu0 %2627
    %v2629 = vsel %vm2607, %v2598, 0.0
    %2630 = vadd.xlane.f32.xlu0 %v2629
    %v2631 = vpop.xlane.xlu0 %2630
    %v2632 = vtanh.pop %v2610
    %v2633 = vtanh.pop %v2613
    %v2634 = vtanh.pop %v2616
    %v2635 = vtanh.pop %v2619
    %v2636 = vtanh.pop %v2622
    %v2637 = vtanh.pop %v2625
    %v2638 = vtanh.pop %v2628
    %v2639 = vtanh.pop %v2631
    %v2640 = vsel %vm1493, %v2632, -inf
    %v2641 = vsel %vm1493, %v2633, -inf
    %v2642 = vsel %vm1493, %v2634, -inf
    %v2643 = vsel %vm1493, %v2635, -inf
    %v2644 = vsel %vm1493, %v2636, -inf
    %v2645 = vmax.f32 %v2640, %v2644
    %v2646 = vsel %vm1493, %v2637, -inf
    %v2647 = vmax.f32 %v2641, %v2646
    %v2648 = vsel %vm1493, %v2638, -inf
    %v2649 = vmax.f32 %v2642, %v2648
    %v2650 = vsel %vm1493, %v2639, -inf
    %v2651 = vmax.f32 %v2643, %v2650
    %v2652 = vmax.f32 %v2645, %v2647
    %v2653 = vmax.f32 %v2649, %v2651
    %v2654 = vmax.f32 %v2652, %v2653
    %v2655 = vsub.f32 %v2632, %v2654
    %v2656 = vsub.f32 %v2633, %v2654
    %v2657 = vsub.f32 %v2634, %v2654
    %v2658 = vsub.f32 %v2635, %v2654
    %v2659 = vsub.f32 %v2636, %v2654
    %v2660 = vsub.f32 %v2637, %v2654
    %v2661 = vsub.f32 %v2638, %v2654
    %v2662 = vsub.f32 %v2639, %v2654
    %v2663 = vmul.f32 %v2655, 1.442695
    %v2664 = vpow.pop %v2663
    %v2665 = vmul.f32 %v2656, 1.442695
    %v2666 = vpow.pop %v2665
    %v2667 = vmul.f32 %v2657, 1.442695
    %v2668 = vpow.pop %v2667
    %v2669 = vmul.f32 %v2658, 1.442695
    %v2670 = vpow.pop %v2669
    %v2671 = vmul.f32 %v2659, 1.442695
    %v2672 = vpow.pop %v2671
    %v2673 = vmul.f32 %v2660, 1.442695
    %v2674 = vpow.pop %v2673
    %v2675 = vmul.f32 %v2661, 1.442695
    %v2676 = vpow.pop %v2675
    %v2677 = vmul.f32 %v2662, 1.442695
    %v2678 = vpow.pop %v2677
    %v2679 = vsel %vm1493, %v2664, 0.0
    %v2680 = vsel %vm1493, %v2666, 0.0
    %v2681 = vadd.f32 %v2679, %v2680
    %v2682 = vsel %vm1493, %v2668, 0.0
    %v2683 = vadd.f32 %v2681, %v2682
    %v2684 = vsel %vm1493, %v2670, 0.0
    %v2685 = vadd.f32 %v2683, %v2684
    %v2686 = vsel %vm1493, %v2672, 0.0
    %v2687 = vadd.f32 %v2685, %v2686
    %v2688 = vsel %vm1493, %v2674, 0.0
    %v2689 = vadd.f32 %v2687, %v2688
    %v2690 = vsel %vm1493, %v2676, 0.0
    %v2691 = vadd.f32 %v2689, %v2690
    %v2692 = vsel %vm1493, %v2678, 0.0
    %v2693 = vadd.f32 %v2691, %v2692
    %v2694 = vrcp.pop %v2693
    %v2695 = vmul.f32 %v2664, %v2694
    %v2696 = vmul.f32 %v2666, %v2694
    %v2697 = vmul.f32 %v2668, %v2694
    %v2698 = vmul.f32 %v2670, %v2694
    %v2699 = vmul.f32 %v2672, %v2694
    %v2700 = vmul.f32 %v2674, %v2694
    %v2701 = vmul.f32 %v2676, %v2694
    %v2702 = vmul.f32 %v2678, %v2694
    %v2703 = vmul.f32 %v2695, %v326
    %v2704 = vmul.f32 %v2696, %v436
    %v2705 = vmul.f32 %v2697, %v545
    %v2706 = vmul.f32 %v2698, %v654
    %v2707 = vmul.f32 %v2699, %v756
    %v2708 = vmul.f32 %v2700, %v866
    %v2709 = vmul.f32 %v2701, %v975
    %v2710 = vmul.f32 %v2702, %v1084
    %vm2711 = vcmask 517376
    %v2712 = vsel %vm2711, %v2703, 0.0
    %v2713 = vsel %vm2711, %v2704, 0.0
    %v2714 = vadd.f32 %v2712, %v2713
    %v2715 = vsel %vm2711, %v2705, 0.0
    %v2716 = vadd.f32 %v2714, %v2715
    %v2717 = vsel %vm2711, %v2706, 0.0
    %v2718 = vadd.f32 %v2716, %v2717
    %v2719 = vsel %vm2711, %v2707, 0.0
    %v2720 = vadd.f32 %v2718, %v2719
    %v2721 = vsel %vm2711, %v2708, 0.0
    %v2722 = vadd.f32 %v2720, %v2721
    %v2723 = vsel %vm2711, %v2709, 0.0
    %v2724 = vadd.f32 %v2722, %v2723
    %v2725 = vsel %vm2711, %v2710, 0.0
    %v2726 = vadd.f32 %v2724, %v2725
    %2728 = vrot.lane.b32.xlu0 %v2726, 96
    %v2729 = vpop.permute.xlu0 %2728
    %v2730 = vsel %vm132, %v2729, 0
    %2732 = vmatprep.subr.mxu0 0.0
    %2733 = vmatpush1.msra.mxu0 0.0
    %2734 = vmatprep.subr.mxu0 0.0
    %2735 = vmatpush1.msra.mxu0 0.0
    %2736 = vmatprep.subr.mxu0 0.0
    %2737 = vmatpush1.msra.mxu0 0.0
    %2738 = vmatprep.subr.mxu0 0.0
    %2739 = vmatpush1.msra.mxu0 0.0
    %2740 = vmatprep.subr.mxu0 0.0
    %2741 = vmatpush1.msra.mxu0 0.0
    %2742 = vmatprep.subr.mxu0 0.0
    %2743 = vmatpush1.msra.mxu0 0.0
    %2744 = vmatprep.subr.mxu0 0.0
    %2745 = vmatpush1.msra.mxu0 0.0
    %2746 = vmatprep.subr.mxu0 0.0
    %2747 = vmatpush1.msra.mxu0 0.0
    %2748 = vmatprep.subr.mxu0 0.0
    %2749 = vmatpush1.msra.mxu0 0.0
    %2750 = vmatprep.subr.mxu0 0.0
    %2751 = vmatpush1.msra.mxu0 0.0
    %2752 = vmatprep.subr.mxu0 0.0
    %2753 = vmatpush1.msra.mxu0 0.0
    %2754 = vmatprep.subr.mxu0 0.0
    %2755 = vmatpush1.msra.mxu0 0.0
    %2756 = vmatprep.subr.mxu0 0.0
    %2757 = vmatpush1.msra.mxu0 %v1506
    %2758 = vmatprep.subr.mxu0 0.0
    %2759 = vmatpush1.msra.mxu0 %v1505
    %2760 = vmatprep.subr.mxu0 0.0
    %2761 = vmatpush1.msra.mxu0 %v1504
    %2762 = vmatprep.subr.mxu0 0.0
    %2763 = vmatpush1.msra.mxu0 %v1503
    %2764 = vmatprep.subr.mxu0 0.0
    %2765 = vmatpush2.msra.mxu0 0.0
    %2766 = vmatprep.subr.mxu0 0.0
    %2767 = vmatpush2.msra.mxu0 0.0
    %2768 = vmatprep.subr.mxu0 0.0
    %2769 = vmatpush2.msra.mxu0 0.0
    %2770 = vmatprep.subr.mxu0 0.0
    %2771 = vmatpush2.msra.mxu0 0.0
    %2772 = vmatprep.subr.mxu0 0.0
    %2773 = vmatpush2.msra.mxu0 0.0
    %2774 = vmatprep.subr.mxu0 0.0
    %2775 = vmatpush2.msra.mxu0 0.0
    %2776 = vmatprep.subr.mxu0 0.0
    %2777 = vmatpush2.msra.mxu0 0.0
    %2778 = vmatprep.subr.mxu0 0.0
    %2779 = vmatpush2.msra.mxu0 0.0
    %2780 = vmatprep.subr.mxu0 0.0
    %2781 = vmatpush2.msra.mxu0 0.0
    %2782 = vmatprep.subr.mxu0 0.0
    %2783 = vmatpush2.msra.mxu0 0.0
    %2784 = vmatprep.subr.mxu0 0.0
    %2785 = vmatpush2.msra.mxu0 0.0
    %2786 = vmatprep.subr.mxu0 0.0
    %2787 = vmatpush2.msra.mxu0 0.0
    %2788 = vmatprep.subr.mxu0 0.0
    %2789 = vmatpush2.msra.mxu0 0.0
    %2790 = vmatprep.subr.mxu0 0.0
    %2791 = vmatpush2.msra.mxu0 0.0
    %2792 = vmatprep.subr.mxu0 0.0
    %2793 = vmatpush2.msra.mxu0 0.0
    %2794 = vmatprep.subr.mxu0 0.0
    %2795 = vmatpush2.msra.mxu0 0.0
    %2796 = vmatprep.mubr.f32.mxu0 0.0
    %2797 = vmatmul.mubr.f32.gmra.mxu0 %v2730
    %v2798 = vpop.f32.mrf.mxu0
    %v2799 = vadd.f32 0.0, %v2798
    %v2800 = vpop.f32.mrf.mxu0
    %2801 = vdwg.mxu0
    %v2802 = vlaneseq
    %v2803 = vshrl.u32 %v2802, 7
    %v2804 = vsub.s32 5, %v2803
    %v2805 = vrot.slane %v2563, %v2804
    %v2806 = vadd.f32 %v2549, %v2805
    %v2807 = vadd.f32 %v2806, %v2799
    %2808 = vrot.lane.b32.xlu0 %v2565, 96
    %v2809 = vpop.permute.xlu0 %2808
    %v2810 = vsel %vm132, %v2809, 0
    %2812 = vmatprep.subr.mxu0 0.0
    %2813 = vmatpush1.msra.mxu0 0.0
    %2814 = vmatprep.subr.mxu0 0.0
    %2815 = vmatpush1.msra.mxu0 0.0
    %2816 = vmatprep.subr.mxu0 0.0
    %2817 = vmatpush1.msra.mxu0 0.0
    %2818 = vmatprep.subr.mxu0 0.0
    %2819 = vmatpush1.msra.mxu0 0.0
    %2820 = vmatprep.subr.mxu0 0.0
    %2821 = vmatpush1.msra.mxu0 0.0
    %2822 = vmatprep.subr.mxu0 0.0
    %2823 = vmatpush1.msra.mxu0 0.0
    %2824 = vmatprep.subr.mxu0 0.0
    %2825 = vmatpush1.msra.mxu0 0.0
    %2826 = vmatprep.subr.mxu0 0.0
    %2827 = vmatpush1.msra.mxu0 0.0
    %2828 = vmatprep.subr.mxu0 0.0
    %2829 = vmatpush1.msra.mxu0 0.0
    %2830 = vmatprep.subr.mxu0 0.0
    %2831 = vmatpush1.msra.mxu0 0.0
    %2832 = vmatprep.subr.mxu0 0.0
    %2833 = vmatpush1.msra.mxu0 0.0
    %2834 = vmatprep.subr.mxu0 0.0
    %2835 = vmatpush1.msra.mxu0 0.0
    %2836 = vmatprep.subr.mxu0 0.0
    %2837 = vmatpush1.msra.mxu0 %v1600
    %2838 = vmatprep.subr.mxu0 0.0
    %2839 = vmatpush1.msra.mxu0 %v1599
    %2840 = vmatprep.subr.mxu0 0.0
    %2841 = vmatpush1.msra.mxu0 %v1598
    %2842 = vmatprep.subr.mxu0 0.0
    %2843 = vmatpush1.msra.mxu0 %v1597
    %2844 = vmatprep.subr.mxu0 0.0
    %2845 = vmatpush2.msra.mxu0 0.0
    %2846 = vmatprep.subr.mxu0 0.0
    %2847 = vmatpush2.msra.mxu0 0.0
    %2848 = vmatprep.subr.mxu0 0.0
    %2849 = vmatpush2.msra.mxu0 0.0
    %2850 = vmatprep.subr.mxu0 0.0
    %2851 = vmatpush2.msra.mxu0 0.0
    %2852 = vmatprep.subr.mxu0 0.0
    %2853 = vmatpush2.msra.mxu0 0.0
    %2854 = vmatprep.subr.mxu0 0.0
    %2855 = vmatpush2.msra.mxu0 0.0
    %2856 = vmatprep.subr.mxu0 0.0
    %2857 = vmatpush2.msra.mxu0 0.0
    %2858 = vmatprep.subr.mxu0 0.0
    %2859 = vmatpush2.msra.mxu0 0.0
    %2860 = vmatprep.subr.mxu0 0.0
    %2861 = vmatpush2.msra.mxu0 0.0
    %2862 = vmatprep.subr.mxu0 0.0
    %2863 = vmatpush2.msra.mxu0 0.0
    %2864 = vmatprep.subr.mxu0 0.0
    %2865 = vmatpush2.msra.mxu0 0.0
    %2866 = vmatprep.subr.mxu0 0.0
    %2867 = vmatpush2.msra.mxu0 0.0
    %2868 = vmatprep.subr.mxu0 0.0
    %2869 = vmatpush2.msra.mxu0 0.0
    %2870 = vmatprep.subr.mxu0 0.0
    %2871 = vmatpush2.msra.mxu0 0.0
    %2872 = vmatprep.subr.mxu0 0.0
    %2873 = vmatpush2.msra.mxu0 0.0
    %2874 = vmatprep.subr.mxu0 0.0
    %2875 = vmatpush2.msra.mxu0 0.0
    %2876 = vmatprep.mubr.f32.mxu0 0.0
    %2877 = vmatmul.mubr.f32.gmra.mxu0 %v2810
    %v2878 = vpop.f32.mrf.mxu0
    %v2879 = vadd.f32 0.0, %v2878
    %v2880 = vpop.f32.mrf.mxu0
    %2881 = vdwg.mxu0
    %v2882 = vadd.f32 %v2807, %v2879
    %v2883 = vxor.u32 %v2882, 2147483648
    %v2884 = vmul.f32 %v2883, 1.442695
    %v2885 = vpow.pop %v2884
    %v2886 = vadd.f32 %v2885, 1.0
    %v2887 = vrcp.pop %v2886
    %v2888 = vmul.f32 1.0, %v2887
    %v2889 = vadd.f32 %v2879, %v1684
    %2891 = vrot.lane.b32.xlu0 %v2889, 64
    %v2892 = vpop.permute.xlu0 %2891
    %v2894 = vmul.f32 %v2888, %v2892
    %2896 = vrot.lane.b32.xlu0 %v2894, 64
    %v2897 = vpop.permute.xlu0 %2896
    %v2899 = vadd.f32 %v2807, %v2897
    %v2900 = vtanh.pop %v2899
    %v2901 = vsub.f32 1.0, %v2888
    %2903 = vrot.lane.b32.xlu0 %v2900, 96
    %v2904 = vpop.permute.xlu0 %2903
    %v2906 = vmul.f32 %v2901, %v2904
    %v2907 = vmul.f32 %v2888, %v2565
    %v2908 = vadd.f32 %v2906, %v2907
    %s2909 = scalar_lea.vmem %s3, 192
    %v2910 = vld [vmem:[%s2909] sm:$0xff]
    %v2911 = vld [vmem:[%s2909 + $0x8] sm:$0xff]
    %v2912 = vld [vmem:[%s2909 + $0x10] sm:$0xff]
    %v2913 = vld [vmem:[%s2909 + $0x18] sm:$0xff]
    %2915 = vrot.lane.b32.xlu0 %v2908, 96
    %v2916 = vpop.permute.xlu0 %2915
    %v2917 = vsel %vm132, %v2916, 0
    %2919 = vmatprep.subr.mxu0 0.0
    %2920 = vmatpush1.msra.mxu0 0.0
    %2921 = vmatprep.subr.mxu0 0.0
    %2922 = vmatpush1.msra.mxu0 0.0
    %2923 = vmatprep.subr.mxu0 0.0
    %2924 = vmatpush1.msra.mxu0 0.0
    %2925 = vmatprep.subr.mxu0 0.0
    %2926 = vmatpush1.msra.mxu0 0.0
    %2927 = vmatprep.subr.mxu0 0.0
    %2928 = vmatpush1.msra.mxu0 0.0
    %2929 = vmatprep.subr.mxu0 0.0
    %2930 = vmatpush1.msra.mxu0 0.0
    %2931 = vmatprep.subr.mxu0 0.0
    %2932 = vmatpush1.msra.mxu0 0.0
    %2933 = vmatprep.subr.mxu0 0.0
    %2934 = vmatpush1.msra.mxu0 0.0
    %2935 = vmatprep.subr.mxu0 0.0
    %2936 = vmatpush1.msra.mxu0 0.0
    %2937 = vmatprep.subr.mxu0 0.0
    %2938 = vmatpush1.msra.mxu0 0.0
    %2939 = vmatprep.subr.mxu0 0.0
    %2940 = vmatpush1.msra.mxu0 0.0
    %2941 = vmatprep.subr.mxu0 0.0
    %2942 = vmatpush1.msra.mxu0 0.0
    %2943 = vmatprep.subr.mxu0 0.0
    %2944 = vmatpush1.msra.mxu0 %v2913
    %2945 = vmatprep.subr.mxu0 0.0
    %2946 = vmatpush1.msra.mxu0 %v2912
    %2947 = vmatprep.subr.mxu0 0.0
    %2948 = vmatpush1.msra.mxu0 %v2911
    %2949 = vmatprep.subr.mxu0 0.0
    %2950 = vmatpush1.msra.mxu0 %v2910
    %2951 = vmatprep.subr.mxu0 0.0
    %2952 = vmatpush2.msra.mxu0 0.0
    %2953 = vmatprep.subr.mxu0 0.0
    %2954 = vmatpush2.msra.mxu0 0.0
    %2955 = vmatprep.subr.mxu0 0.0
    %2956 = vmatpush2.msra.mxu0 0.0
    %2957 = vmatprep.subr.mxu0 0.0
    %2958 = vmatpush2.msra.mxu0 0.0
    %2959 = vmatprep.subr.mxu0 0.0
    %2960 = vmatpush2.msra.mxu0 0.0
    %2961 = vmatprep.subr.mxu0 0.0
    %2962 = vmatpush2.msra.mxu0 0.0
    %2963 = vmatprep.subr.mxu0 0.0
    %2964 = vmatpush2.msra.mxu0 0.0
    %2965 = vmatprep.subr.mxu0 0.0
    %2966 = vmatpush2.msra.mxu0 0.0
    %2967 = vmatprep.subr.mxu0 0.0
    %2968 = vmatpush2.msra.mxu0 0.0
    %2969 = vmatprep.subr.mxu0 0.0
    %2970 = vmatpush2.msra.mxu0 0.0
    %2971 = vmatprep.subr.mxu0 0.0
    %2972 = vmatpush2.msra.mxu0 0.0
    %2973 = vmatprep.subr.mxu0 0.0
    %2974 = vmatpush2.msra.mxu0 0.0
    %2975 = vmatprep.subr.mxu0 0.0
    %2976 = vmatpush2.msra.mxu0 0.0
    %2977 = vmatprep.subr.mxu0 0.0
    %2978 = vmatpush2.msra.mxu0 0.0
    %2979 = vmatprep.subr.mxu0 0.0
    %2980 = vmatpush2.msra.mxu0 0.0
    %2981 = vmatprep.subr.mxu0 0.0
    %2982 = vmatpush2.msra.mxu0 0.0
    %2983 = vmatprep.mubr.f32.mxu0 0.0
    %2984 = vmatmul.mubr.f32.gmra.mxu0 %v2917
    %v2985 = vpop.f32.mrf.mxu0
    %v2986 = vadd.f32 0.0, %v2985
    %v2987 = vpop.f32.mrf.mxu0
    %2988 = vdwg.mxu0
    %v2989 = vlaneseq
    %v2990 = vshrl.u32 %v2989, 7
    %v2991 = vsub.s32 5, %v2990
    %v2992 = vrot.slane %v21, %v2991
    %v2993 = vadd.f32 %v2986, %v2992
    %v2994 = vsel %vm2607, %v2993, -inf
    %2995 = vmax.xlane.f32.xlu0 %v2994
    %v2996 = vpop.xlane.xlu0 %2995
    %v2997 = vsub.f32 %v2993, %v2996
    %v2998 = vmul.f32 %v2997, 1.442695
    %v2999 = vpow.pop %v2998
    %v3000 = vsel %vm2607, %v2999, 0.0
    %3001 = vadd.xlane.f32.xlu0 %v3000
    %v3002 = vpop.xlane.xlu0 %3001
    %v3003 = vlog2.pop %v3002
    %v3004 = vmul.f32 %v3003, 0.6931472
    %v3005 = vsub.f32 %v2997, %v3004
    %v3006 = vmul.f32 %v2556, %v3005
    %v3007 = vsel %vm2607, %v3006, 0.0
    %3008 = vadd.xlane.f32.xlu0 %v3007
    %v3009 = vpop.xlane.xlu0 %3008
    %v3010 = vrot.slane %v3009, 4
    %v3011 = vadd.f32 %v3009, %v3010
    %v3012 = vrot.slane %v3011, 2
    %v3013 = vadd.f32 %v3011, %v3012
    %v3014 = vrot.slane %v3013, 1
    %v3015 = vadd.f32 %v3013, %v3014
    %s3016 = vtos %v3015
    %s3017 = ssub.f32 0.0, %s3016
    %v3018 = vrcp.pop 2.0
    %s3019 = vtos %v3018
    %s3020 = smul.f32 %s3017, %s3019
    %v3021 = vrcp.pop 4.0
    %s3022 = vtos %v3021
    %s3023 = smul.f32 %s3020, %s3022
    %s3024 = sadd.f32 %s3023, 0.0
    %v3025 = vsel %vm2607, %v3005, -inf
    %3026 = vmax.xlane.f32.xlu0 %v3025
    %v3027 = vpop.xlane.xlu0 %3026
    %vm3028 = vcmp.ge.f32.partialorder %v3005, %v3027
    %v3029 = vsel %vm3028, %v2558, 32
    %v3030 = vsel %vm2607, %v3029, 2147483647
    %v3031 = vand.u32 %v3030, 65535
    %v3032 = vshra.s32 %v3030, 16
    %v3033 = vcvt.s32.f32 %v3031
    %v3034 = vcvt.s32.f32 %v3032
    %3035 = vmin.xlane.f32.xlu0 %v3034
    %v3036 = vpop.xlane.xlu0 %3035
    %vm3037 = vcmp.eq.f32.partialorder %v3034, %v3036
    %v3038 = vsel %vm3037, %v3033, inf
    %3039 = vmin.xlane.f32.xlu0 %v3038
    %v3040 = vpop.xlane.xlu0 %3039
    %v3041 = vcvt.f32.s32 %v3040
    %v3042 = vcvt.f32.s32 %v3036
    %v3043 = vshll.u32 %v3042, 16
    %v3044 = vadd.s32 %v3043, %v3041
    %vm3045 = vcmp.eq.s32.totalorder %v2558, %v3044
    %v3046 = vsel %vm3045, 1, 0
    %v3047 = vcvt.s32.f32 %v3046
    %v3049 = vsel %vm132, %v3047, 0
    %3051 = vmatprep.subr.mxu0 0.0
    %3052 = vmatpush1.msra.mxu0 0.0
    %3053 = vmatprep.subr.mxu0 0.0
    %3054 = vmatpush1.msra.mxu0 0.0
    %3055 = vmatprep.subr.mxu0 0.0
    %3056 = vmatpush1.msra.mxu0 0.0
    %3057 = vmatprep.subr.mxu0 0.0
    %3058 = vmatpush1.msra.mxu0 0.0
    %3059 = vmatprep.subr.mxu0 0.0
    %3060 = vmatpush1.msra.mxu0 0.0
    %3061 = vmatprep.subr.mxu0 0.0
    %3062 = vmatpush1.msra.mxu0 0.0
    %3063 = vmatprep.subr.mxu0 0.0
    %3064 = vmatpush1.msra.mxu0 0.0
    %3065 = vmatprep.subr.mxu0 0.0
    %3066 = vmatpush1.msra.mxu0 0.0
    %3067 = vmatprep.subr.mxu0 0.0
    %3068 = vmatpush1.msra.mxu0 0.0
    %3069 = vmatprep.subr.mxu0 0.0
    %3070 = vmatpush1.msra.mxu0 0.0
    %3071 = vmatprep.subr.mxu0 0.0
    %3072 = vmatpush1.msra.mxu0 0.0
    %3073 = vmatprep.subr.mxu0 0.0
    %3074 = vmatpush1.msra.mxu0 0.0
    %3075 = vmatprep.subr.mxu0 0.0
    %3076 = vmatpush1.msra.mxu0 %v2563
    %3077 = vmatprep.subr.mxu0 0.0
    %3078 = vmatpush1.msra.mxu0 %v2562
    %3079 = vmatprep.subr.mxu0 0.0
    %3080 = vmatpush1.msra.mxu0 %v2561
    %3081 = vmatprep.subr.mxu0 0.0
    %3082 = vmatpush1.msra.mxu0 %v2560
    %3083 = vmatprep.subr.mxu0 0.0
    %3084 = vmatpush2.msra.mxu0 0.0
    %3085 = vmatprep.subr.mxu0 0.0
    %3086 = vmatpush2.msra.mxu0 0.0
    %3087 = vmatprep.subr.mxu0 0.0
    %3088 = vmatpush2.msra.mxu0 0.0
    %3089 = vmatprep.subr.mxu0 0.0
    %3090 = vmatpush2.msra.mxu0 0.0
    %3091 = vmatprep.subr.mxu0 0.0
    %3092 = vmatpush2.msra.mxu0 0.0
    %3093 = vmatprep.subr.mxu0 0.0
    %3094 = vmatpush2.msra.mxu0 0.0
    %3095 = vmatprep.subr.mxu0 0.0
    %3096 = vmatpush2.msra.mxu0 0.0
    %3097 = vmatprep.subr.mxu0 0.0
    %3098 = vmatpush2.msra.mxu0 0.0
    %3099 = vmatprep.subr.mxu0 0.0
    %3100 = vmatpush2.msra.mxu0 0.0
    %3101 = vmatprep.subr.mxu0 0.0
    %3102 = vmatpush2.msra.mxu0 0.0
    %3103 = vmatprep.subr.mxu0 0.0
    %3104 = vmatpush2.msra.mxu0 0.0
    %3105 = vmatprep.subr.mxu0 0.0
    %3106 = vmatpush2.msra.mxu0 0.0
    %3107 = vmatprep.subr.mxu0 0.0
    %3108 = vmatpush2.msra.mxu0 0.0
    %3109 = vmatprep.subr.mxu0 0.0
    %3110 = vmatpush2.msra.mxu0 0.0
    %3111 = vmatprep.subr.mxu0 0.0
    %3112 = vmatpush2.msra.mxu0 0.0
    %3113 = vmatprep.subr.mxu0 0.0
    %3114 = vmatpush2.msra.mxu0 0.0
    %3115 = vmatprep.mubr.f32.mxu0 0.0
    %3116 = vmatmul.mubr.f32.gmra.mxu0 %v3049
    %v3117 = vpop.f32.mrf.mxu0
    %v3118 = vadd.f32 0.0, %v3117
    %v3119 = vpop.f32.mrf.mxu0
    %3120 = vdwg.mxu0
    %v3121 = vmul.f32 %v326, %v2908
    %v3122 = vmul.f32 %v436, %v2908
    %v3123 = vmul.f32 %v545, %v2908
    %v3124 = vmul.f32 %v654, %v2908
    %v3125 = vmul.f32 %v756, %v2908
    %v3126 = vmul.f32 %v866, %v2908
    %v3127 = vmul.f32 %v975, %v2908
    %v3128 = vmul.f32 %v1084, %v2908
    %3137 = vrot.lane.b32.xlu0 %v3121, 96
    %v3138 = vpop.permute.xlu0 %3137
    %3139 = vrot.lane.b32.xlu0 %v3122, 96
    %v3140 = vpop.permute.xlu0 %3139
    %3141 = vrot.lane.b32.xlu0 %v3123, 96
    %v3142 = vpop.permute.xlu0 %3141
    %3143 = vrot.lane.b32.xlu0 %v3124, 96
    %v3144 = vpop.permute.xlu0 %3143
    %3145 = vrot.lane.b32.xlu0 %v3125, 96
    %v3146 = vpop.permute.xlu0 %3145
    %3147 = vrot.lane.b32.xlu0 %v3126, 96
    %v3148 = vpop.permute.xlu0 %3147
    %3149 = vrot.lane.b32.xlu0 %v3127, 96
    %v3150 = vpop.permute.xlu0 %3149
    %3151 = vrot.lane.b32.xlu0 %v3128, 96
    %v3152 = vpop.permute.xlu0 %3151
    %v3161 = vsel %vm2607, %v3138, 0.0
    %3162 = vadd.xlane.f32.xlu0 %v3161
    %v3163 = vpop.xlane.xlu0 %3162
    %v3164 = vsel %vm2607, %v3140, 0.0
    %3165 = vadd.xlane.f32.xlu0 %v3164
    %v3166 = vpop.xlane.xlu0 %3165
    %v3167 = vsel %vm2607, %v3142, 0.0
    %3168 = vadd.xlane.f32.xlu0 %v3167
    %v3169 = vpop.xlane.xlu0 %3168
    %v3170 = vsel %vm2607, %v3144, 0.0
    %3171 = vadd.xlane.f32.xlu0 %v3170
    %v3172 = vpop.xlane.xlu0 %3171
    %v3173 = vsel %vm2607, %v3146, 0.0
    %3174 = vadd.xlane.f32.xlu0 %v3173
    %v3175 = vpop.xlane.xlu0 %3174
    %v3176 = vsel %vm2607, %v3148, 0.0
    %3177 = vadd.xlane.f32.xlu0 %v3176
    %v3178 = vpop.xlane.xlu0 %3177
    %v3179 = vsel %vm2607, %v3150, 0.0
    %3180 = vadd.xlane.f32.xlu0 %v3179
    %v3181 = vpop.xlane.xlu0 %3180
    %v3182 = vsel %vm2607, %v3152, 0.0
    %3183 = vadd.xlane.f32.xlu0 %v3182
    %v3184 = vpop.xlane.xlu0 %3183
    %v3185 = vtanh.pop %v3163
    %v3186 = vtanh.pop %v3166
    %v3187 = vtanh.pop %v3169
    %v3188 = vtanh.pop %v3172
    %v3189 = vtanh.pop %v3175
    %v3190 = vtanh.pop %v3178
    %v3191 = vtanh.pop %v3181
    %v3192 = vtanh.pop %v3184
    %v3193 = vsel %vm1493, %v3185, -inf
    %v3194 = vsel %vm1493, %v3186, -inf
    %v3195 = vsel %vm1493, %v3187, -inf
    %v3196 = vsel %vm1493, %v3188, -inf
    %v3197 = vsel %vm1493, %v3189, -inf
    %v3198 = vmax.f32 %v3193, %v3197
    %v3199 = vsel %vm1493, %v3190, -inf
    %v3200 = vmax.f32 %v3194, %v3199
    %v3201 = vsel %vm1493, %v3191, -inf
    %v3202 = vmax.f32 %v3195, %v3201
    %v3203 = vsel %vm1493, %v3192, -inf
    %v3204 = vmax.f32 %v3196, %v3203
    %v3205 = vmax.f32 %v3198, %v3200
    %v3206 = vmax.f32 %v3202, %v3204
    %v3207 = vmax.f32 %v3205, %v3206
    %v3208 = vsub.f32 %v3185, %v3207
    %v3209 = vsub.f32 %v3186, %v3207
    %v3210 = vsub.f32 %v3187, %v3207
    %v3211 = vsub.f32 %v3188, %v3207
    %v3212 = vsub.f32 %v3189, %v3207
    %v3213 = vsub.f32 %v3190, %v3207
    %v3214 = vsub.f32 %v3191, %v3207
    %v3215 = vsub.f32 %v3192, %v3207
    %v3216 = vmul.f32 %v3208, 1.442695
    %v3217 = vpow.pop %v3216
    %v3218 = vmul.f32 %v3209, 1.442695
    %v3219 = vpow.pop %v3218
    %v3220 = vmul.f32 %v3210, 1.442695
    %v3221 = vpow.pop %v3220
    %v3222 = vmul.f32 %v3211, 1.442695
    %v3223 = vpow.pop %v3222
    %v3224 = vmul.f32 %v3212, 1.442695
    %v3225 = vpow.pop %v3224
    %v3226 = vmul.f32 %v3213, 1.442695
    %v3227 = vpow.pop %v3226
    %v3228 = vmul.f32 %v3214, 1.442695
    %v3229 = vpow.pop %v3228
    %v3230 = vmul.f32 %v3215, 1.442695
    %v3231 = vpow.pop %v3230
    %v3232 = vsel %vm1493, %v3217, 0.0
    %v3233 = vsel %vm1493, %v3219, 0.0
    %v3234 = vadd.f32 %v3232, %v3233
    %v3235 = vsel %vm1493, %v3221, 0.0
    %v3236 = vadd.f32 %v3234, %v3235
    %v3237 = vsel %vm1493, %v3223, 0.0
    %v3238 = vadd.f32 %v3236, %v3237
    %v3239 = vsel %vm1493, %v3225, 0.0
    %v3240 = vadd.f32 %v3238, %v3239
    %v3241 = vsel %vm1493, %v3227, 0.0
    %v3242 = vadd.f32 %v3240, %v3241
    %v3243 = vsel %vm1493, %v3229, 0.0
    %v3244 = vadd.f32 %v3242, %v3243
    %v3245 = vsel %vm1493, %v3231, 0.0
    %v3246 = vadd.f32 %v3244, %v3245
    %v3247 = vrcp.pop %v3246
    %v3248 = vmul.f32 %v3217, %v3247
    %v3249 = vmul.f32 %v3219, %v3247
    %v3250 = vmul.f32 %v3221, %v3247
    %v3251 = vmul.f32 %v3223, %v3247
    %v3252 = vmul.f32 %v3225, %v3247
    %v3253 = vmul.f32 %v3227, %v3247
    %v3254 = vmul.f32 %v3229, %v3247
    %v3255 = vmul.f32 %v3231, %v3247
    %v3256 = vmul.f32 %v3248, %v326
    %v3257 = vmul.f32 %v3249, %v436
    %v3258 = vmul.f32 %v3250, %v545
    %v3259 = vmul.f32 %v3251, %v654
    %v3260 = vmul.f32 %v3252, %v756
    %v3261 = vmul.f32 %v3253, %v866
    %v3262 = vmul.f32 %v3254, %v975
    %v3263 = vmul.f32 %v3255, %v1084
    %v3264 = vsel %vm2711, %v3256, 0.0
    %v3265 = vsel %vm2711, %v3257, 0.0
    %v3266 = vadd.f32 %v3264, %v3265
    %v3267 = vsel %vm2711, %v3258, 0.0
    %v3268 = vadd.f32 %v3266, %v3267
    %v3269 = vsel %vm2711, %v3259, 0.0
    %v3270 = vadd.f32 %v3268, %v3269
    %v3271 = vsel %vm2711, %v3260, 0.0
    %v3272 = vadd.f32 %v3270, %v3271
    %v3273 = vsel %vm2711, %v3261, 0.0
    %v3274 = vadd.f32 %v3272, %v3273
    %v3275 = vsel %vm2711, %v3262, 0.0
    %v3276 = vadd.f32 %v3274, %v3275
    %v3277 = vsel %vm2711, %v3263, 0.0
    %v3278 = vadd.f32 %v3276, %v3277
    %3280 = vrot.lane.b32.xlu0 %v3278, 96
    %v3281 = vpop.permute.xlu0 %3280
    %v3282 = vsel %vm132, %v3281, 0
    %3284 = vmatprep.subr.mxu0 0.0
    %3285 = vmatpush1.msra.mxu0 0.0
    %3286 = vmatprep.subr.mxu0 0.0
    %3287 = vmatpush1.msra.mxu0 0.0
    %3288 = vmatprep.subr.mxu0 0.0
    %3289 = vmatpush1.msra.mxu0 0.0
    %3290 = vmatprep.subr.mxu0 0.0
    %3291 = vmatpush1.msra.mxu0 0.0
    %3292 = vmatprep.subr.mxu0 0.0
    %3293 = vmatpush1.msra.mxu0 0.0
    %3294 = vmatprep.subr.mxu0 0.0
    %3295 = vmatpush1.msra.mxu0 0.0
    %3296 = vmatprep.subr.mxu0 0.0
    %3297 = vmatpush1.msra.mxu0 0.0
    %3298 = vmatprep.subr.mxu0 0.0
    %3299 = vmatpush1.msra.mxu0 0.0
    %3300 = vmatprep.subr.mxu0 0.0
    %3301 = vmatpush1.msra.mxu0 0.0
    %3302 = vmatprep.subr.mxu0 0.0
    %3303 = vmatpush1.msra.mxu0 0.0
    %3304 = vmatprep.subr.mxu0 0.0
    %3305 = vmatpush1.msra.mxu0 0.0
    %3306 = vmatprep.subr.mxu0 0.0
    %3307 = vmatpush1.msra.mxu0 0.0
    %3308 = vmatprep.subr.mxu0 0.0
    %3309 = vmatpush1.msra.mxu0 %v1506
    %3310 = vmatprep.subr.mxu0 0.0
    %3311 = vmatpush1.msra.mxu0 %v1505
    %3312 = vmatprep.subr.mxu0 0.0
    %3313 = vmatpush1.msra.mxu0 %v1504
    %3314 = vmatprep.subr.mxu0 0.0
    %3315 = vmatpush1.msra.mxu0 %v1503
    %3316 = vmatprep.subr.mxu0 0.0
    %3317 = vmatpush2.msra.mxu0 0.0
    %3318 = vmatprep.subr.mxu0 0.0
    %3319 = vmatpush2.msra.mxu0 0.0
    %3320 = vmatprep.subr.mxu0 0.0
    %3321 = vmatpush2.msra.mxu0 0.0
    %3322 = vmatprep.subr.mxu0 0.0
    %3323 = vmatpush2.msra.mxu0 0.0
    %3324 = vmatprep.subr.mxu0 0.0
    %3325 = vmatpush2.msra.mxu0 0.0
    %3326 = vmatprep.subr.mxu0 0.0
    %3327 = vmatpush2.msra.mxu0 0.0
    %3328 = vmatprep.subr.mxu0 0.0
    %3329 = vmatpush2.msra.mxu0 0.0
    %3330 = vmatprep.subr.mxu0 0.0
    %3331 = vmatpush2.msra.mxu0 0.0
    %3332 = vmatprep.subr.mxu0 0.0
    %3333 = vmatpush2.msra.mxu0 0.0
    %3334 = vmatprep.subr.mxu0 0.0
    %3335 = vmatpush2.msra.mxu0 0.0
    %3336 = vmatprep.subr.mxu0 0.0
    %3337 = vmatpush2.msra.mxu0 0.0
    %3338 = vmatprep.subr.mxu0 0.0
    %3339 = vmatpush2.msra.mxu0 0.0
    %3340 = vmatprep.subr.mxu0 0.0
    %3341 = vmatpush2.msra.mxu0 0.0
    %3342 = vmatprep.subr.mxu0 0.0
    %3343 = vmatpush2.msra.mxu0 0.0
    %3344 = vmatprep.subr.mxu0 0.0
    %3345 = vmatpush2.msra.mxu0 0.0
    %3346 = vmatprep.subr.mxu0 0.0
    %3347 = vmatpush2.msra.mxu0 0.0
    %3348 = vmatprep.mubr.f32.mxu0 0.0
    %3349 = vmatmul.mubr.f32.gmra.mxu0 %v3282
    %v3350 = vpop.f32.mrf.mxu0
    %v3351 = vadd.f32 0.0, %v3350
    %v3352 = vpop.f32.mrf.mxu0
    %3353 = vdwg.mxu0
    %v3355 = vrot.slane %v3118, 6
    %v3357 = vadd.f32 %v2549, %v3355
    %v3359 = vrot.slane %v3351, 6
    %v3361 = vadd.f32 %v3357, %v3359
    %3362 = vmatprep.subr.mxu0 0.0
    %3363 = vmatpush1.msra.mxu0 0.0
    %3364 = vmatprep.subr.mxu0 0.0
    %3365 = vmatpush1.msra.mxu0 0.0
    %3366 = vmatprep.subr.mxu0 0.0
    %3367 = vmatpush1.msra.mxu0 0.0
    %3368 = vmatprep.subr.mxu0 0.0
    %3369 = vmatpush1.msra.mxu0 0.0
    %3370 = vmatprep.subr.mxu0 0.0
    %3371 = vmatpush1.msra.mxu0 0.0
    %3372 = vmatprep.subr.mxu0 0.0
    %3373 = vmatpush1.msra.mxu0 0.0
    %3374 = vmatprep.subr.mxu0 0.0
    %3375 = vmatpush1.msra.mxu0 0.0
    %3376 = vmatprep.subr.mxu0 0.0
    %3377 = vmatpush1.msra.mxu0 0.0
    %3378 = vmatprep.subr.mxu0 0.0
    %3379 = vmatpush1.msra.mxu0 0.0
    %3380 = vmatprep.subr.mxu0 0.0
    %3381 = vmatpush1.msra.mxu0 0.0
    %3382 = vmatprep.subr.mxu0 0.0
    %3383 = vmatpush1.msra.mxu0 0.0
    %3384 = vmatprep.subr.mxu0 0.0
    %3385 = vmatpush1.msra.mxu0 0.0
    %3386 = vmatprep.subr.mxu0 0.0
    %3387 = vmatpush1.msra.mxu0 %v1600
    %3388 = vmatprep.subr.mxu0 0.0
    %3389 = vmatpush1.msra.mxu0 %v1599
    %3390 = vmatprep.subr.mxu0 0.0
    %3391 = vmatpush1.msra.mxu0 %v1598
    %3392 = vmatprep.subr.mxu0 0.0
    %3393 = vmatpush1.msra.mxu0 %v1597
    %3394 = vmatprep.subr.mxu0 0.0
    %3395 = vmatpush2.msra.mxu0 0.0
    %3396 = vmatprep.subr.mxu0 0.0
    %3397 = vmatpush2.msra.mxu0 0.0
    %3398 = vmatprep.subr.mxu0 0.0
    %3399 = vmatpush2.msra.mxu0 0.0
    %3400 = vmatprep.subr.mxu0 0.0
    %3401 = vmatpush2.msra.mxu0 0.0
    %3402 = vmatprep.subr.mxu0 0.0
    %3403 = vmatpush2.msra.mxu0 0.0
    %3404 = vmatprep.subr.mxu0 0.0
    %3405 = vmatpush2.msra.mxu0 0.0
    %3406 = vmatprep.subr.mxu0 0.0
    %3407 = vmatpush2.msra.mxu0 0.0
    %3408 = vmatprep.subr.mxu0 0.0
    %3409 = vmatpush2.msra.mxu0 0.0
    %3410 = vmatprep.subr.mxu0 0.0
    %3411 = vmatpush2.msra.mxu0 0.0
    %3412 = vmatprep.subr.mxu0 0.0
    %3413 = vmatpush2.msra.mxu0 0.0
    %3414 = vmatprep.subr.mxu0 0.0
    %3415 = vmatpush2.msra.mxu0 0.0
    %3416 = vmatprep.subr.mxu0 0.0
    %3417 = vmatpush2.msra.mxu0 0.0
    %3418 = vmatprep.subr.mxu0 0.0
    %3419 = vmatpush2.msra.mxu0 0.0
    %3420 = vmatprep.subr.mxu0 0.0
    %3421 = vmatpush2.msra.mxu0 0.0
    %3422 = vmatprep.subr.mxu0 0.0
    %3423 = vmatpush2.msra.mxu0 0.0
    %3424 = vmatprep.subr.mxu0 0.0
    %3425 = vmatpush2.msra.mxu0 0.0
    %3426 = vmatprep.mubr.f32.mxu0 0.0
    %3427 = vmatmul.mubr.f32.gmra.mxu0 %v2917
    %v3428 = vpop.f32.mrf.mxu0
    %v3429 = vadd.f32 0.0, %v3428
    %v3430 = vpop.f32.mrf.mxu0
    %3431 = vdwg.mxu0
    %v3433 = vrot.slane %v3429, 6
    %v3435 = vadd.f32 %v3361, %v3433
    %v3436 = vxor.u32 %v3435, 2147483648
    %v3437 = vmul.f32 %v3436, 1.442695
    %v3438 = vpow.pop %v3437
    %v3439 = vadd.f32 %v3438, 1.0
    %v3440 = vrcp.pop %v3439
    %v3441 = vmul.f32 1.0, %v3440
    %v3442 = vadd.f32 %v3429, %v1684
    %v3444 = vrot.slane %v3442, 6
    %3445 = vrot.lane.b32.xlu0 %v3444, 64
    %v3446 = vpop.permute.xlu0 %3445
    %v3448 = vmul.f32 %v3441, %v3446
    %3450 = vrot.lane.b32.xlu0 %v3448, 64
    %v3451 = vpop.permute.xlu0 %3450
    %v3453 = vadd.f32 %v3361, %v3451
    %v3454 = vtanh.pop %v3453
    %v3455 = vsub.f32 1.0, %v3441
    %3457 = vrot.lane.b32.xlu0 %v3454, 96
    %v3458 = vpop.permute.xlu0 %3457
    %v3460 = vmul.f32 %v3455, %v3458
    %v3461 = vrot.slane %v2908, 6
    %v3463 = vmul.f32 %v3441, %v3461
    %v3464 = vadd.f32 %v3460, %v3463
    %v3466 = vrot.slane %v3464, 2
    %3467 = vrot.lane.b32.xlu0 %v3466, 96
    %v3468 = vpop.permute.xlu0 %3467
    %v3469 = vsel %vm132, %v3468, 0
    %3471 = vmatprep.subr.mxu0 0.0
    %3472 = vmatpush1.msra.mxu0 0.0
    %3473 = vmatprep.subr.mxu0 0.0
    %3474 = vmatpush1.msra.mxu0 0.0
    %3475 = vmatprep.subr.mxu0 0.0
    %3476 = vmatpush1.msra.mxu0 0.0
    %3477 = vmatprep.subr.mxu0 0.0
    %3478 = vmatpush1.msra.mxu0 0.0
    %3479 = vmatprep.subr.mxu0 0.0
    %3480 = vmatpush1.msra.mxu0 0.0
    %3481 = vmatprep.subr.mxu0 0.0
    %3482 = vmatpush1.msra.mxu0 0.0
    %3483 = vmatprep.subr.mxu0 0.0
    %3484 = vmatpush1.msra.mxu0 0.0
    %3485 = vmatprep.subr.mxu0 0.0
    %3486 = vmatpush1.msra.mxu0 0.0
    %3487 = vmatprep.subr.mxu0 0.0
    %3488 = vmatpush1.msra.mxu0 0.0
    %3489 = vmatprep.subr.mxu0 0.0
    %3490 = vmatpush1.msra.mxu0 0.0
    %3491 = vmatprep.subr.mxu0 0.0
    %3492 = vmatpush1.msra.mxu0 0.0
    %3493 = vmatprep.subr.mxu0 0.0
    %3494 = vmatpush1.msra.mxu0 0.0
    %3495 = vmatprep.subr.mxu0 0.0
    %3496 = vmatpush1.msra.mxu0 %v2913
    %3497 = vmatprep.subr.mxu0 0.0
    %3498 = vmatpush1.msra.mxu0 %v2912
    %3499 = vmatprep.subr.mxu0 0.0
    %3500 = vmatpush1.msra.mxu0 %v2911
    %3501 = vmatprep.subr.mxu0 0.0
    %3502 = vmatpush1.msra.mxu0 %v2910
    %3503 = vmatprep.subr.mxu0 0.0
    %3504 = vmatpush2.msra.mxu0 0.0
    %3505 = vmatprep.subr.mxu0 0.0
    %3506 = vmatpush2.msra.mxu0 0.0
    %3507 = vmatprep.subr.mxu0 0.0
    %3508 = vmatpush2.msra.mxu0 0.0
    %3509 = vmatprep.subr.mxu0 0.0
    %3510 = vmatpush2.msra.mxu0 0.0
    %3511 = vmatprep.subr.mxu0 0.0
    %3512 = vmatpush2.msra.mxu0 0.0
    %3513 = vmatprep.subr.mxu0 0.0
    %3514 = vmatpush2.msra.mxu0 0.0
    %3515 = vmatprep.subr.mxu0 0.0
    %3516 = vmatpush2.msra.mxu0 0.0
    %3517 = vmatprep.subr.mxu0 0.0
    %3518 = vmatpush2.msra.mxu0 0.0
    %3519 = vmatprep.subr.mxu0 0.0
    %3520 = vmatpush2.msra.mxu0 0.0
    %3521 = vmatprep.subr.mxu0 0.0
    %3522 = vmatpush2.msra.mxu0 0.0
    %3523 = vmatprep.subr.mxu0 0.0
    %3524 = vmatpush2.msra.mxu0 0.0
    %3525 = vmatprep.subr.mxu0 0.0
    %3526 = vmatpush2.msra.mxu0 0.0
    %3527 = vmatprep.subr.mxu0 0.0
    %3528 = vmatpush2.msra.mxu0 0.0
    %3529 = vmatprep.subr.mxu0 0.0
    %3530 = vmatpush2.msra.mxu0 0.0
    %3531 = vmatprep.subr.mxu0 0.0
    %3532 = vmatpush2.msra.mxu0 0.0
    %3533 = vmatprep.subr.mxu0 0.0
    %3534 = vmatpush2.msra.mxu0 0.0
    %3535 = vmatprep.mubr.f32.mxu0 0.0
    %3536 = vmatmul.mubr.f32.gmra.mxu0 %v3469
    %v3537 = vpop.f32.mrf.mxu0
    %v3538 = vadd.f32 0.0, %v3537
    %v3539 = vpop.f32.mrf.mxu0
    %3540 = vdwg.mxu0
    %v3541 = vadd.f32 %v3538, %v2992
    %v3542 = vsel %vm2607, %v3541, -inf
    %3543 = vmax.xlane.f32.xlu0 %v3542
    %v3544 = vpop.xlane.xlu0 %3543
    %v3545 = vsub.f32 %v3541, %v3544
    %v3546 = vmul.f32 %v3545, 1.442695
    %v3547 = vpow.pop %v3546
    %v3548 = vsel %vm2607, %v3547, 0.0
    %3549 = vadd.xlane.f32.xlu0 %v3548
    %v3550 = vpop.xlane.xlu0 %3549
    %v3551 = vlog2.pop %v3550
    %v3552 = vmul.f32 %v3551, 0.6931472
    %v3553 = vsub.f32 %v3545, %v3552
    %v3555 = vrot.slane %v3553, 6
    %v3557 = vmul.f32 %v2556, %v3555
    %v3559 = vrot.slane %v3557, 2
    %v3561 = vsel %vm2607, %v3559, 0.0
    %3562 = vadd.xlane.f32.xlu0 %v3561
    %v3563 = vpop.xlane.xlu0 %3562
    %v3564 = vrot.slane %v3563, 4
    %v3565 = vadd.f32 %v3563, %v3564
    %v3566 = vrot.slane %v3565, 2
    %v3567 = vadd.f32 %v3565, %v3566
    %v3568 = vrot.slane %v3567, 1
    %v3569 = vadd.f32 %v3567, %v3568
    %s3570 = vtos %v3569
    %s3571 = ssub.f32 0.0, %s3570
    %v3572 = vrcp.pop 2.0
    %s3573 = vtos %v3572
    %s3574 = smul.f32 %s3571, %s3573
    %v3575 = vrcp.pop 4.0
    %s3576 = vtos %v3575
    %s3577 = smul.f32 %s3574, %s3576
    %s3578 = sadd.f32 %s3024, %s3577
    %v3579 = vsel %vm2607, %v3553, -inf
    %3580 = vmax.xlane.f32.xlu0 %v3579
    %v3581 = vpop.xlane.xlu0 %3580
    %vm3582 = vcmp.ge.f32.partialorder %v3553, %v3581
    %v3583 = vsel %vm3582, %v2558, 32
    %v3584 = vsel %vm2607, %v3583, 2147483647
    %v3585 = vand.u32 %v3584, 65535
    %v3586 = vshra.s32 %v3584, 16
    %v3587 = vcvt.s32.f32 %v3585
    %v3588 = vcvt.s32.f32 %v3586
    %3589 = vmin.xlane.f32.xlu0 %v3588
    %v3590 = vpop.xlane.xlu0 %3589
    %vm3591 = vcmp.eq.f32.partialorder %v3588, %v3590
    %v3592 = vsel %vm3591, %v3587, inf
    %3593 = vmin.xlane.f32.xlu0 %v3592
    %v3594 = vpop.xlane.xlu0 %3593
    %v3595 = vcvt.f32.s32 %v3594
    %v3596 = vcvt.f32.s32 %v3590
    %v3597 = vshll.u32 %v3596, 16
    %v3598 = vadd.s32 %v3597, %v3595
    %vm3599 = vcmp.eq.s32.totalorder %v2558, %v3598
    %v3600 = vsel %vm3599, 1, 0
    %v3601 = vcvt.s32.f32 %v3600
    %v3603 = vsel %vm132, %v3601, 0
    %3605 = vmatprep.subr.mxu0 0.0
    %3606 = vmatpush1.msra.mxu0 0.0
    %3607 = vmatprep.subr.mxu0 0.0
    %3608 = vmatpush1.msra.mxu0 0.0
    %3609 = vmatprep.subr.mxu0 0.0
    %3610 = vmatpush1.msra.mxu0 0.0
    %3611 = vmatprep.subr.mxu0 0.0
    %3612 = vmatpush1.msra.mxu0 0.0
    %3613 = vmatprep.subr.mxu0 0.0
    %3614 = vmatpush1.msra.mxu0 0.0
    %3615 = vmatprep.subr.mxu0 0.0
    %3616 = vmatpush1.msra.mxu0 0.0
    %3617 = vmatprep.subr.mxu0 0.0
    %3618 = vmatpush1.msra.mxu0 0.0
    %3619 = vmatprep.subr.mxu0 0.0
    %3620 = vmatpush1.msra.mxu0 0.0
    %3621 = vmatprep.subr.mxu0 0.0
    %3622 = vmatpush1.msra.mxu0 0.0
    %3623 = vmatprep.subr.mxu0 0.0
    %3624 = vmatpush1.msra.mxu0 0.0
    %3625 = vmatprep.subr.mxu0 0.0
    %3626 = vmatpush1.msra.mxu0 0.0
    %3627 = vmatprep.subr.mxu0 0.0
    %3628 = vmatpush1.msra.mxu0 0.0
    %3629 = vmatprep.subr.mxu0 0.0
    %3630 = vmatpush1.msra.mxu0 %v2563
    %3631 = vmatprep.subr.mxu0 0.0
    %3632 = vmatpush1.msra.mxu0 %v2562
    %3633 = vmatprep.subr.mxu0 0.0
    %3634 = vmatpush1.msra.mxu0 %v2561
    %3635 = vmatprep.subr.mxu0 0.0
    %3636 = vmatpush1.msra.mxu0 %v2560
    %3637 = vmatprep.subr.mxu0 0.0
    %3638 = vmatpush2.msra.mxu0 0.0
    %3639 = vmatprep.subr.mxu0 0.0
    %3640 = vmatpush2.msra.mxu0 0.0
    %3641 = vmatprep.subr.mxu0 0.0
    %3642 = vmatpush2.msra.mxu0 0.0
    %3643 = vmatprep.subr.mxu0 0.0
    %3644 = vmatpush2.msra.mxu0 0.0
    %3645 = vmatprep.subr.mxu0 0.0
    %3646 = vmatpush2.msra.mxu0 0.0
    %3647 = vmatprep.subr.mxu0 0.0
    %3648 = vmatpush2.msra.mxu0 0.0
    %3649 = vmatprep.subr.mxu0 0.0
    %3650 = vmatpush2.msra.mxu0 0.0
    %3651 = vmatprep.subr.mxu0 0.0
    %3652 = vmatpush2.msra.mxu0 0.0
    %3653 = vmatprep.subr.mxu0 0.0
    %3654 = vmatpush2.msra.mxu0 0.0
    %3655 = vmatprep.subr.mxu0 0.0
    %3656 = vmatpush2.msra.mxu0 0.0
    %3657 = vmatprep.subr.mxu0 0.0
    %3658 = vmatpush2.msra.mxu0 0.0
    %3659 = vmatprep.subr.mxu0 0.0
    %3660 = vmatpush2.msra.mxu0 0.0
    %3661 = vmatprep.subr.mxu0 0.0
    %3662 = vmatpush2.msra.mxu0 0.0
    %3663 = vmatprep.subr.mxu0 0.0
    %3664 = vmatpush2.msra.mxu0 0.0
    %3665 = vmatprep.subr.mxu0 0.0
    %3666 = vmatpush2.msra.mxu0 0.0
    %3667 = vmatprep.subr.mxu0 0.0
    %3668 = vmatpush2.msra.mxu0 0.0
    %3669 = vmatprep.mubr.f32.mxu0 0.0
    %3670 = vmatmul.mubr.f32.gmra.mxu0 %v3603
    %v3671 = vpop.f32.mrf.mxu0
    %v3672 = vadd.f32 0.0, %v3671
    %v3673 = vpop.f32.mrf.mxu0
    %3674 = vdwg.mxu0
    %v3676 = vmul.f32 %v326, %v3466
    %v3677 = vmul.f32 %v436, %v3466
    %v3678 = vmul.f32 %v545, %v3466
    %v3679 = vmul.f32 %v654, %v3466
    %v3680 = vmul.f32 %v756, %v3466
    %v3681 = vmul.f32 %v866, %v3466
    %v3682 = vmul.f32 %v975, %v3466
    %v3683 = vmul.f32 %v1084, %v3466
    %3692 = vrot.lane.b32.xlu0 %v3676, 96
    %v3693 = vpop.permute.xlu0 %3692
    %3694 = vrot.lane.b32.xlu0 %v3677, 96
    %v3695 = vpop.permute.xlu0 %3694
    %3696 = vrot.lane.b32.xlu0 %v3678, 96
    %v3697 = vpop.permute.xlu0 %3696
    %3698 = vrot.lane.b32.xlu0 %v3679, 96
    %v3699 = vpop.permute.xlu0 %3698
    %3700 = vrot.lane.b32.xlu0 %v3680, 96
    %v3701 = vpop.permute.xlu0 %3700
    %3702 = vrot.lane.b32.xlu0 %v3681, 96
    %v3703 = vpop.permute.xlu0 %3702
    %3704 = vrot.lane.b32.xlu0 %v3682, 96
    %v3705 = vpop.permute.xlu0 %3704
    %3706 = vrot.lane.b32.xlu0 %v3683, 96
    %v3707 = vpop.permute.xlu0 %3706
    %v3716 = vsel %vm2607, %v3693, 0.0
    %3717 = vadd.xlane.f32.xlu0 %v3716
    %v3718 = vpop.xlane.xlu0 %3717
    %v3719 = vsel %vm2607, %v3695, 0.0
    %3720 = vadd.xlane.f32.xlu0 %v3719
    %v3721 = vpop.xlane.xlu0 %3720
    %v3722 = vsel %vm2607, %v3697, 0.0
    %3723 = vadd.xlane.f32.xlu0 %v3722
    %v3724 = vpop.xlane.xlu0 %3723
    %v3725 = vsel %vm2607, %v3699, 0.0
    %3726 = vadd.xlane.f32.xlu0 %v3725
    %v3727 = vpop.xlane.xlu0 %3726
    %v3728 = vsel %vm2607, %v3701, 0.0
    %3729 = vadd.xlane.f32.xlu0 %v3728
    %v3730 = vpop.xlane.xlu0 %3729
    %v3731 = vsel %vm2607, %v3703, 0.0
    %3732 = vadd.xlane.f32.xlu0 %v3731
    %v3733 = vpop.xlane.xlu0 %3732
    %v3734 = vsel %vm2607, %v3705, 0.0
    %3735 = vadd.xlane.f32.xlu0 %v3734
    %v3736 = vpop.xlane.xlu0 %3735
    %v3737 = vsel %vm2607, %v3707, 0.0
    %3738 = vadd.xlane.f32.xlu0 %v3737
    %v3739 = vpop.xlane.xlu0 %3738
    %v3740 = vtanh.pop %v3718
    %v3741 = vtanh.pop %v3721
    %v3742 = vtanh.pop %v3724
    %v3743 = vtanh.pop %v3727
    %v3744 = vtanh.pop %v3730
    %v3745 = vtanh.pop %v3733
    %v3746 = vtanh.pop %v3736
    %v3747 = vtanh.pop %v3739
    %v3748 = vsel %vm1493, %v3740, -inf
    %v3749 = vsel %vm1493, %v3741, -inf
    %v3750 = vsel %vm1493, %v3742, -inf
    %v3751 = vsel %vm1493, %v3743, -inf
    %v3752 = vsel %vm1493, %v3744, -inf
    %v3753 = vmax.f32 %v3748, %v3752
    %v3754 = vsel %vm1493, %v3745, -inf
    %v3755 = vmax.f32 %v3749, %v3754
    %v3756 = vsel %vm1493, %v3746, -inf
    %v3757 = vmax.f32 %v3750, %v3756
    %v3758 = vsel %vm1493, %v3747, -inf
    %v3759 = vmax.f32 %v3751, %v3758
    %v3760 = vmax.f32 %v3753, %v3755
    %v3761 = vmax.f32 %v3757, %v3759
    %v3762 = vmax.f32 %v3760, %v3761
    %v3763 = vsub.f32 %v3740, %v3762
    %v3764 = vsub.f32 %v3741, %v3762
    %v3765 = vsub.f32 %v3742, %v3762
    %v3766 = vsub.f32 %v3743, %v3762
    %v3767 = vsub.f32 %v3744, %v3762
    %v3768 = vsub.f32 %v3745, %v3762
    %v3769 = vsub.f32 %v3746, %v3762
    %v3770 = vsub.f32 %v3747, %v3762
    %v3771 = vmul.f32 %v3763, 1.442695
    %v3772 = vpow.pop %v3771
    %v3773 = vmul.f32 %v3764, 1.442695
    %v3774 = vpow.pop %v3773
    %v3775 = vmul.f32 %v3765, 1.442695
    %v3776 = vpow.pop %v3775
    %v3777 = vmul.f32 %v3766, 1.442695
    %v3778 = vpow.pop %v3777
    %v3779 = vmul.f32 %v3767, 1.442695
    %v3780 = vpow.pop %v3779
    %v3781 = vmul.f32 %v3768, 1.442695
    %v3782 = vpow.pop %v3781
    %v3783 = vmul.f32 %v3769, 1.442695
    %v3784 = vpow.pop %v3783
    %v3785 = vmul.f32 %v3770, 1.442695
    %v3786 = vpow.pop %v3785
    %v3787 = vsel %vm1493, %v3772, 0.0
    %v3788 = vsel %vm1493, %v3774, 0.0
    %v3789 = vadd.f32 %v3787, %v3788
    %v3790 = vsel %vm1493, %v3776, 0.0
    %v3791 = vadd.f32 %v3789, %v3790
    %v3792 = vsel %vm1493, %v3778, 0.0
    %v3793 = vadd.f32 %v3791, %v3792
    %v3794 = vsel %vm1493, %v3780, 0.0
    %v3795 = vadd.f32 %v3793, %v3794
    %v3796 = vsel %vm1493, %v3782, 0.0
    %v3797 = vadd.f32 %v3795, %v3796
    %v3798 = vsel %vm1493, %v3784, 0.0
    %v3799 = vadd.f32 %v3797, %v3798
    %v3800 = vsel %vm1493, %v3786, 0.0
    %v3801 = vadd.f32 %v3799, %v3800
    %v3802 = vrcp.pop %v3801
    %v3803 = vmul.f32 %v3772, %v3802
    %v3804 = vmul.f32 %v3774, %v3802
    %v3805 = vmul.f32 %v3776, %v3802
    %v3806 = vmul.f32 %v3778, %v3802
    %v3807 = vmul.f32 %v3780, %v3802
    %v3808 = vmul.f32 %v3782, %v3802
    %v3809 = vmul.f32 %v3784, %v3802
    %v3810 = vmul.f32 %v3786, %v3802
    %v3811 = vmul.f32 %v3803, %v326
    %v3812 = vmul.f32 %v3804, %v436
    %v3813 = vmul.f32 %v3805, %v545
    %v3814 = vmul.f32 %v3806, %v654
    %v3815 = vmul.f32 %v3807, %v756
    %v3816 = vmul.f32 %v3808, %v866
    %v3817 = vmul.f32 %v3809, %v975
    %v3818 = vmul.f32 %v3810, %v1084
    %v3819 = vsel %vm2711, %v3811, 0.0
    %v3820 = vsel %vm2711, %v3812, 0.0
    %v3821 = vadd.f32 %v3819, %v3820
    %v3822 = vsel %vm2711, %v3813, 0.0
    %v3823 = vadd.f32 %v3821, %v3822
    %v3824 = vsel %vm2711, %v3814, 0.0
    %v3825 = vadd.f32 %v3823, %v3824
    %v3826 = vsel %vm2711, %v3815, 0.0
    %v3827 = vadd.f32 %v3825, %v3826
    %v3828 = vsel %vm2711, %v3816, 0.0
    %v3829 = vadd.f32 %v3827, %v3828
    %v3830 = vsel %vm2711, %v3817, 0.0
    %v3831 = vadd.f32 %v3829, %v3830
    %v3832 = vsel %vm2711, %v3818, 0.0
    %v3833 = vadd.f32 %v3831, %v3832
    %3835 = vrot.lane.b32.xlu0 %v3833, 96
    %v3836 = vpop.permute.xlu0 %3835
    %v3837 = vsel %vm132, %v3836, 0
    %3839 = vmatprep.subr.mxu0 0.0
    %3840 = vmatpush1.msra.mxu0 0.0
    %3841 = vmatprep.subr.mxu0 0.0
    %3842 = vmatpush1.msra.mxu0 0.0
    %3843 = vmatprep.subr.mxu0 0.0
    %3844 = vmatpush1.msra.mxu0 0.0
    %3845 = vmatprep.subr.mxu0 0.0
    %3846 = vmatpush1.msra.mxu0 0.0
    %3847 = vmatprep.subr.mxu0 0.0
    %3848 = vmatpush1.msra.mxu0 0.0
    %3849 = vmatprep.subr.mxu0 0.0
    %3850 = vmatpush1.msra.mxu0 0.0
    %3851 = vmatprep.subr.mxu0 0.0
    %3852 = vmatpush1.msra.mxu0 0.0
    %3853 = vmatprep.subr.mxu0 0.0
    %3854 = vmatpush1.msra.mxu0 0.0
    %3855 = vmatprep.subr.mxu0 0.0
    %3856 = vmatpush1.msra.mxu0 0.0
    %3857 = vmatprep.subr.mxu0 0.0
    %3858 = vmatpush1.msra.mxu0 0.0
    %3859 = vmatprep.subr.mxu0 0.0
    %3860 = vmatpush1.msra.mxu0 0.0
    %3861 = vmatprep.subr.mxu0 0.0
    %3862 = vmatpush1.msra.mxu0 0.0
    %3863 = vmatprep.subr.mxu0 0.0
    %3864 = vmatpush1.msra.mxu0 %v1506
    %3865 = vmatprep.subr.mxu0 0.0
    %3866 = vmatpush1.msra.mxu0 %v1505
    %3867 = vmatprep.subr.mxu0 0.0
    %3868 = vmatpush1.msra.mxu0 %v1504
    %3869 = vmatprep.subr.mxu0 0.0
    %3870 = vmatpush1.msra.mxu0 %v1503
    %3871 = vmatprep.subr.mxu0 0.0
    %3872 = vmatpush2.msra.mxu0 0.0
    %3873 = vmatprep.subr.mxu0 0.0
    %3874 = vmatpush2.msra.mxu0 0.0
    %3875 = vmatprep.subr.mxu0 0.0
    %3876 = vmatpush2.msra.mxu0 0.0
    %3877 = vmatprep.subr.mxu0 0.0
    %3878 = vmatpush2.msra.mxu0 0.0
    %3879 = vmatprep.subr.mxu0 0.0
    %3880 = vmatpush2.msra.mxu0 0.0
    %3881 = vmatprep.subr.mxu0 0.0
    %3882 = vmatpush2.msra.mxu0 0.0
    %3883 = vmatprep.subr.mxu0 0.0
    %3884 = vmatpush2.msra.mxu0 0.0
    %3885 = vmatprep.subr.mxu0 0.0
    %3886 = vmatpush2.msra.mxu0 0.0
    %3887 = vmatprep.subr.mxu0 0.0
    %3888 = vmatpush2.msra.mxu0 0.0
    %3889 = vmatprep.subr.mxu0 0.0
    %3890 = vmatpush2.msra.mxu0 0.0
    %3891 = vmatprep.subr.mxu0 0.0
    %3892 = vmatpush2.msra.mxu0 0.0
    %3893 = vmatprep.subr.mxu0 0.0
    %3894 = vmatpush2.msra.mxu0 0.0
    %3895 = vmatprep.subr.mxu0 0.0
    %3896 = vmatpush2.msra.mxu0 0.0
    %3897 = vmatprep.subr.mxu0 0.0
    %3898 = vmatpush2.msra.mxu0 0.0
    %3899 = vmatprep.subr.mxu0 0.0
    %3900 = vmatpush2.msra.mxu0 0.0
    %3901 = vmatprep.subr.mxu0 0.0
    %3902 = vmatpush2.msra.mxu0 0.0
    %3903 = vmatprep.mubr.f32.mxu0 0.0
    %3904 = vmatmul.mubr.f32.gmra.mxu0 %v3837
    %v3905 = vpop.f32.mrf.mxu0
    %v3906 = vadd.f32 0.0, %v3905
    %v3907 = vpop.f32.mrf.mxu0
    %3908 = vdwg.mxu0
    %v3910 = vrot.slane %v3672, 4
    %v3912 = vadd.f32 %v2549, %v3910
    %v3914 = vrot.slane %v3906, 4
    %v3916 = vadd.f32 %v3912, %v3914
    %3917 = vmatprep.subr.mxu0 0.0
    %3918 = vmatpush1.msra.mxu0 0.0
    %3919 = vmatprep.subr.mxu0 0.0
    %3920 = vmatpush1.msra.mxu0 0.0
    %3921 = vmatprep.subr.mxu0 0.0
    %3922 = vmatpush1.msra.mxu0 0.0
    %3923 = vmatprep.subr.mxu0 0.0
    %3924 = vmatpush1.msra.mxu0 0.0
    %3925 = vmatprep.subr.mxu0 0.0
    %3926 = vmatpush1.msra.mxu0 0.0
    %3927 = vmatprep.subr.mxu0 0.0
    %3928 = vmatpush1.msra.mxu0 0.0
    %3929 = vmatprep.subr.mxu0 0.0
    %3930 = vmatpush1.msra.mxu0 0.0
    %3931 = vmatprep.subr.mxu0 0.0
    %3932 = vmatpush1.msra.mxu0 0.0
    %3933 = vmatprep.subr.mxu0 0.0
    %3934 = vmatpush1.msra.mxu0 0.0
    %3935 = vmatprep.subr.mxu0 0.0
    %3936 = vmatpush1.msra.mxu0 0.0
    %3937 = vmatprep.subr.mxu0 0.0
    %3938 = vmatpush1.msra.mxu0 0.0
    %3939 = vmatprep.subr.mxu0 0.0
    %3940 = vmatpush1.msra.mxu0 0.0
    %3941 = vmatprep.subr.mxu0 0.0
    %3942 = vmatpush1.msra.mxu0 %v1600
    %3943 = vmatprep.subr.mxu0 0.0
    %3944 = vmatpush1.msra.mxu0 %v1599
    %3945 = vmatprep.subr.mxu0 0.0
    %3946 = vmatpush1.msra.mxu0 %v1598
    %3947 = vmatprep.subr.mxu0 0.0
    %3948 = vmatpush1.msra.mxu0 %v1597
    %3949 = vmatprep.subr.mxu0 0.0
    %3950 = vmatpush2.msra.mxu0 0.0
    %3951 = vmatprep.subr.mxu0 0.0
    %3952 = vmatpush2.msra.mxu0 0.0
    %3953 = vmatprep.subr.mxu0 0.0
    %3954 = vmatpush2.msra.mxu0 0.0
    %3955 = vmatprep.subr.mxu0 0.0
    %3956 = vmatpush2.msra.mxu0 0.0
    %3957 = vmatprep.subr.mxu0 0.0
    %3958 = vmatpush2.msra.mxu0 0.0
    %3959 = vmatprep.subr.mxu0 0.0
    %3960 = vmatpush2.msra.mxu0 0.0
    %3961 = vmatprep.subr.mxu0 0.0
    %3962 = vmatpush2.msra.mxu0 0.0
    %3963 = vmatprep.subr.mxu0 0.0
    %3964 = vmatpush2.msra.mxu0 0.0
    %3965 = vmatprep.subr.mxu0 0.0
    %3966 = vmatpush2.msra.mxu0 0.0
    %3967 = vmatprep.subr.mxu0 0.0
    %3968 = vmatpush2.msra.mxu0 0.0
    %3969 = vmatprep.subr.mxu0 0.0
    %3970 = vmatpush2.msra.mxu0 0.0
    %3971 = vmatprep.subr.mxu0 0.0
    %3972 = vmatpush2.msra.mxu0 0.0
    %3973 = vmatprep.subr.mxu0 0.0
    %3974 = vmatpush2.msra.mxu0 0.0
    %3975 = vmatprep.subr.mxu0 0.0
    %3976 = vmatpush2.msra.mxu0 0.0
    %3977 = vmatprep.subr.mxu0 0.0
    %3978 = vmatpush2.msra.mxu0 0.0
    %3979 = vmatprep.subr.mxu0 0.0
    %3980 = vmatpush2.msra.mxu0 0.0
    %3981 = vmatprep.mubr.f32.mxu0 0.0
    %3982 = vmatmul.mubr.f32.gmra.mxu0 %v3469
    %v3983 = vpop.f32.mrf.mxu0
    %v3984 = vadd.f32 0.0, %v3983
    %v3985 = vpop.f32.mrf.mxu0
    %3986 = vdwg.mxu0
    %v3988 = vrot.slane %v3984, 4
    %v3990 = vadd.f32 %v3916, %v3988
    %v3991 = vxor.u32 %v3990, 2147483648
    %v3992 = vmul.f32 %v3991, 1.442695
    %v3993 = vpow.pop %v3992
    %v3994 = vadd.f32 %v3993, 1.0
    %v3995 = vrcp.pop %v3994
    %v3996 = vmul.f32 1.0, %v3995
    %v3997 = vadd.f32 %v3984, %v1684
    %v3999 = vrot.slane %v3997, 4
    %4000 = vrot.lane.b32.xlu0 %v3999, 64
    %v4001 = vpop.permute.xlu0 %4000
    %v4003 = vmul.f32 %v3996, %v4001
    %4005 = vrot.lane.b32.xlu0 %v4003, 64
    %v4006 = vpop.permute.xlu0 %4005
    %v4008 = vadd.f32 %v3916, %v4006
    %v4009 = vtanh.pop %v4008
    %v4010 = vsub.f32 1.0, %v3996
    %4012 = vrot.lane.b32.xlu0 %v4009, 96
    %v4013 = vpop.permute.xlu0 %4012
    %v4015 = vmul.f32 %v4010, %v4013
    %v4016 = vrot.slane %v3464, 6
    %v4018 = vmul.f32 %v3996, %v4016
    %v4019 = vadd.f32 %v4015, %v4018
    %v4021 = vrot.slane %v4019, 4
    %4022 = vrot.lane.b32.xlu0 %v4021, 96
    %v4023 = vpop.permute.xlu0 %4022
    %v4024 = vsel %vm132, %v4023, 0
    %4026 = vmatprep.subr.mxu0 0.0
    %4027 = vmatpush1.msra.mxu0 0.0
    %4028 = vmatprep.subr.mxu0 0.0
    %4029 = vmatpush1.msra.mxu0 0.0
    %4030 = vmatprep.subr.mxu0 0.0
    %4031 = vmatpush1.msra.mxu0 0.0
    %4032 = vmatprep.subr.mxu0 0.0
    %4033 = vmatpush1.msra.mxu0 0.0
    %4034 = vmatprep.subr.mxu0 0.0
    %4035 = vmatpush1.msra.mxu0 0.0
    %4036 = vmatprep.subr.mxu0 0.0
    %4037 = vmatpush1.msra.mxu0 0.0
    %4038 = vmatprep.subr.mxu0 0.0
    %4039 = vmatpush1.msra.mxu0 0.0
    %4040 = vmatprep.subr.mxu0 0.0
    %4041 = vmatpush1.msra.mxu0 0.0
    %4042 = vmatprep.subr.mxu0 0.0
    %4043 = vmatpush1.msra.mxu0 0.0
    %4044 = vmatprep.subr.mxu0 0.0
    %4045 = vmatpush1.msra.mxu0 0.0
    %4046 = vmatprep.subr.mxu0 0.0
    %4047 = vmatpush1.msra.mxu0 0.0
    %4048 = vmatprep.subr.mxu0 0.0
    %4049 = vmatpush1.msra.mxu0 0.0
    %4050 = vmatprep.subr.mxu0 0.0
    %4051 = vmatpush1.msra.mxu0 %v2913
    %4052 = vmatprep.subr.mxu0 0.0
    %4053 = vmatpush1.msra.mxu0 %v2912
    %4054 = vmatprep.subr.mxu0 0.0
    %4055 = vmatpush1.msra.mxu0 %v2911
    %4056 = vmatprep.subr.mxu0 0.0
    %4057 = vmatpush1.msra.mxu0 %v2910
    %4058 = vmatprep.subr.mxu0 0.0
    %4059 = vmatpush2.msra.mxu0 0.0
    %4060 = vmatprep.subr.mxu0 0.0
    %4061 = vmatpush2.msra.mxu0 0.0
    %4062 = vmatprep.subr.mxu0 0.0
    %4063 = vmatpush2.msra.mxu0 0.0
    %4064 = vmatprep.subr.mxu0 0.0
    %4065 = vmatpush2.msra.mxu0 0.0
    %4066 = vmatprep.subr.mxu0 0.0
    %4067 = vmatpush2.msra.mxu0 0.0
    %4068 = vmatprep.subr.mxu0 0.0
    %4069 = vmatpush2.msra.mxu0 0.0
    %4070 = vmatprep.subr.mxu0 0.0
    %4071 = vmatpush2.msra.mxu0 0.0
    %4072 = vmatprep.subr.mxu0 0.0
    %4073 = vmatpush2.msra.mxu0 0.0
    %4074 = vmatprep.subr.mxu0 0.0
    %4075 = vmatpush2.msra.mxu0 0.0
    %4076 = vmatprep.subr.mxu0 0.0
    %4077 = vmatpush2.msra.mxu0 0.0
    %4078 = vmatprep.subr.mxu0 0.0
    %4079 = vmatpush2.msra.mxu0 0.0
    %4080 = vmatprep.subr.mxu0 0.0
    %4081 = vmatpush2.msra.mxu0 0.0
    %4082 = vmatprep.subr.mxu0 0.0
    %4083 = vmatpush2.msra.mxu0 0.0
    %4084 = vmatprep.subr.mxu0 0.0
    %4085 = vmatpush2.msra.mxu0 0.0
    %4086 = vmatprep.subr.mxu0 0.0
    %4087 = vmatpush2.msra.mxu0 0.0
    %4088 = vmatprep.subr.mxu0 0.0
    %4089 = vmatpush2.msra.mxu0 0.0
    %4090 = vmatprep.mubr.f32.mxu0 0.0
    %4091 = vmatmul.mubr.f32.gmra.mxu0 %v4024
    %v4092 = vpop.f32.mrf.mxu0
    %v4093 = vadd.f32 0.0, %v4092
    %v4094 = vpop.f32.mrf.mxu0
    %4095 = vdwg.mxu0
    %v4096 = vadd.f32 %v4093, %v2992
    %v4097 = vsel %vm2607, %v4096, -inf
    %4098 = vmax.xlane.f32.xlu0 %v4097
    %v4099 = vpop.xlane.xlu0 %4098
    %v4100 = vsub.f32 %v4096, %v4099
    %v4101 = vmul.f32 %v4100, 1.442695
    %v4102 = vpow.pop %v4101
    %v4103 = vsel %vm2607, %v4102, 0.0
    %4104 = vadd.xlane.f32.xlu0 %v4103
    %v4105 = vpop.xlane.xlu0 %4104
    %v4106 = vlog2.pop %v4105
    %v4107 = vmul.f32 %v4106, 0.6931472
    %v4108 = vsub.f32 %v4100, %v4107
    %v4110 = vrot.slane %v4108, 4
    %v4112 = vmul.f32 %v2556, %v4110
    %v4114 = vrot.slane %v4112, 4
    %v4116 = vsel %vm2607, %v4114, 0.0
    %4117 = vadd.xlane.f32.xlu0 %v4116
    %v4118 = vpop.xlane.xlu0 %4117
    %v4119 = vrot.slane %v4118, 4
    %v4120 = vadd.f32 %v4118, %v4119
    %v4121 = vrot.slane %v4120, 2
    %v4122 = vadd.f32 %v4120, %v4121
    %v4123 = vrot.slane %v4122, 1
    %v4124 = vadd.f32 %v4122, %v4123
    %s4125 = vtos %v4124
    %s4126 = ssub.f32 0.0, %s4125
    %v4127 = vrcp.pop 2.0
    %s4128 = vtos %v4127
    %s4129 = smul.f32 %s4126, %s4128
    %v4130 = vrcp.pop 4.0
    %s4131 = vtos %v4130
    %s4132 = smul.f32 %s4129, %s4131
    %s4133 = sadd.f32 %s3578, %s4132
    %v4134 = vsel %vm2607, %v4108, -inf
    %4135 = vmax.xlane.f32.xlu0 %v4134
    %v4136 = vpop.xlane.xlu0 %4135
    %vm4137 = vcmp.ge.f32.partialorder %v4108, %v4136
    %v4138 = vsel %vm4137, %v2558, 32
    %v4139 = vsel %vm2607, %v4138, 2147483647
    %v4140 = vand.u32 %v4139, 65535
    %v4141 = vshra.s32 %v4139, 16
    %v4142 = vcvt.s32.f32 %v4140
    %v4143 = vcvt.s32.f32 %v4141
    %4144 = vmin.xlane.f32.xlu0 %v4143
    %v4145 = vpop.xlane.xlu0 %4144
    %vm4146 = vcmp.eq.f32.partialorder %v4143, %v4145
    %v4147 = vsel %vm4146, %v4142, inf
    %4148 = vmin.xlane.f32.xlu0 %v4147
    %v4149 = vpop.xlane.xlu0 %4148
    %v4150 = vcvt.f32.s32 %v4149
    %v4151 = vcvt.f32.s32 %v4145
    %v4152 = vshll.u32 %v4151, 16
    %v4153 = vadd.s32 %v4152, %v4150
    %vm4154 = vcmp.eq.s32.totalorder %v2558, %v4153
    %v4155 = vsel %vm4154, 1, 0
    %v4156 = vcvt.s32.f32 %v4155
    %v4158 = vsel %vm132, %v4156, 0
    %4160 = vmatprep.subr.mxu0 0.0
    %4161 = vmatpush1.msra.mxu0 0.0
    %4162 = vmatprep.subr.mxu0 0.0
    %4163 = vmatpush1.msra.mxu0 0.0
    %4164 = vmatprep.subr.mxu0 0.0
    %4165 = vmatpush1.msra.mxu0 0.0
    %4166 = vmatprep.subr.mxu0 0.0
    %4167 = vmatpush1.msra.mxu0 0.0
    %4168 = vmatprep.subr.mxu0 0.0
    %4169 = vmatpush1.msra.mxu0 0.0
    %4170 = vmatprep.subr.mxu0 0.0
    %4171 = vmatpush1.msra.mxu0 0.0
    %4172 = vmatprep.subr.mxu0 0.0
    %4173 = vmatpush1.msra.mxu0 0.0
    %4174 = vmatprep.subr.mxu0 0.0
    %4175 = vmatpush1.msra.mxu0 0.0
    %4176 = vmatprep.subr.mxu0 0.0
    %4177 = vmatpush1.msra.mxu0 0.0
    %4178 = vmatprep.subr.mxu0 0.0
    %4179 = vmatpush1.msra.mxu0 0.0
    %4180 = vmatprep.subr.mxu0 0.0
    %4181 = vmatpush1.msra.mxu0 0.0
    %4182 = vmatprep.subr.mxu0 0.0
    %4183 = vmatpush1.msra.mxu0 0.0
    %4184 = vmatprep.subr.mxu0 0.0
    %4185 = vmatpush1.msra.mxu0 %v2563
    %4186 = vmatprep.subr.mxu0 0.0
    %4187 = vmatpush1.msra.mxu0 %v2562
    %4188 = vmatprep.subr.mxu0 0.0
    %4189 = vmatpush1.msra.mxu0 %v2561
    %4190 = vmatprep.subr.mxu0 0.0
    %4191 = vmatpush1.msra.mxu0 %v2560
    %4192 = vmatprep.subr.mxu0 0.0
    %4193 = vmatpush2.msra.mxu0 0.0
    %4194 = vmatprep.subr.mxu0 0.0
    %4195 = vmatpush2.msra.mxu0 0.0
    %4196 = vmatprep.subr.mxu0 0.0
    %4197 = vmatpush2.msra.mxu0 0.0
    %4198 = vmatprep.subr.mxu0 0.0
    %4199 = vmatpush2.msra.mxu0 0.0
    %4200 = vmatprep.subr.mxu0 0.0
    %4201 = vmatpush2.msra.mxu0 0.0
    %4202 = vmatprep.subr.mxu0 0.0
    %4203 = vmatpush2.msra.mxu0 0.0
    %4204 = vmatprep.subr.mxu0 0.0
    %4205 = vmatpush2.msra.mxu0 0.0
    %4206 = vmatprep.subr.mxu0 0.0
    %4207 = vmatpush2.msra.mxu0 0.0
    %4208 = vmatprep.subr.mxu0 0.0
    %4209 = vmatpush2.msra.mxu0 0.0
    %4210 = vmatprep.subr.mxu0 0.0
    %4211 = vmatpush2.msra.mxu0 0.0
    %4212 = vmatprep.subr.mxu0 0.0
    %4213 = vmatpush2.msra.mxu0 0.0
    %4214 = vmatprep.subr.mxu0 0.0
    %4215 = vmatpush2.msra.mxu0 0.0
    %4216 = vmatprep.subr.mxu0 0.0
    %4217 = vmatpush2.msra.mxu0 0.0
    %4218 = vmatprep.subr.mxu0 0.0
    %4219 = vmatpush2.msra.mxu0 0.0
    %4220 = vmatprep.subr.mxu0 0.0
    %4221 = vmatpush2.msra.mxu0 0.0
    %4222 = vmatprep.subr.mxu0 0.0
    %4223 = vmatpush2.msra.mxu0 0.0
    %4224 = vmatprep.mubr.f32.mxu0 0.0
    %4225 = vmatmul.mubr.f32.gmra.mxu0 %v4158
    %v4226 = vpop.f32.mrf.mxu0
    %v4227 = vadd.f32 0.0, %v4226
    %v4228 = vpop.f32.mrf.mxu0
    %4229 = vdwg.mxu0
    %v4231 = vmul.f32 %v326, %v4021
    %v4232 = vmul.f32 %v436, %v4021
    %v4233 = vmul.f32 %v545, %v4021
    %v4234 = vmul.f32 %v654, %v4021
    %v4235 = vmul.f32 %v756, %v4021
    %v4236 = vmul.f32 %v866, %v4021
    %v4237 = vmul.f32 %v975, %v4021
    %v4238 = vmul.f32 %v1084, %v4021
    %4247 = vrot.lane.b32.xlu0 %v4231, 96
    %v4248 = vpop.permute.xlu0 %4247
    %4249 = vrot.lane.b32.xlu0 %v4232, 96
    %v4250 = vpop.permute.xlu0 %4249
    %4251 = vrot.lane.b32.xlu0 %v4233, 96
    %v4252 = vpop.permute.xlu0 %4251
    %4253 = vrot.lane.b32.xlu0 %v4234, 96
    %v4254 = vpop.permute.xlu0 %4253
    %4255 = vrot.lane.b32.xlu0 %v4235, 96
    %v4256 = vpop.permute.xlu0 %4255
    %4257 = vrot.lane.b32.xlu0 %v4236, 96
    %v4258 = vpop.permute.xlu0 %4257
    %4259 = vrot.lane.b32.xlu0 %v4237, 96
    %v4260 = vpop.permute.xlu0 %4259
    %4261 = vrot.lane.b32.xlu0 %v4238, 96
    %v4262 = vpop.permute.xlu0 %4261
    %v4271 = vsel %vm2607, %v4248, 0.0
    %4272 = vadd.xlane.f32.xlu0 %v4271
    %v4273 = vpop.xlane.xlu0 %4272
    %v4274 = vsel %vm2607, %v4250, 0.0
    %4275 = vadd.xlane.f32.xlu0 %v4274
    %v4276 = vpop.xlane.xlu0 %4275
    %v4277 = vsel %vm2607, %v4252, 0.0
    %4278 = vadd.xlane.f32.xlu0 %v4277
    %v4279 = vpop.xlane.xlu0 %4278
    %v4280 = vsel %vm2607, %v4254, 0.0
    %4281 = vadd.xlane.f32.xlu0 %v4280
    %v4282 = vpop.xlane.xlu0 %4281
    %v4283 = vsel %vm2607, %v4256, 0.0
    %4284 = vadd.xlane.f32.xlu0 %v4283
    %v4285 = vpop.xlane.xlu0 %4284
    %v4286 = vsel %vm2607, %v4258, 0.0
    %4287 = vadd.xlane.f32.xlu0 %v4286
    %v4288 = vpop.xlane.xlu0 %4287
    %v4289 = vsel %vm2607, %v4260, 0.0
    %4290 = vadd.xlane.f32.xlu0 %v4289
    %v4291 = vpop.xlane.xlu0 %4290
    %v4292 = vsel %vm2607, %v4262, 0.0
    %4293 = vadd.xlane.f32.xlu0 %v4292
    %v4294 = vpop.xlane.xlu0 %4293
    %v4295 = vtanh.pop %v4273
    %v4296 = vtanh.pop %v4276
    %v4297 = vtanh.pop %v4279
    %v4298 = vtanh.pop %v4282
    %v4299 = vtanh.pop %v4285
    %v4300 = vtanh.pop %v4288
    %v4301 = vtanh.pop %v4291
    %v4302 = vtanh.pop %v4294
    %v4303 = vsel %vm1493, %v4295, -inf
    %v4304 = vsel %vm1493, %v4296, -inf
    %v4305 = vsel %vm1493, %v4297, -inf
    %v4306 = vsel %vm1493, %v4298, -inf
    %v4307 = vsel %vm1493, %v4299, -inf
    %v4308 = vmax.f32 %v4303, %v4307
    %v4309 = vsel %vm1493, %v4300, -inf
    %v4310 = vmax.f32 %v4304, %v4309
    %v4311 = vsel %vm1493, %v4301, -inf
    %v4312 = vmax.f32 %v4305, %v4311
    %v4313 = vsel %vm1493, %v4302, -inf
    %v4314 = vmax.f32 %v4306, %v4313
    %v4315 = vmax.f32 %v4308, %v4310
    %v4316 = vmax.f32 %v4312, %v4314
    %v4317 = vmax.f32 %v4315, %v4316
    %v4318 = vsub.f32 %v4295, %v4317
    %v4319 = vsub.f32 %v4296, %v4317
    %v4320 = vsub.f32 %v4297, %v4317
    %v4321 = vsub.f32 %v4298, %v4317
    %v4322 = vsub.f32 %v4299, %v4317
    %v4323 = vsub.f32 %v4300, %v4317
    %v4324 = vsub.f32 %v4301, %v4317
    %v4325 = vsub.f32 %v4302, %v4317
    %v4326 = vmul.f32 %v4318, 1.442695
    %v4327 = vpow.pop %v4326
    %v4328 = vmul.f32 %v4319, 1.442695
    %v4329 = vpow.pop %v4328
    %v4330 = vmul.f32 %v4320, 1.442695
    %v4331 = vpow.pop %v4330
    %v4332 = vmul.f32 %v4321, 1.442695
    %v4333 = vpow.pop %v4332
    %v4334 = vmul.f32 %v4322, 1.442695
    %v4335 = vpow.pop %v4334
    %v4336 = vmul.f32 %v4323, 1.442695
    %v4337 = vpow.pop %v4336
    %v4338 = vmul.f32 %v4324, 1.442695
    %v4339 = vpow.pop %v4338
    %v4340 = vmul.f32 %v4325, 1.442695
    %v4341 = vpow.pop %v4340
    %v4342 = vsel %vm1493, %v4327, 0.0
    %v4343 = vsel %vm1493, %v4329, 0.0
    %v4344 = vadd.f32 %v4342, %v4343
    %v4345 = vsel %vm1493, %v4331, 0.0
    %v4346 = vadd.f32 %v4344, %v4345
    %v4347 = vsel %vm1493, %v4333, 0.0
    %v4348 = vadd.f32 %v4346, %v4347
    %v4349 = vsel %vm1493, %v4335, 0.0
    %v4350 = vadd.f32 %v4348, %v4349
    %v4351 = vsel %vm1493, %v4337, 0.0
    %v4352 = vadd.f32 %v4350, %v4351
    %v4353 = vsel %vm1493, %v4339, 0.0
    %v4354 = vadd.f32 %v4352, %v4353
    %v4355 = vsel %vm1493, %v4341, 0.0
    %v4356 = vadd.f32 %v4354, %v4355
    %v4357 = vrcp.pop %v4356
    %v4358 = vmul.f32 %v4327, %v4357
    %v4359 = vmul.f32 %v4329, %v4357
    %v4360 = vmul.f32 %v4331, %v4357
    %v4361 = vmul.f32 %v4333, %v4357
    %v4362 = vmul.f32 %v4335, %v4357
    %v4363 = vmul.f32 %v4337, %v4357
    %v4364 = vmul.f32 %v4339, %v4357
    %v4365 = vmul.f32 %v4341, %v4357
    %v4366 = vmul.f32 %v4358, %v326
    %v4367 = vmul.f32 %v4359, %v436
    %v4368 = vmul.f32 %v4360, %v545
    %v4369 = vmul.f32 %v4361, %v654
    %v4370 = vmul.f32 %v4362, %v756
    %v4371 = vmul.f32 %v4363, %v866
    %v4372 = vmul.f32 %v4364, %v975
    %v4373 = vmul.f32 %v4365, %v1084
    %v4374 = vsel %vm2711, %v4366, 0.0
    %v4375 = vsel %vm2711, %v4367, 0.0
    %v4376 = vadd.f32 %v4374, %v4375
    %v4377 = vsel %vm2711, %v4368, 0.0
    %v4378 = vadd.f32 %v4376, %v4377
    %v4379 = vsel %vm2711, %v4369, 0.0
    %v4380 = vadd.f32 %v4378, %v4379
    %v4381 = vsel %vm2711, %v4370, 0.0
    %v4382 = vadd.f32 %v4380, %v4381
    %v4383 = vsel %vm2711, %v4371, 0.0
    %v4384 = vadd.f32 %v4382, %v4383
    %v4385 = vsel %vm2711, %v4372, 0.0
    %v4386 = vadd.f32 %v4384, %v4385
    %v4387 = vsel %vm2711, %v4373, 0.0
    %v4388 = vadd.f32 %v4386, %v4387
    %4390 = vrot.lane.b32.xlu0 %v4388, 96
    %v4391 = vpop.permute.xlu0 %4390
    %v4392 = vsel %vm132, %v4391, 0
    %4394 = vmatprep.subr.mxu0 0.0
    %4395 = vmatpush1.msra.mxu0 0.0
    %4396 = vmatprep.subr.mxu0 0.0
    %4397 = vmatpush1.msra.mxu0 0.0
    %4398 = vmatprep.subr.mxu0 0.0
    %4399 = vmatpush1.msra.mxu0 0.0
    %4400 = vmatprep.subr.mxu0 0.0
    %4401 = vmatpush1.msra.mxu0 0.0
    %4402 = vmatprep.subr.mxu0 0.0
    %4403 = vmatpush1.msra.mxu0 0.0
    %4404 = vmatprep.subr.mxu0 0.0
    %4405 = vmatpush1.msra.mxu0 0.0
    %4406 = vmatprep.subr.mxu0 0.0
    %4407 = vmatpush1.msra.mxu0 0.0
    %4408 = vmatprep.subr.mxu0 0.0
    %4409 = vmatpush1.msra.mxu0 0.0
    %4410 = vmatprep.subr.mxu0 0.0
    %4411 = vmatpush1.msra.mxu0 0.0
    %4412 = vmatprep.subr.mxu0 0.0
    %4413 = vmatpush1.msra.mxu0 0.0
    %4414 = vmatprep.subr.mxu0 0.0
    %4415 = vmatpush1.msra.mxu0 0.0
    %4416 = vmatprep.subr.mxu0 0.0
    %4417 = vmatpush1.msra.mxu0 0.0
    %4418 = vmatprep.subr.mxu0 0.0
    %4419 = vmatpush1.msra.mxu0 %v1506
    %4420 = vmatprep.subr.mxu0 0.0
    %4421 = vmatpush1.msra.mxu0 %v1505
    %4422 = vmatprep.subr.mxu0 0.0
    %4423 = vmatpush1.msra.mxu0 %v1504
    %4424 = vmatprep.subr.mxu0 0.0
    %4425 = vmatpush1.msra.mxu0 %v1503
    %4426 = vmatprep.subr.mxu0 0.0
    %4427 = vmatpush2.msra.mxu0 0.0
    %4428 = vmatprep.subr.mxu0 0.0
    %4429 = vmatpush2.msra.mxu0 0.0
    %4430 = vmatprep.subr.mxu0 0.0
    %4431 = vmatpush2.msra.mxu0 0.0
    %4432 = vmatprep.subr.mxu0 0.0
    %4433 = vmatpush2.msra.mxu0 0.0
    %4434 = vmatprep.subr.mxu0 0.0
    %4435 = vmatpush2.msra.mxu0 0.0
    %4436 = vmatprep.subr.mxu0 0.0
    %4437 = vmatpush2.msra.mxu0 0.0
    %4438 = vmatprep.subr.mxu0 0.0
    %4439 = vmatpush2.msra.mxu0 0.0
    %4440 = vmatprep.subr.mxu0 0.0
    %4441 = vmatpush2.msra.mxu0 0.0
    %4442 = vmatprep.subr.mxu0 0.0
    %4443 = vmatpush2.msra.mxu0 0.0
    %4444 = vmatprep.subr.mxu0 0.0
    %4445 = vmatpush2.msra.mxu0 0.0
    %4446 = vmatprep.subr.mxu0 0.0
    %4447 = vmatpush2.msra.mxu0 0.0
    %4448 = vmatprep.subr.mxu0 0.0
    %4449 = vmatpush2.msra.mxu0 0.0
    %4450 = vmatprep.subr.mxu0 0.0
    %4451 = vmatpush2.msra.mxu0 0.0
    %4452 = vmatprep.subr.mxu0 0.0
    %4453 = vmatpush2.msra.mxu0 0.0
    %4454 = vmatprep.subr.mxu0 0.0
    %4455 = vmatpush2.msra.mxu0 0.0
    %4456 = vmatprep.subr.mxu0 0.0
    %4457 = vmatpush2.msra.mxu0 0.0
    %4458 = vmatprep.mubr.f32.mxu0 0.0
    %4459 = vmatmul.mubr.f32.gmra.mxu0 %v4392
    %v4460 = vpop.f32.mrf.mxu0
    %v4461 = vadd.f32 0.0, %v4460
    %v4462 = vpop.f32.mrf.mxu0
    %4463 = vdwg.mxu0
    %v4465 = vrot.slane %v4227, 2
    %v4467 = vadd.f32 %v2549, %v4465
    %v4469 = vrot.slane %v4461, 2
    %v4471 = vadd.f32 %v4467, %v4469
    %4472 = vmatprep.subr.mxu0 0.0
    %4473 = vmatpush1.msra.mxu0 0.0
    %4474 = vmatprep.subr.mxu0 0.0
    %4475 = vmatpush1.msra.mxu0 0.0
    %4476 = vmatprep.subr.mxu0 0.0
    %4477 = vmatpush1.msra.mxu0 0.0
    %4478 = vmatprep.subr.mxu0 0.0
    %4479 = vmatpush1.msra.mxu0 0.0
    %4480 = vmatprep.subr.mxu0 0.0
    %4481 = vmatpush1.msra.mxu0 0.0
    %4482 = vmatprep.subr.mxu0 0.0
    %4483 = vmatpush1.msra.mxu0 0.0
    %4484 = vmatprep.subr.mxu0 0.0
    %4485 = vmatpush1.msra.mxu0 0.0
    %4486 = vmatprep.subr.mxu0 0.0
    %4487 = vmatpush1.msra.mxu0 0.0
    %4488 = vmatprep.subr.mxu0 0.0
    %4489 = vmatpush1.msra.mxu0 0.0
    %4490 = vmatprep.subr.mxu0 0.0
    %4491 = vmatpush1.msra.mxu0 0.0
    %4492 = vmatprep.subr.mxu0 0.0
    %4493 = vmatpush1.msra.mxu0 0.0
    %4494 = vmatprep.subr.mxu0 0.0
    %4495 = vmatpush1.msra.mxu0 0.0
    %4496 = vmatprep.subr.mxu0 0.0
    %4497 = vmatpush1.msra.mxu0 %v1600
    %4498 = vmatprep.subr.mxu0 0.0
    %4499 = vmatpush1.msra.mxu0 %v1599
    %4500 = vmatprep.subr.mxu0 0.0
    %4501 = vmatpush1.msra.mxu0 %v1598
    %4502 = vmatprep.subr.mxu0 0.0
    %4503 = vmatpush1.msra.mxu0 %v1597
    %4504 = vmatprep.subr.mxu0 0.0
    %4505 = vmatpush2.msra.mxu0 0.0
    %4506 = vmatprep.subr.mxu0 0.0
    %4507 = vmatpush2.msra.mxu0 0.0
    %4508 = vmatprep.subr.mxu0 0.0
    %4509 = vmatpush2.msra.mxu0 0.0
    %4510 = vmatprep.subr.mxu0 0.0
    %4511 = vmatpush2.msra.mxu0 0.0
    %4512 = vmatprep.subr.mxu0 0.0
    %4513 = vmatpush2.msra.mxu0 0.0
    %4514 = vmatprep.subr.mxu0 0.0
    %4515 = vmatpush2.msra.mxu0 0.0
    %4516 = vmatprep.subr.mxu0 0.0
    %4517 = vmatpush2.msra.mxu0 0.0
    %4518 = vmatprep.subr.mxu0 0.0
    %4519 = vmatpush2.msra.mxu0 0.0
    %4520 = vmatprep.subr.mxu0 0.0
    %4521 = vmatpush2.msra.mxu0 0.0
    %4522 = vmatprep.subr.mxu0 0.0
    %4523 = vmatpush2.msra.mxu0 0.0
    %4524 = vmatprep.subr.mxu0 0.0
    %4525 = vmatpush2.msra.mxu0 0.0
    %4526 = vmatprep.subr.mxu0 0.0
    %4527 = vmatpush2.msra.mxu0 0.0
    %4528 = vmatprep.subr.mxu0 0.0
    %4529 = vmatpush2.msra.mxu0 0.0
    %4530 = vmatprep.subr.mxu0 0.0
    %4531 = vmatpush2.msra.mxu0 0.0
    %4532 = vmatprep.subr.mxu0 0.0
    %4533 = vmatpush2.msra.mxu0 0.0
    %4534 = vmatprep.subr.mxu0 0.0
    %4535 = vmatpush2.msra.mxu0 0.0
    %4536 = vmatprep.mubr.f32.mxu0 0.0
    %4537 = vmatmul.mubr.f32.gmra.mxu0 %v4024
    %v4538 = vpop.f32.mrf.mxu0
    %v4539 = vadd.f32 0.0, %v4538
    %v4540 = vpop.f32.mrf.mxu0
    %4541 = vdwg.mxu0
    %v4543 = vrot.slane %v4539, 2
    %v4545 = vadd.f32 %v4471, %v4543
    %v4546 = vxor.u32 %v4545, 2147483648
    %v4547 = vmul.f32 %v4546, 1.442695
    %v4548 = vpow.pop %v4547
    %v4549 = vadd.f32 %v4548, 1.0
    %v4550 = vrcp.pop %v4549
    %v4551 = vmul.f32 1.0, %v4550
    %v4552 = vadd.f32 %v4539, %v1684
    %v4554 = vrot.slane %v4552, 2
    %4555 = vrot.lane.b32.xlu0 %v4554, 64
    %v4556 = vpop.permute.xlu0 %4555
    %v4558 = vmul.f32 %v4551, %v4556
    %4560 = vrot.lane.b32.xlu0 %v4558, 64
    %v4561 = vpop.permute.xlu0 %4560
    %v4563 = vadd.f32 %v4471, %v4561
    %v4564 = vtanh.pop %v4563
    %v4565 = vsub.f32 1.0, %v4551
    %4567 = vrot.lane.b32.xlu0 %v4564, 96
    %v4568 = vpop.permute.xlu0 %4567
    %v4570 = vmul.f32 %v4565, %v4568
    %v4571 = vrot.slane %v4019, 6
    %v4573 = vmul.f32 %v4551, %v4571
    %v4574 = vadd.f32 %v4570, %v4573
    %v4576 = vrot.slane %v4574, 6
    %4577 = vrot.lane.b32.xlu0 %v4576, 96
    %v4578 = vpop.permute.xlu0 %4577
    %v4579 = vsel %vm132, %v4578, 0
    %4581 = vmatprep.subr.mxu0 0.0
    %4582 = vmatpush1.msra.mxu0 0.0
    %4583 = vmatprep.subr.mxu0 0.0
    %4584 = vmatpush1.msra.mxu0 0.0
    %4585 = vmatprep.subr.mxu0 0.0
    %4586 = vmatpush1.msra.mxu0 0.0
    %4587 = vmatprep.subr.mxu0 0.0
    %4588 = vmatpush1.msra.mxu0 0.0
    %4589 = vmatprep.subr.mxu0 0.0
    %4590 = vmatpush1.msra.mxu0 0.0
    %4591 = vmatprep.subr.mxu0 0.0
    %4592 = vmatpush1.msra.mxu0 0.0
    %4593 = vmatprep.subr.mxu0 0.0
    %4594 = vmatpush1.msra.mxu0 0.0
    %4595 = vmatprep.subr.mxu0 0.0
    %4596 = vmatpush1.msra.mxu0 0.0
    %4597 = vmatprep.subr.mxu0 0.0
    %4598 = vmatpush1.msra.mxu0 0.0
    %4599 = vmatprep.subr.mxu0 0.0
    %4600 = vmatpush1.msra.mxu0 0.0
    %4601 = vmatprep.subr.mxu0 0.0
    %4602 = vmatpush1.msra.mxu0 0.0
    %4603 = vmatprep.subr.mxu0 0.0
    %4604 = vmatpush1.msra.mxu0 0.0
    %4605 = vmatprep.subr.mxu0 0.0
    %4606 = vmatpush1.msra.mxu0 %v2913
    %4607 = vmatprep.subr.mxu0 0.0
    %4608 = vmatpush1.msra.mxu0 %v2912
    %4609 = vmatprep.subr.mxu0 0.0
    %4610 = vmatpush1.msra.mxu0 %v2911
    %4611 = vmatprep.subr.mxu0 0.0
    %4612 = vmatpush1.msra.mxu0 %v2910
    %4613 = vmatprep.subr.mxu0 0.0
    %4614 = vmatpush2.msra.mxu0 0.0
    %4615 = vmatprep.subr.mxu0 0.0
    %4616 = vmatpush2.msra.mxu0 0.0
    %4617 = vmatprep.subr.mxu0 0.0
    %4618 = vmatpush2.msra.mxu0 0.0
    %4619 = vmatprep.subr.mxu0 0.0
    %4620 = vmatpush2.msra.mxu0 0.0
    %4621 = vmatprep.subr.mxu0 0.0
    %4622 = vmatpush2.msra.mxu0 0.0
    %4623 = vmatprep.subr.mxu0 0.0
    %4624 = vmatpush2.msra.mxu0 0.0
    %4625 = vmatprep.subr.mxu0 0.0
    %4626 = vmatpush2.msra.mxu0 0.0
    %4627 = vmatprep.subr.mxu0 0.0
    %4628 = vmatpush2.msra.mxu0 0.0
    %4629 = vmatprep.subr.mxu0 0.0
    %4630 = vmatpush2.msra.mxu0 0.0
    %4631 = vmatprep.subr.mxu0 0.0
    %4632 = vmatpush2.msra.mxu0 0.0
    %4633 = vmatprep.subr.mxu0 0.0
    %4634 = vmatpush2.msra.mxu0 0.0
    %4635 = vmatprep.subr.mxu0 0.0
    %4636 = vmatpush2.msra.mxu0 0.0
    %4637 = vmatprep.subr.mxu0 0.0
    %4638 = vmatpush2.msra.mxu0 0.0
    %4639 = vmatprep.subr.mxu0 0.0
    %4640 = vmatpush2.msra.mxu0 0.0
    %4641 = vmatprep.subr.mxu0 0.0
    %4642 = vmatpush2.msra.mxu0 0.0
    %4643 = vmatprep.subr.mxu0 0.0
    %4644 = vmatpush2.msra.mxu0 0.0
    %4645 = vmatprep.mubr.f32.mxu0 0.0
    %4646 = vmatmul.mubr.f32.gmra.mxu0 %v4579
    %v4647 = vpop.f32.mrf.mxu0
    %v4648 = vadd.f32 0.0, %v4647
    %v4649 = vpop.f32.mrf.mxu0
    %4650 = vdwg.mxu0
    %v4651 = vadd.f32 %v4648, %v2992
    %v4652 = vsel %vm2607, %v4651, -inf
    %4653 = vmax.xlane.f32.xlu0 %v4652
    %v4654 = vpop.xlane.xlu0 %4653
    %v4655 = vsub.f32 %v4651, %v4654
    %v4656 = vmul.f32 %v4655, 1.442695
    %v4657 = vpow.pop %v4656
    %v4658 = vsel %vm2607, %v4657, 0.0
    %4659 = vadd.xlane.f32.xlu0 %v4658
    %v4660 = vpop.xlane.xlu0 %4659
    %v4661 = vlog2.pop %v4660
    %v4662 = vmul.f32 %v4661, 0.6931472
    %v4663 = vsub.f32 %v4655, %v4662
    %v4665 = vrot.slane %v4663, 2
    %v4667 = vmul.f32 %v2556, %v4665
    %v4669 = vrot.slane %v4667, 6
    %v4671 = vsel %vm2607, %v4669, 0.0
    %4672 = vadd.xlane.f32.xlu0 %v4671
    %v4673 = vpop.xlane.xlu0 %4672
    %v4674 = vrot.slane %v4673, 4
    %v4675 = vadd.f32 %v4673, %v4674
    %v4676 = vrot.slane %v4675, 2
    %v4677 = vadd.f32 %v4675, %v4676
    %v4678 = vrot.slane %v4677, 1
    %v4679 = vadd.f32 %v4677, %v4678
    %s4680 = vtos %v4679
    %s4681 = ssub.f32 0.0, %s4680
    %v4682 = vrcp.pop 2.0
    %s4683 = vtos %v4682
    %s4684 = smul.f32 %s4681, %s4683
    %v4685 = vrcp.pop 4.0
    %s4686 = vtos %v4685
    %s4687 = smul.f32 %s4684, %s4686
    %s4688 = sadd.f32 %s4133, %s4687
    %s4689 = scalar_lea.smem [#allocation2], 0
    %4690 = sst [smem:[%s4689]] %s4688
    // Predicated region
    $region22: #{seq2seq_loss_pallas.1} parent=1 // pred_check
      _
    $region23: #{seq2seq_loss_pallas.1} parent=1 // pred_check_branch
      %4692 = sbr.rel (0) target = $region25
    $region24: #{seq2seq_loss_pallas.1} parent=1 // pred_region
      %s4694 = ssub.s32 16, 16
      %4695 = vsyncadd [#allocation3], %s4694
      %4698 = dma.smem_to_hbm [#allocation2], 16, %s5, [#allocation3]
    $region25: #{seq2seq_loss_pallas.1} parent=1 // pred_fallthru
      _
    // Predicated region
    $region26: #{seq2seq_loss_pallas.1} parent=1 // pred_check
      _
    $region27: #{seq2seq_loss_pallas.1} parent=1 // pred_check_branch
      %4700 = sbr.rel (0) target = $region29
    $region28: #{seq2seq_loss_pallas.1} parent=1 // pred_region
      %4701 = dma.done [#allocation3], 16
    $region29: #{seq2seq_loss_pallas.1} parent=1 // pred_fallthru
      _
    %4702 = sfence
    %4703 = vsyncpa [#allocation3], 1

</llo_original>
